<compile_context>
chip_gen: v7x
topology: tpu7x:2x2x1
jax: 0.10.0
libtpu: 0.0.40
codegen_flags: <defaults>
</compile_context>

<pallas_src>
import jax
import jax.numpy as jnp
from jax import lax
from jax.experimental import pallas as pl
from jax.experimental.pallas import tpu as pltpu

NSTAGE = 20   # `nstage` constant from the PyTorch file
HIDDEN = 32
EMB = 32
VOC = 64
B = 2
L = 8         # tokens per stage


def _sigmoid(x):
    # mathematically identical to 1/(1+exp(-x)); a single EUP (tanh) op.
    return 0.5 * (1.0 + jnp.tanh(0.5 * x))


def gru_bidir_fc_kernel(tok_ref, emb_ref, w_in_ref, b_in_ref, w_hh_ref,
                        b_hn_ref, w_fc_ref, b_fc_ref, out_ref):
    TBP, Lk = tok_ref.shape              # (T*BP, L) time-major, batch-padded tokens
    BP = out_ref.shape[0]
    T = TBP // BP
    VOCk, _ = emb_ref.shape
    H = w_hh_ref.shape[0]
    H2, H3 = 2 * H, 3 * H

    # ---- fused embedding gather + mean: mean_j emb[tok_j] == (counts @ emb)/L ----
    tok = tok_ref[...]
    vocab = lax.broadcasted_iota(jnp.int32, (TBP, VOCk), 1)
    counts = (tok[:, 0:1] == vocab).astype(jnp.float32)
    for j in range(1, Lk):
        counts = counts + (tok[:, j:j + 1] == vocab).astype(jnp.float32)
    x_all = jnp.dot(counts, emb_ref[...],
                    preferred_element_type=jnp.float32) * (1.0 / Lk)    # (T*BP, E)

    # ---- hoisted input projections, lane-packed [r|z|n] per direction ----
    # (r/z biases b_ih + b_hh already folded into b_in; n keeps b_hh_n separate.)
    gi_f = (jnp.dot(x_all, w_in_ref[0], preferred_element_type=jnp.float32)
            + b_in_ref[0])                                              # (T*BP, 3H)
    x_last = x_all[(T - 1) * BP:T * BP, :]                              # (BP, E)
    gi_b = (jnp.dot(x_last, w_in_ref[1], preferred_element_type=jnp.float32)
            + b_in_ref[1])                                              # (BP, 3H)

    w_hh = w_hh_ref[...]                 # (H, 3H) packed forward recurrent weights
    b_hn_f = b_hn_ref[0]                 # (1, H) forward b_hh_n

    # ---- forward GRU recurrence: fully unrolled, ONE packed dot per step ----
    # t = 0: h0 == 0, so the recurrent dot and the z*h leak term vanish.
    g = gi_f[0:BP, :]
    rz = _sigmoid(g[:, 0:H2])
    n = jnp.tanh(g[:, H2:H3] + rz[:, 0:H] * b_hn_f)
    h = (1.0 - rz[:, H:H2]) * n
    for t in range(1, T):
        lo = t * BP                       # sublane-tile aligned slice (BP == 8)
        g = gi_f[lo:lo + BP, :]
        hh = jnp.dot(h, w_hh, preferred_element_type=jnp.float32)       # (BP, 3H)
        rz = _sigmoid(g[:, 0:H2] + hh[:, 0:H2])     # fused sigmoid over [r|z]
        r = rz[:, 0:H]
        z = rz[:, H:H2]
        n = jnp.tanh(g[:, H2:H3] + r * (hh[:, H2:H3] + b_hn_f))
        h = (1.0 - z) * n + z * h

    # ---- backward direction: the model only reads its output at the LAST time
    # index, which (with h0 = 0) equals a single GRU step on x_{T-1}. ----
    rz_b = _sigmoid(gi_b[:, 0:H2])
    bn = jnp.tanh(gi_b[:, H2:H3] + rz_b[:, 0:H] * b_hn_ref[1])
    h_b = (1.0 - rz_b[:, H:H2]) * bn

    # ---- fc(concat([h_fwd, h_bwd])) + sigmoid: VPU multiply + lane reduce ----
    logit = (jnp.sum(h * w_fc_ref[0] + h_b * w_fc_ref[1],
                     axis=-1, keepdims=True) + b_fc_ref[...])
    out_ref[...] = _sigmoid(logit)


def pack_params(p):
    """One-time layout packing: gates lane-packed [r|z|n] per direction."""
    wih, whh, bih, bhh = p["wih"], p["whh"], p["bih"], p["bhh"]
    w_in = jnp.stack([
        jnp.concatenate([wih[0], wih[1], wih[2]], axis=1),     # fwd (E, 3H)
        jnp.concatenate([wih[3], wih[4], wih[5]], axis=1),     # bwd (E, 3H)
    ])
    b_in = jnp.stack([
        jnp.concatenate([bih[0] + bhh[0], bih[1] + bhh[1], bih[2]], axis=1),
        jnp.concatenate([bih[3] + bhh[3], bih[4] + bhh[4], bih[5]], axis=1),
    ])                                                          # (2, 1, 3H)
    w_hh = jnp.concatenate([whh[0], whh[1], whh[2]], axis=1)    # (H, 3H) fwd only
    b_hn = jnp.stack([bhh[2], bhh[5]])                          # (2, 1, H)
    w_fc = jnp.stack([p["wfc"][0].T, p["wfc"][1].T])            # (2, 1, H)
    return dict(emb=p["emb"].astype(jnp.float32), w_in=w_in, b_in=b_in,
                w_hh=w_hh, b_hn=b_hn, w_fc=w_fc, b_fc=p["bfc"])


def rnn_forward(tokens, packed):
    Bsz, T, Lk = tokens.shape
    bp = max(8, ((Bsz + 7) // 8) * 8)     # pad batch to the f32 sublane tile

    # Tiny layout plumbing kept outside the kernel: time-major, batch-padded
    # token slab (pad with token id 0; padded rows are discarded afterwards).
    tok_tm = jnp.swapaxes(tokens, 0, 1)                                  # (T, B, L)
    tok_tm = jnp.pad(tok_tm, ((0, 0), (0, bp - Bsz), (0, 0)))            # (T, BP, L)
    tok2d = tok_tm.reshape(T * bp, Lk).astype(jnp.int32)

    args = (tok2d, packed["emb"], packed["w_in"], packed["b_in"],
            packed["w_hh"], packed["b_hn"], packed["w_fc"], packed["b_fc"])

    def full_spec(arr):
        nd = arr.ndim
        return pl.BlockSpec(arr.shape, lambda i, _n=nd: (0,) * _n)

    out_p = pl.pallas_call(
        gru_bidir_fc_kernel,
        out_shape=jax.ShapeDtypeStruct((bp, 1), jnp.float32),
        grid_spec=pltpu.PrefetchScalarGridSpec(
            num_scalar_prefetch=0,
            grid=(1,),                    # single invocation; recurrence in-kernel
            in_specs=[full_spec(a) for a in args],
            out_specs=pl.BlockSpec((bp, 1), lambda i: (0, 0)),
        ),
        compiler_params=pltpu.CompilerParams(
            dimension_semantics=("arbitrary",)),
    )(*args)
    return out_p[:Bsz]


def init_params(key):
    k = 1.0 / float(HIDDEN) ** 0.5
    keys = jax.random.split(key, 7)

    def u(kk, shape):
        return jax.random.uniform(kk, shape, jnp.float32, -k, k)

    return dict(
        emb=jax.random.normal(keys[0], (VOC, EMB), jnp.float32),
        # GRU params stored gate-major on a leading axis:
        # rows 0,1,2 = forward (r,z,n); rows 3,4,5 = backward (r,z,n).
        wih=u(keys[1], (6, EMB, HIDDEN)),      # input->hidden, stored (E, H)
        whh=u(keys[2], (6, HIDDEN, HIDDEN)),   # hidden->hidden, stored (H, H)
        bih=u(keys[3], (6, 1, HIDDEN)),
        bhh=u(keys[4], (6, 1, HIDDEN)),
        # fc: Linear(2H, 1), split into [forward half, backward half]
        wfc=u(keys[5], (2, HIDDEN, 1)),
        bfc=u(keys[6], (1, 1)),
    )


def reference_forward(tokens, p):
    """Pure-JAX reference: full bidirectional GRU, then fc(x[:, -1, :]) + sigmoid."""
    H = HIDDEN
    feats = jnp.mean(p["emb"][tokens], axis=2)      # (B, T, E)
    xs = jnp.swapaxes(feats, 0, 1)                  # (T, B, E)
    Bsz = tokens.shape[0]
    h0 = jnp.zeros((Bsz, H), jnp.float32)

    def cell(x, h, d):                              # d: 0 = forward, 1 = backward
        o = 3 * d
        r = jax.nn.sigmoid(x @ p["wih"][o + 0] + p["bih"][o + 0]
                           + h @ p["whh"][o + 0] + p["bhh"][o + 0])
        z = jax.nn.sigmoid(x @ p["wih"][o + 1] + p["bih"][o + 1]
                           + h @ p["whh"][o + 1] + p["bhh"][o + 1])
        n = jnp.tanh(x @ p["wih"][o + 2] + p["bih"][o + 2]
                     + r * (h @ p["whh"][o + 2] + p["bhh"][o + 2]))
        return (1.0 - z) * n + z * h

    def fstep(h, x):
        h2 = cell(x, h, 0)
        return h2, h2

    def bstep(h, x):
        h2 = cell(x, h, 1)
        return h2, h2

    _, outs_f = lax.scan(fstep, h0, xs)
    _, outs_b = lax.scan(bstep, h0, xs[::-1])
    outs_b = outs_b[::-1]
    last = jnp.concatenate([outs_f[-1], outs_b[-1]], axis=-1)   # (B, 2H)
    wfc = jnp.concatenate([p["wfc"][0], p["wfc"][1]], axis=0)   # (2H, 1)
    return jax.nn.sigmoid(last @ wfc + p["bfc"])


if __name__ == "__main__":
    key = jax.random.PRNGKey(0)
    pkey, xkey = jax.random.split(key)
    params = init_params(pkey)
    packed = pack_params(params)
    tokens = jax.random.randint(xkey, (B, NSTAGE, L), 0, VOC, dtype=jnp.int32)

    out = rnn_forward(tokens, packed)
    out = jax.block_until_ready(out)

    ref = reference_forward(tokens, params)
    assert out.shape == (B, 1)
    assert jnp.allclose(out, ref, atol=1e-5, rtol=1e-5), (out, ref)
    print("KERNEL_OK")
</pallas_src>

<mosaic_0001>
module attributes {stable_mosaic.version = 11 : i64} {
  func.func @gru_bidir_fc_kernel(%arg0: i32, %arg1: memref<160x8xi32, #tpu.memory_space<vmem>>, %arg2: memref<64x32xf32, #tpu.memory_space<vmem>>, %arg3: memref<2x32x96xf32, #tpu.memory_space<vmem>>, %arg4: memref<2x1x96xf32, #tpu.memory_space<vmem>>, %arg5: memref<32x96xf32, #tpu.memory_space<vmem>>, %arg6: memref<2x1x32xf32, #tpu.memory_space<vmem>>, %arg7: memref<2x1x32xf32, #tpu.memory_space<vmem>>, %arg8: memref<1x1xf32, #tpu.memory_space<vmem>>, %arg9: memref<8x1xf32, #tpu.memory_space<vmem>>) attributes {dimension_semantics = [#tpu.dimension_semantics<arbitrary>], iteration_bounds = array<i64: 1>, scalar_prefetch = 0 : i64, scratch_operands = 0 : i64, tpu.core_type = #tpu.core_type<tc>, window_params = [{pipeline_mode = #tpu.pipeline_mode<synchronous>, transform_indices = @transform_0, window_bounds = array<i64: 160, 8>}, {pipeline_mode = #tpu.pipeline_mode<synchronous>, transform_indices = @transform_1, window_bounds = array<i64: 64, 32>}, {pipeline_mode = #tpu.pipeline_mode<synchronous>, transform_indices = @transform_2, window_bounds = array<i64: 2, 32, 96>}, {pipeline_mode = #tpu.pipeline_mode<synchronous>, transform_indices = @transform_3, window_bounds = array<i64: 2, 1, 96>}, {pipeline_mode = #tpu.pipeline_mode<synchronous>, transform_indices = @transform_4, window_bounds = array<i64: 32, 96>}, {pipeline_mode = #tpu.pipeline_mode<synchronous>, transform_indices = @transform_5, window_bounds = array<i64: 2, 1, 32>}, {pipeline_mode = #tpu.pipeline_mode<synchronous>, transform_indices = @transform_6, window_bounds = array<i64: 2, 1, 32>}, {pipeline_mode = #tpu.pipeline_mode<synchronous>, transform_indices = @transform_7, window_bounds = array<i64: 1, 1>}, {pipeline_mode = #tpu.pipeline_mode<synchronous>, transform_indices = @transform_8, window_bounds = array<i64: 8, 1>}]} {
    %c0 = arith.constant 0 : index
    %c0_0 = arith.constant 0 : index
    %0 = vector.load %arg1[%c0, %c0_0] : memref<160x8xi32, #tpu.memory_space<vmem>>, vector<160x8xi32>
    %1 = tpu.iota {dimensions = array<i32: 1>} : vector<160x64xi32>
    %2 = vector.extract_strided_slice %0 {offsets = [0, 0], sizes = [160, 1], strides = [1, 1]} : vector<160x8xi32> to vector<160x1xi32>
    %3 = vector.broadcast %2 : vector<160x1xi32> to vector<160x64xi32>
    %4 = arith.cmpi eq, %3, %1 : vector<160x64xi32>
    %5 = arith.extui %4 : vector<160x64xi1> to vector<160x64xi32>
    %6 = arith.sitofp %5 : vector<160x64xi32> to vector<160x64xf32>
    %7 = vector.extract_strided_slice %0 {offsets = [0, 1], sizes = [160, 1], strides = [1, 1]} : vector<160x8xi32> to vector<160x1xi32>
    %8 = vector.broadcast %7 : vector<160x1xi32> to vector<160x64xi32>
    %9 = arith.cmpi eq, %8, %1 : vector<160x64xi32>
    %10 = arith.extui %9 : vector<160x64xi1> to vector<160x64xi32>
    %11 = arith.sitofp %10 : vector<160x64xi32> to vector<160x64xf32>
    %12 = arith.addf %6, %11 : vector<160x64xf32>
    %13 = vector.extract_strided_slice %0 {offsets = [0, 2], sizes = [160, 1], strides = [1, 1]} : vector<160x8xi32> to vector<160x1xi32>
    %14 = vector.broadcast %13 : vector<160x1xi32> to vector<160x64xi32>
    %15 = arith.cmpi eq, %14, %1 : vector<160x64xi32>
    %16 = arith.extui %15 : vector<160x64xi1> to vector<160x64xi32>
    %17 = arith.sitofp %16 : vector<160x64xi32> to vector<160x64xf32>
    %18 = arith.addf %12, %17 : vector<160x64xf32>
    %19 = vector.extract_strided_slice %0 {offsets = [0, 3], sizes = [160, 1], strides = [1, 1]} : vector<160x8xi32> to vector<160x1xi32>
    %20 = vector.broadcast %19 : vector<160x1xi32> to vector<160x64xi32>
    %21 = arith.cmpi eq, %20, %1 : vector<160x64xi32>
    %22 = arith.extui %21 : vector<160x64xi1> to vector<160x64xi32>
    %23 = arith.sitofp %22 : vector<160x64xi32> to vector<160x64xf32>
    %24 = arith.addf %18, %23 : vector<160x64xf32>
    %25 = vector.extract_strided_slice %0 {offsets = [0, 4], sizes = [160, 1], strides = [1, 1]} : vector<160x8xi32> to vector<160x1xi32>
    %26 = vector.broadcast %25 : vector<160x1xi32> to vector<160x64xi32>
    %27 = arith.cmpi eq, %26, %1 : vector<160x64xi32>
    %28 = arith.extui %27 : vector<160x64xi1> to vector<160x64xi32>
    %29 = arith.sitofp %28 : vector<160x64xi32> to vector<160x64xf32>
    %30 = arith.addf %24, %29 : vector<160x64xf32>
    %31 = vector.extract_strided_slice %0 {offsets = [0, 5], sizes = [160, 1], strides = [1, 1]} : vector<160x8xi32> to vector<160x1xi32>
    %32 = vector.broadcast %31 : vector<160x1xi32> to vector<160x64xi32>
    %33 = arith.cmpi eq, %32, %1 : vector<160x64xi32>
    %34 = arith.extui %33 : vector<160x64xi1> to vector<160x64xi32>
    %35 = arith.sitofp %34 : vector<160x64xi32> to vector<160x64xf32>
    %36 = arith.addf %30, %35 : vector<160x64xf32>
    %37 = vector.extract_strided_slice %0 {offsets = [0, 6], sizes = [160, 1], strides = [1, 1]} : vector<160x8xi32> to vector<160x1xi32>
    %38 = vector.broadcast %37 : vector<160x1xi32> to vector<160x64xi32>
    %39 = arith.cmpi eq, %38, %1 : vector<160x64xi32>
    %40 = arith.extui %39 : vector<160x64xi1> to vector<160x64xi32>
    %41 = arith.sitofp %40 : vector<160x64xi32> to vector<160x64xf32>
    %42 = arith.addf %36, %41 : vector<160x64xf32>
    %43 = vector.extract_strided_slice %0 {offsets = [0, 7], sizes = [160, 1], strides = [1, 1]} : vector<160x8xi32> to vector<160x1xi32>
    %44 = vector.broadcast %43 : vector<160x1xi32> to vector<160x64xi32>
    %45 = arith.cmpi eq, %44, %1 : vector<160x64xi32>
    %46 = arith.extui %45 : vector<160x64xi1> to vector<160x64xi32>
    %47 = arith.sitofp %46 : vector<160x64xi32> to vector<160x64xf32>
    %48 = arith.addf %42, %47 : vector<160x64xf32>
    %c0_1 = arith.constant 0 : index
    %c0_2 = arith.constant 0 : index
    %49 = vector.load %arg2[%c0_1, %c0_2] : memref<64x32xf32, #tpu.memory_space<vmem>>, vector<64x32xf32>
    %cst = arith.constant dense<0.000000e+00> : vector<160x32xf32>
    %50 = tpu.matmul %48, %49, %cst {dimension_numbers = #tpu.dot_dimension_numbers<[1], [0], [0], [1], [0, 0, 1, 1], [], []>} : vector<160x64xf32>, vector<64x32xf32>, vector<160x32xf32> -> vector<160x32xf32>
    %cst_3 = arith.constant 1.250000e-01 : f32
    %51 = vector.broadcast %cst_3 : f32 to vector<160x32xf32>
    %52 = arith.mulf %50, %51 : vector<160x32xf32>
    %c0_4 = arith.constant 0 : index
    %c0_5 = arith.constant 0 : index
    %c0_6 = arith.constant 0 : index
    %53 = vector.load %arg3[%c0_4, %c0_5, %c0_6] : memref<2x32x96xf32, #tpu.memory_space<vmem>>, vector<1x32x96xf32>
    %54 = vector.shape_cast %53 : vector<1x32x96xf32> to vector<32x96xf32>
    %cst_7 = arith.constant dense<0.000000e+00> : vector<160x96xf32>
    %55 = tpu.matmul %52, %54, %cst_7 {dimension_numbers = #tpu.dot_dimension_numbers<[1], [0], [0], [1], [0, 0, 1, 1], [], []>} : vector<160x32xf32>, vector<32x96xf32>, vector<160x96xf32> -> vector<160x96xf32>
    %c0_8 = arith.constant 0 : index
    %c0_9 = arith.constant 0 : index
    %c0_10 = arith.constant 0 : index
    %56 = vector.load %arg4[%c0_8, %c0_9, %c0_10] : memref<2x1x96xf32, #tpu.memory_space<vmem>>, vector<1x1x96xf32>
    %57 = vector.shape_cast %56 : vector<1x1x96xf32> to vector<1x96xf32>
    %58 = vector.broadcast %57 : vector<1x96xf32> to vector<160x96xf32>
    %59 = arith.addf %55, %58 : vector<160x96xf32>
    %60 = vector.extract_strided_slice %52 {offsets = [152, 0], sizes = [8, 32], strides = [1, 1]} : vector<160x32xf32> to vector<8x32xf32>
    %c1 = arith.constant 1 : index
    %c0_11 = arith.constant 0 : index
    %c0_12 = arith.constant 0 : index
    %61 = vector.load %arg3[%c1, %c0_11, %c0_12] : memref<2x32x96xf32, #tpu.memory_space<vmem>>, vector<1x32x96xf32>
    %62 = vector.shape_cast %61 : vector<1x32x96xf32> to vector<32x96xf32>
    %cst_13 = arith.constant dense<0.000000e+00> : vector<8x96xf32>
    %63 = tpu.matmul %60, %62, %cst_13 {dimension_numbers = #tpu.dot_dimension_numbers<[1], [0], [0], [1], [0, 0, 1, 1], [], []>} : vector<8x32xf32>, vector<32x96xf32>, vector<8x96xf32> -> vector<8x96xf32>
    %c1_14 = arith.constant 1 : index
    %c0_15 = arith.constant 0 : index
    %c0_16 = arith.constant 0 : index
    %64 = vector.load %arg4[%c1_14, %c0_15, %c0_16] : memref<2x1x96xf32, #tpu.memory_space<vmem>>, vector<1x1x96xf32>
    %65 = vector.shape_cast %64 : vector<1x1x96xf32> to vector<1x96xf32>
    %66 = vector.broadcast %65 : vector<1x96xf32> to vector<8x96xf32>
    %67 = arith.addf %63, %66 : vector<8x96xf32>
    %c0_17 = arith.constant 0 : index
    %c0_18 = arith.constant 0 : index
    %68 = vector.load %arg5[%c0_17, %c0_18] : memref<32x96xf32, #tpu.memory_space<vmem>>, vector<32x96xf32>
    %c0_19 = arith.constant 0 : index
    %c0_20 = arith.constant 0 : index
    %c0_21 = arith.constant 0 : index
    %69 = vector.load %arg6[%c0_19, %c0_20, %c0_21] : memref<2x1x32xf32, #tpu.memory_space<vmem>>, vector<1x1x32xf32>
    %70 = vector.shape_cast %69 : vector<1x1x32xf32> to vector<1x32xf32>
    %71 = vector.extract_strided_slice %59 {offsets = [0, 0], sizes = [8, 96], strides = [1, 1]} : vector<160x96xf32> to vector<8x96xf32>
    %72 = vector.extract_strided_slice %71 {offsets = [0, 0], sizes = [8, 64], strides = [1, 1]} : vector<8x96xf32> to vector<8x64xf32>
    %cst_22 = arith.constant 5.000000e-01 : f32
    %73 = vector.broadcast %cst_22 : f32 to vector<8x64xf32>
    %74 = arith.mulf %73, %72 : vector<8x64xf32>
    %75 = math.tanh %74 : vector<8x64xf32>
    %cst_23 = arith.constant 1.000000e+00 : f32
    %76 = vector.broadcast %cst_23 : f32 to vector<8x64xf32>
    %77 = arith.addf %76, %75 : vector<8x64xf32>
    %cst_24 = arith.constant 5.000000e-01 : f32
    %78 = vector.broadcast %cst_24 : f32 to vector<8x64xf32>
    %79 = arith.mulf %78, %77 : vector<8x64xf32>
    %80 = vector.extract_strided_slice %71 {offsets = [0, 64], sizes = [8, 32], strides = [1, 1]} : vector<8x96xf32> to vector<8x32xf32>
    %81 = vector.extract_strided_slice %79 {offsets = [0, 0], sizes = [8, 32], strides = [1, 1]} : vector<8x64xf32> to vector<8x32xf32>
    %82 = vector.broadcast %70 : vector<1x32xf32> to vector<8x32xf32>
    %83 = arith.mulf %81, %82 : vector<8x32xf32>
    %84 = arith.addf %80, %83 : vector<8x32xf32>
    %85 = math.tanh %84 : vector<8x32xf32>
    %86 = vector.extract_strided_slice %79 {offsets = [0, 32], sizes = [8, 32], strides = [1, 1]} : vector<8x64xf32> to vector<8x32xf32>
    %cst_25 = arith.constant 1.000000e+00 : f32
    %87 = vector.broadcast %cst_25 : f32 to vector<8x32xf32>
    %88 = arith.subf %87, %86 : vector<8x32xf32>
    %89 = arith.mulf %88, %85 : vector<8x32xf32>
    %90 = vector.extract_strided_slice %59 {offsets = [8, 0], sizes = [8, 96], strides = [1, 1]} : vector<160x96xf32> to vector<8x96xf32>
    %cst_26 = arith.constant dense<0.000000e+00> : vector<8x96xf32>
    %91 = tpu.matmul %89, %68, %cst_26 {dimension_numbers = #tpu.dot_dimension_numbers<[1], [0], [0], [1], [0, 0, 1, 1], [], []>} : vector<8x32xf32>, vector<32x96xf32>, vector<8x96xf32> -> vector<8x96xf32>
    %92 = vector.extract_strided_slice %90 {offsets = [0, 0], sizes = [8, 64], strides = [1, 1]} : vector<8x96xf32> to vector<8x64xf32>
    %93 = vector.extract_strided_slice %91 {offsets = [0, 0], sizes = [8, 64], strides = [1, 1]} : vector<8x96xf32> to vector<8x64xf32>
    %94 = arith.addf %92, %93 : vector<8x64xf32>
    %cst_27 = arith.constant 5.000000e-01 : f32
    %95 = vector.broadcast %cst_27 : f32 to vector<8x64xf32>
    %96 = arith.mulf %95, %94 : vector<8x64xf32>
    %97 = math.tanh %96 : vector<8x64xf32>
    %cst_28 = arith.constant 1.000000e+00 : f32
    %98 = vector.broadcast %cst_28 : f32 to vector<8x64xf32>
    %99 = arith.addf %98, %97 : vector<8x64xf32>
    %cst_29 = arith.constant 5.000000e-01 : f32
    %100 = vector.broadcast %cst_29 : f32 to vector<8x64xf32>
    %101 = arith.mulf %100, %99 : vector<8x64xf32>
    %102 = vector.extract_strided_slice %101 {offsets = [0, 0], sizes = [8, 32], strides = [1, 1]} : vector<8x64xf32> to vector<8x32xf32>
    %103 = vector.extract_strided_slice %101 {offsets = [0, 32], sizes = [8, 32], strides = [1, 1]} : vector<8x64xf32> to vector<8x32xf32>
    %104 = vector.extract_strided_slice %90 {offsets = [0, 64], sizes = [8, 32], strides = [1, 1]} : vector<8x96xf32> to vector<8x32xf32>
    %105 = vector.extract_strided_slice %91 {offsets = [0, 64], sizes = [8, 32], strides = [1, 1]} : vector<8x96xf32> to vector<8x32xf32>
    %106 = vector.broadcast %70 : vector<1x32xf32> to vector<8x32xf32>
    %107 = arith.addf %105, %106 : vector<8x32xf32>
    %108 = arith.mulf %102, %107 : vector<8x32xf32>
    %109 = arith.addf %104, %108 : vector<8x32xf32>
    %110 = math.tanh %109 : vector<8x32xf32>
    %cst_30 = arith.constant 1.000000e+00 : f32
    %111 = vector.broadcast %cst_30 : f32 to vector<8x32xf32>
    %112 = arith.subf %111, %103 : vector<8x32xf32>
    %113 = arith.mulf %112, %110 : vector<8x32xf32>
    %114 = arith.mulf %103, %89 : vector<8x32xf32>
    %115 = arith.addf %113, %114 : vector<8x32xf32>
    %116 = vector.extract_strided_slice %59 {offsets = [16, 0], sizes = [8, 96], strides = [1, 1]} : vector<160x96xf32> to vector<8x96xf32>
    %cst_31 = arith.constant dense<0.000000e+00> : vector<8x96xf32>
    %117 = tpu.matmul %115, %68, %cst_31 {dimension_numbers = #tpu.dot_dimension_numbers<[1], [0], [0], [1], [0, 0, 1, 1], [], []>} : vector<8x32xf32>, vector<32x96xf32>, vector<8x96xf32> -> vector<8x96xf32>
    %118 = vector.extract_strided_slice %116 {offsets = [0, 0], sizes = [8, 64], strides = [1, 1]} : vector<8x96xf32> to vector<8x64xf32>
    %119 = vector.extract_strided_slice %117 {offsets = [0, 0], sizes = [8, 64], strides = [1, 1]} : vector<8x96xf32> to vector<8x64xf32>
    %120 = arith.addf %118, %119 : vector<8x64xf32>
    %cst_32 = arith.constant 5.000000e-01 : f32
    %121 = vector.broadcast %cst_32 : f32 to vector<8x64xf32>
    %122 = arith.mulf %121, %120 : vector<8x64xf32>
    %123 = math.tanh %122 : vector<8x64xf32>
    %cst_33 = arith.constant 1.000000e+00 : f32
    %124 = vector.broadcast %cst_33 : f32 to vector<8x64xf32>
    %125 = arith.addf %124, %123 : vector<8x64xf32>
    %cst_34 = arith.constant 5.000000e-01 : f32
    %126 = vector.broadcast %cst_34 : f32 to vector<8x64xf32>
    %127 = arith.mulf %126, %125 : vector<8x64xf32>
    %128 = vector.extract_strided_slice %127 {offsets = [0, 0], sizes = [8, 32], strides = [1, 1]} : vector<8x64xf32> to vector<8x32xf32>
    %129 = vector.extract_strided_slice %127 {offsets = [0, 32], sizes = [8, 32], strides = [1, 1]} : vector<8x64xf32> to vector<8x32xf32>
    %130 = vector.extract_strided_slice %116 {offsets = [0, 64], sizes = [8, 32], strides = [1, 1]} : vector<8x96xf32> to vector<8x32xf32>
    %131 = vector.extract_strided_slice %117 {offsets = [0, 64], sizes = [8, 32], strides = [1, 1]} : vector<8x96xf32> to vector<8x32xf32>
    %132 = vector.broadcast %70 : vector<1x32xf32> to vector<8x32xf32>
    %133 = arith.addf %131, %132 : vector<8x32xf32>
    %134 = arith.mulf %128, %133 : vector<8x32xf32>
    %135 = arith.addf %130, %134 : vector<8x32xf32>
    %136 = math.tanh %135 : vector<8x32xf32>
    %cst_35 = arith.constant 1.000000e+00 : f32
    %137 = vector.broadcast %cst_35 : f32 to vector<8x32xf32>
    %138 = arith.subf %137, %129 : vector<8x32xf32>
    %139 = arith.mulf %138, %136 : vector<8x32xf32>
    %140 = arith.mulf %129, %115 : vector<8x32xf32>
    %141 = arith.addf %139, %140 : vector<8x32xf32>
    %142 = vector.extract_strided_slice %59 {offsets = [24, 0], sizes = [8, 96], strides = [1, 1]} : vector<160x96xf32> to vector<8x96xf32>
    %cst_36 = arith.constant dense<0.000000e+00> : vector<8x96xf32>
    %143 = tpu.matmul %141, %68, %cst_36 {dimension_numbers = #tpu.dot_dimension_numbers<[1], [0], [0], [1], [0, 0, 1, 1], [], []>} : vector<8x32xf32>, vector<32x96xf32>, vector<8x96xf32> -> vector<8x96xf32>
    %144 = vector.extract_strided_slice %142 {offsets = [0, 0], sizes = [8, 64], strides = [1, 1]} : vector<8x96xf32> to vector<8x64xf32>
    %145 = vector.extract_strided_slice %143 {offsets = [0, 0], sizes = [8, 64], strides = [1, 1]} : vector<8x96xf32> to vector<8x64xf32>
    %146 = arith.addf %144, %145 : vector<8x64xf32>
    %cst_37 = arith.constant 5.000000e-01 : f32
    %147 = vector.broadcast %cst_37 : f32 to vector<8x64xf32>
    %148 = arith.mulf %147, %146 : vector<8x64xf32>
    %149 = math.tanh %148 : vector<8x64xf32>
    %cst_38 = arith.constant 1.000000e+00 : f32
    %150 = vector.broadcast %cst_38 : f32 to vector<8x64xf32>
    %151 = arith.addf %150, %149 : vector<8x64xf32>
    %cst_39 = arith.constant 5.000000e-01 : f32
    %152 = vector.broadcast %cst_39 : f32 to vector<8x64xf32>
    %153 = arith.mulf %152, %151 : vector<8x64xf32>
    %154 = vector.extract_strided_slice %153 {offsets = [0, 0], sizes = [8, 32], strides = [1, 1]} : vector<8x64xf32> to vector<8x32xf32>
    %155 = vector.extract_strided_slice %153 {offsets = [0, 32], sizes = [8, 32], strides = [1, 1]} : vector<8x64xf32> to vector<8x32xf32>
    %156 = vector.extract_strided_slice %142 {offsets = [0, 64], sizes = [8, 32], strides = [1, 1]} : vector<8x96xf32> to vector<8x32xf32>
    %157 = vector.extract_strided_slice %143 {offsets = [0, 64], sizes = [8, 32], strides = [1, 1]} : vector<8x96xf32> to vector<8x32xf32>
    %158 = vector.broadcast %70 : vector<1x32xf32> to vector<8x32xf32>
    %159 = arith.addf %157, %158 : vector<8x32xf32>
    %160 = arith.mulf %154, %159 : vector<8x32xf32>
    %161 = arith.addf %156, %160 : vector<8x32xf32>
    %162 = math.tanh %161 : vector<8x32xf32>
    %cst_40 = arith.constant 1.000000e+00 : f32
    %163 = vector.broadcast %cst_40 : f32 to vector<8x32xf32>
    %164 = arith.subf %163, %155 : vector<8x32xf32>
    %165 = arith.mulf %164, %162 : vector<8x32xf32>
    %166 = arith.mulf %155, %141 : vector<8x32xf32>
    %167 = arith.addf %165, %166 : vector<8x32xf32>
    %168 = vector.extract_strided_slice %59 {offsets = [32, 0], sizes = [8, 96], strides = [1, 1]} : vector<160x96xf32> to vector<8x96xf32>
    %cst_41 = arith.constant dense<0.000000e+00> : vector<8x96xf32>
    %169 = tpu.matmul %167, %68, %cst_41 {dimension_numbers = #tpu.dot_dimension_numbers<[1], [0], [0], [1], [0, 0, 1, 1], [], []>} : vector<8x32xf32>, vector<32x96xf32>, vector<8x96xf32> -> vector<8x96xf32>
    %170 = vector.extract_strided_slice %168 {offsets = [0, 0], sizes = [8, 64], strides = [1, 1]} : vector<8x96xf32> to vector<8x64xf32>
    %171 = vector.extract_strided_slice %169 {offsets = [0, 0], sizes = [8, 64], strides = [1, 1]} : vector<8x96xf32> to vector<8x64xf32>
    %172 = arith.addf %170, %171 : vector<8x64xf32>
    %cst_42 = arith.constant 5.000000e-01 : f32
    %173 = vector.broadcast %cst_42 : f32 to vector<8x64xf32>
    %174 = arith.mulf %173, %172 : vector<8x64xf32>
    %175 = math.tanh %174 : vector<8x64xf32>
    %cst_43 = arith.constant 1.000000e+00 : f32
    %176 = vector.broadcast %cst_43 : f32 to vector<8x64xf32>
    %177 = arith.addf %176, %175 : vector<8x64xf32>
    %cst_44 = arith.constant 5.000000e-01 : f32
    %178 = vector.broadcast %cst_44 : f32 to vector<8x64xf32>
    %179 = arith.mulf %178, %177 : vector<8x64xf32>
    %180 = vector.extract_strided_slice %179 {offsets = [0, 0], sizes = [8, 32], strides = [1, 1]} : vector<8x64xf32> to vector<8x32xf32>
    %181 = vector.extract_strided_slice %179 {offsets = [0, 32], sizes = [8, 32], strides = [1, 1]} : vector<8x64xf32> to vector<8x32xf32>
    %182 = vector.extract_strided_slice %168 {offsets = [0, 64], sizes = [8, 32], strides = [1, 1]} : vector<8x96xf32> to vector<8x32xf32>
    %183 = vector.extract_strided_slice %169 {offsets = [0, 64], sizes = [8, 32], strides = [1, 1]} : vector<8x96xf32> to vector<8x32xf32>
    %184 = vector.broadcast %70 : vector<1x32xf32> to vector<8x32xf32>
    %185 = arith.addf %183, %184 : vector<8x32xf32>
    %186 = arith.mulf %180, %185 : vector<8x32xf32>
    %187 = arith.addf %182, %186 : vector<8x32xf32>
    %188 = math.tanh %187 : vector<8x32xf32>
    %cst_45 = arith.constant 1.000000e+00 : f32
    %189 = vector.broadcast %cst_45 : f32 to vector<8x32xf32>
    %190 = arith.subf %189, %181 : vector<8x32xf32>
    %191 = arith.mulf %190, %188 : vector<8x32xf32>
    %192 = arith.mulf %181, %167 : vector<8x32xf32>
    %193 = arith.addf %191, %192 : vector<8x32xf32>
    %194 = vector.extract_strided_slice %59 {offsets = [40, 0], sizes = [8, 96], strides = [1, 1]} : vector<160x96xf32> to vector<8x96xf32>
    %cst_46 = arith.constant dense<0.000000e+00> : vector<8x96xf32>
    %195 = tpu.matmul %193, %68, %cst_46 {dimension_numbers = #tpu.dot_dimension_numbers<[1], [0], [0], [1], [0, 0, 1, 1], [], []>} : vector<8x32xf32>, vector<32x96xf32>, vector<8x96xf32> -> vector<8x96xf32>
    %196 = vector.extract_strided_slice %194 {offsets = [0, 0], sizes = [8, 64], strides = [1, 1]} : vector<8x96xf32> to vector<8x64xf32>
    %197 = vector.extract_strided_slice %195 {offsets = [0, 0], sizes = [8, 64], strides = [1, 1]} : vector<8x96xf32> to vector<8x64xf32>
    %198 = arith.addf %196, %197 : vector<8x64xf32>
    %cst_47 = arith.constant 5.000000e-01 : f32
    %199 = vector.broadcast %cst_47 : f32 to vector<8x64xf32>
    %200 = arith.mulf %199, %198 : vector<8x64xf32>
    %201 = math.tanh %200 : vector<8x64xf32>
    %cst_48 = arith.constant 1.000000e+00 : f32
    %202 = vector.broadcast %cst_48 : f32 to vector<8x64xf32>
    %203 = arith.addf %202, %201 : vector<8x64xf32>
    %cst_49 = arith.constant 5.000000e-01 : f32
    %204 = vector.broadcast %cst_49 : f32 to vector<8x64xf32>
    %205 = arith.mulf %204, %203 : vector<8x64xf32>
    %206 = vector.extract_strided_slice %205 {offsets = [0, 0], sizes = [8, 32], strides = [1, 1]} : vector<8x64xf32> to vector<8x32xf32>
    %207 = vector.extract_strided_slice %205 {offsets = [0, 32], sizes = [8, 32], strides = [1, 1]} : vector<8x64xf32> to vector<8x32xf32>
    %208 = vector.extract_strided_slice %194 {offsets = [0, 64], sizes = [8, 32], strides = [1, 1]} : vector<8x96xf32> to vector<8x32xf32>
    %209 = vector.extract_strided_slice %195 {offsets = [0, 64], sizes = [8, 32], strides = [1, 1]} : vector<8x96xf32> to vector<8x32xf32>
    %210 = vector.broadcast %70 : vector<1x32xf32> to vector<8x32xf32>
    %211 = arith.addf %209, %210 : vector<8x32xf32>
    %212 = arith.mulf %206, %211 : vector<8x32xf32>
    %213 = arith.addf %208, %212 : vector<8x32xf32>
    %214 = math.tanh %213 : vector<8x32xf32>
    %cst_50 = arith.constant 1.000000e+00 : f32
    %215 = vector.broadcast %cst_50 : f32 to vector<8x32xf32>
    %216 = arith.subf %215, %207 : vector<8x32xf32>
    %217 = arith.mulf %216, %214 : vector<8x32xf32>
    %218 = arith.mulf %207, %193 : vector<8x32xf32>
    %219 = arith.addf %217, %218 : vector<8x32xf32>
    %220 = vector.extract_strided_slice %59 {offsets = [48, 0], sizes = [8, 96], strides = [1, 1]} : vector<160x96xf32> to vector<8x96xf32>
    %cst_51 = arith.constant dense<0.000000e+00> : vector<8x96xf32>
    %221 = tpu.matmul %219, %68, %cst_51 {dimension_numbers = #tpu.dot_dimension_numbers<[1], [0], [0], [1], [0, 0, 1, 1], [], []>} : vector<8x32xf32>, vector<32x96xf32>, vector<8x96xf32> -> vector<8x96xf32>
    %222 = vector.extract_strided_slice %220 {offsets = [0, 0], sizes = [8, 64], strides = [1, 1]} : vector<8x96xf32> to vector<8x64xf32>
    %223 = vector.extract_strided_slice %221 {offsets = [0, 0], sizes = [8, 64], strides = [1, 1]} : vector<8x96xf32> to vector<8x64xf32>
    %224 = arith.addf %222, %223 : vector<8x64xf32>
    %cst_52 = arith.constant 5.000000e-01 : f32
    %225 = vector.broadcast %cst_52 : f32 to vector<8x64xf32>
    %226 = arith.mulf %225, %224 : vector<8x64xf32>
    %227 = math.tanh %226 : vector<8x64xf32>
    %cst_53 = arith.constant 1.000000e+00 : f32
    %228 = vector.broadcast %cst_53 : f32 to vector<8x64xf32>
    %229 = arith.addf %228, %227 : vector<8x64xf32>
    %cst_54 = arith.constant 5.000000e-01 : f32
    %230 = vector.broadcast %cst_54 : f32 to vector<8x64xf32>
    %231 = arith.mulf %230, %229 : vector<8x64xf32>
    %232 = vector.extract_strided_slice %231 {offsets = [0, 0], sizes = [8, 32], strides = [1, 1]} : vector<8x64xf32> to vector<8x32xf32>
    %233 = vector.extract_strided_slice %231 {offsets = [0, 32], sizes = [8, 32], strides = [1, 1]} : vector<8x64xf32> to vector<8x32xf32>
    %234 = vector.extract_strided_slice %220 {offsets = [0, 64], sizes = [8, 32], strides = [1, 1]} : vector<8x96xf32> to vector<8x32xf32>
    %235 = vector.extract_strided_slice %221 {offsets = [0, 64], sizes = [8, 32], strides = [1, 1]} : vector<8x96xf32> to vector<8x32xf32>
    %236 = vector.broadcast %70 : vector<1x32xf32> to vector<8x32xf32>
    %237 = arith.addf %235, %236 : vector<8x32xf32>
    %238 = arith.mulf %232, %237 : vector<8x32xf32>
    %239 = arith.addf %234, %238 : vector<8x32xf32>
    %240 = math.tanh %239 : vector<8x32xf32>
    %cst_55 = arith.constant 1.000000e+00 : f32
    %241 = vector.broadcast %cst_55 : f32 to vector<8x32xf32>
    %242 = arith.subf %241, %233 : vector<8x32xf32>
    %243 = arith.mulf %242, %240 : vector<8x32xf32>
    %244 = arith.mulf %233, %219 : vector<8x32xf32>
    %245 = arith.addf %243, %244 : vector<8x32xf32>
    %246 = vector.extract_strided_slice %59 {offsets = [56, 0], sizes = [8, 96], strides = [1, 1]} : vector<160x96xf32> to vector<8x96xf32>
    %cst_56 = arith.constant dense<0.000000e+00> : vector<8x96xf32>
    %247 = tpu.matmul %245, %68, %cst_56 {dimension_numbers = #tpu.dot_dimension_numbers<[1], [0], [0], [1], [0, 0, 1, 1], [], []>} : vector<8x32xf32>, vector<32x96xf32>, vector<8x96xf32> -> vector<8x96xf32>
    %248 = vector.extract_strided_slice %246 {offsets = [0, 0], sizes = [8, 64], strides = [1, 1]} : vector<8x96xf32> to vector<8x64xf32>
    %249 = vector.extract_strided_slice %247 {offsets = [0, 0], sizes = [8, 64], strides = [1, 1]} : vector<8x96xf32> to vector<8x64xf32>
    %250 = arith.addf %248, %249 : vector<8x64xf32>
    %cst_57 = arith.constant 5.000000e-01 : f32
    %251 = vector.broadcast %cst_57 : f32 to vector<8x64xf32>
    %252 = arith.mulf %251, %250 : vector<8x64xf32>
    %253 = math.tanh %252 : vector<8x64xf32>
    %cst_58 = arith.constant 1.000000e+00 : f32
    %254 = vector.broadcast %cst_58 : f32 to vector<8x64xf32>
    %255 = arith.addf %254, %253 : vector<8x64xf32>
    %cst_59 = arith.constant 5.000000e-01 : f32
    %256 = vector.broadcast %cst_59 : f32 to vector<8x64xf32>
    %257 = arith.mulf %256, %255 : vector<8x64xf32>
    %258 = vector.extract_strided_slice %257 {offsets = [0, 0], sizes = [8, 32], strides = [1, 1]} : vector<8x64xf32> to vector<8x32xf32>
    %259 = vector.extract_strided_slice %257 {offsets = [0, 32], sizes = [8, 32], strides = [1, 1]} : vector<8x64xf32> to vector<8x32xf32>
    %260 = vector.extract_strided_slice %246 {offsets = [0, 64], sizes = [8, 32], strides = [1, 1]} : vector<8x96xf32> to vector<8x32xf32>
    %261 = vector.extract_strided_slice %247 {offsets = [0, 64], sizes = [8, 32], strides = [1, 1]} : vector<8x96xf32> to vector<8x32xf32>
    %262 = vector.broadcast %70 : vector<1x32xf32> to vector<8x32xf32>
    %263 = arith.addf %261, %262 : vector<8x32xf32>
    %264 = arith.mulf %258, %263 : vector<8x32xf32>
    %265 = arith.addf %260, %264 : vector<8x32xf32>
    %266 = math.tanh %265 : vector<8x32xf32>
    %cst_60 = arith.constant 1.000000e+00 : f32
    %267 = vector.broadcast %cst_60 : f32 to vector<8x32xf32>
    %268 = arith.subf %267, %259 : vector<8x32xf32>
    %269 = arith.mulf %268, %266 : vector<8x32xf32>
    %270 = arith.mulf %259, %245 : vector<8x32xf32>
    %271 = arith.addf %269, %270 : vector<8x32xf32>
    %272 = vector.extract_strided_slice %59 {offsets = [64, 0], sizes = [8, 96], strides = [1, 1]} : vector<160x96xf32> to vector<8x96xf32>
    %cst_61 = arith.constant dense<0.000000e+00> : vector<8x96xf32>
    %273 = tpu.matmul %271, %68, %cst_61 {dimension_numbers = #tpu.dot_dimension_numbers<[1], [0], [0], [1], [0, 0, 1, 1], [], []>} : vector<8x32xf32>, vector<32x96xf32>, vector<8x96xf32> -> vector<8x96xf32>
    %274 = vector.extract_strided_slice %272 {offsets = [0, 0], sizes = [8, 64], strides = [1, 1]} : vector<8x96xf32> to vector<8x64xf32>
    %275 = vector.extract_strided_slice %273 {offsets = [0, 0], sizes = [8, 64], strides = [1, 1]} : vector<8x96xf32> to vector<8x64xf32>
    %276 = arith.addf %274, %275 : vector<8x64xf32>
    %cst_62 = arith.constant 5.000000e-01 : f32
    %277 = vector.broadcast %cst_62 : f32 to vector<8x64xf32>
    %278 = arith.mulf %277, %276 : vector<8x64xf32>
    %279 = math.tanh %278 : vector<8x64xf32>
    %cst_63 = arith.constant 1.000000e+00 : f32
    %280 = vector.broadcast %cst_63 : f32 to vector<8x64xf32>
    %281 = arith.addf %280, %279 : vector<8x64xf32>
    %cst_64 = arith.constant 5.000000e-01 : f32
    %282 = vector.broadcast %cst_64 : f32 to vector<8x64xf32>
    %283 = arith.mulf %282, %281 : vector<8x64xf32>
    %284 = vector.extract_strided_slice %283 {offsets = [0, 0], sizes = [8, 32], strides = [1, 1]} : vector<8x64xf32> to vector<8x32xf32>
    %285 = vector.extract_strided_slice %283 {offsets = [0, 32], sizes = [8, 32], strides = [1, 1]} : vector<8x64xf32> to vector<8x32xf32>
    %286 = vector.extract_strided_slice %272 {offsets = [0, 64], sizes = [8, 32], strides = [1, 1]} : vector<8x96xf32> to vector<8x32xf32>
    %287 = vector.extract_strided_slice %273 {offsets = [0, 64], sizes = [8, 32], strides = [1, 1]} : vector<8x96xf32> to vector<8x32xf32>
    %288 = vector.broadcast %70 : vector<1x32xf32> to vector<8x32xf32>
    %289 = arith.addf %287, %288 : vector<8x32xf32>
    %290 = arith.mulf %284, %289 : vector<8x32xf32>
    %291 = arith.addf %286, %290 : vector<8x32xf32>
    %292 = math.tanh %291 : vector<8x32xf32>
    %cst_65 = arith.constant 1.000000e+00 : f32
    %293 = vector.broadcast %cst_65 : f32 to vector<8x32xf32>
    %294 = arith.subf %293, %285 : vector<8x32xf32>
    %295 = arith.mulf %294, %292 : vector<8x32xf32>
    %296 = arith.mulf %285, %271 : vector<8x32xf32>
    %297 = arith.addf %295, %296 : vector<8x32xf32>
    %298 = vector.extract_strided_slice %59 {offsets = [72, 0], sizes = [8, 96], strides = [1, 1]} : vector<160x96xf32> to vector<8x96xf32>
    %cst_66 = arith.constant dense<0.000000e+00> : vector<8x96xf32>
    %299 = tpu.matmul %297, %68, %cst_66 {dimension_numbers = #tpu.dot_dimension_numbers<[1], [0], [0], [1], [0, 0, 1, 1], [], []>} : vector<8x32xf32>, vector<32x96xf32>, vector<8x96xf32> -> vector<8x96xf32>
    %300 = vector.extract_strided_slice %298 {offsets = [0, 0], sizes = [8, 64], strides = [1, 1]} : vector<8x96xf32> to vector<8x64xf32>
    %301 = vector.extract_strided_slice %299 {offsets = [0, 0], sizes = [8, 64], strides = [1, 1]} : vector<8x96xf32> to vector<8x64xf32>
    %302 = arith.addf %300, %301 : vector<8x64xf32>
    %cst_67 = arith.constant 5.000000e-01 : f32
    %303 = vector.broadcast %cst_67 : f32 to vector<8x64xf32>
    %304 = arith.mulf %303, %302 : vector<8x64xf32>
    %305 = math.tanh %304 : vector<8x64xf32>
    %cst_68 = arith.constant 1.000000e+00 : f32
    %306 = vector.broadcast %cst_68 : f32 to vector<8x64xf32>
    %307 = arith.addf %306, %305 : vector<8x64xf32>
    %cst_69 = arith.constant 5.000000e-01 : f32
    %308 = vector.broadcast %cst_69 : f32 to vector<8x64xf32>
    %309 = arith.mulf %308, %307 : vector<8x64xf32>
    %310 = vector.extract_strided_slice %309 {offsets = [0, 0], sizes = [8, 32], strides = [1, 1]} : vector<8x64xf32> to vector<8x32xf32>
    %311 = vector.extract_strided_slice %309 {offsets = [0, 32], sizes = [8, 32], strides = [1, 1]} : vector<8x64xf32> to vector<8x32xf32>
    %312 = vector.extract_strided_slice %298 {offsets = [0, 64], sizes = [8, 32], strides = [1, 1]} : vector<8x96xf32> to vector<8x32xf32>
    %313 = vector.extract_strided_slice %299 {offsets = [0, 64], sizes = [8, 32], strides = [1, 1]} : vector<8x96xf32> to vector<8x32xf32>
    %314 = vector.broadcast %70 : vector<1x32xf32> to vector<8x32xf32>
    %315 = arith.addf %313, %314 : vector<8x32xf32>
    %316 = arith.mulf %310, %315 : vector<8x32xf32>
    %317 = arith.addf %312, %316 : vector<8x32xf32>
    %318 = math.tanh %317 : vector<8x32xf32>
    %cst_70 = arith.constant 1.000000e+00 : f32
    %319 = vector.broadcast %cst_70 : f32 to vector<8x32xf32>
    %320 = arith.subf %319, %311 : vector<8x32xf32>
    %321 = arith.mulf %320, %318 : vector<8x32xf32>
    %322 = arith.mulf %311, %297 : vector<8x32xf32>
    %323 = arith.addf %321, %322 : vector<8x32xf32>
    %324 = vector.extract_strided_slice %59 {offsets = [80, 0], sizes = [8, 96], strides = [1, 1]} : vector<160x96xf32> to vector<8x96xf32>
    %cst_71 = arith.constant dense<0.000000e+00> : vector<8x96xf32>
    %325 = tpu.matmul %323, %68, %cst_71 {dimension_numbers = #tpu.dot_dimension_numbers<[1], [0], [0], [1], [0, 0, 1, 1], [], []>} : vector<8x32xf32>, vector<32x96xf32>, vector<8x96xf32> -> vector<8x96xf32>
    %326 = vector.extract_strided_slice %324 {offsets = [0, 0], sizes = [8, 64], strides = [1, 1]} : vector<8x96xf32> to vector<8x64xf32>
    %327 = vector.extract_strided_slice %325 {offsets = [0, 0], sizes = [8, 64], strides = [1, 1]} : vector<8x96xf32> to vector<8x64xf32>
    %328 = arith.addf %326, %327 : vector<8x64xf32>
    %cst_72 = arith.constant 5.000000e-01 : f32
    %329 = vector.broadcast %cst_72 : f32 to vector<8x64xf32>
    %330 = arith.mulf %329, %328 : vector<8x64xf32>
    %331 = math.tanh %330 : vector<8x64xf32>
    %cst_73 = arith.constant 1.000000e+00 : f32
    %332 = vector.broadcast %cst_73 : f32 to vector<8x64xf32>
    %333 = arith.addf %332, %331 : vector<8x64xf32>
    %cst_74 = arith.constant 5.000000e-01 : f32
    %334 = vector.broadcast %cst_74 : f32 to vector<8x64xf32>
    %335 = arith.mulf %334, %333 : vector<8x64xf32>
    %336 = vector.extract_strided_slice %335 {offsets = [0, 0], sizes = [8, 32], strides = [1, 1]} : vector<8x64xf32> to vector<8x32xf32>
    %337 = vector.extract_strided_slice %335 {offsets = [0, 32], sizes = [8, 32], strides = [1, 1]} : vector<8x64xf32> to vector<8x32xf32>
    %338 = vector.extract_strided_slice %324 {offsets = [0, 64], sizes = [8, 32], strides = [1, 1]} : vector<8x96xf32> to vector<8x32xf32>
    %339 = vector.extract_strided_slice %325 {offsets = [0, 64], sizes = [8, 32], strides = [1, 1]} : vector<8x96xf32> to vector<8x32xf32>
    %340 = vector.broadcast %70 : vector<1x32xf32> to vector<8x32xf32>
    %341 = arith.addf %339, %340 : vector<8x32xf32>
    %342 = arith.mulf %336, %341 : vector<8x32xf32>
    %343 = arith.addf %338, %342 : vector<8x32xf32>
    %344 = math.tanh %343 : vector<8x32xf32>
    %cst_75 = arith.constant 1.000000e+00 : f32
    %345 = vector.broadcast %cst_75 : f32 to vector<8x32xf32>
    %346 = arith.subf %345, %337 : vector<8x32xf32>
    %347 = arith.mulf %346, %344 : vector<8x32xf32>
    %348 = arith.mulf %337, %323 : vector<8x32xf32>
    %349 = arith.addf %347, %348 : vector<8x32xf32>
    %350 = vector.extract_strided_slice %59 {offsets = [88, 0], sizes = [8, 96], strides = [1, 1]} : vector<160x96xf32> to vector<8x96xf32>
    %cst_76 = arith.constant dense<0.000000e+00> : vector<8x96xf32>
    %351 = tpu.matmul %349, %68, %cst_76 {dimension_numbers = #tpu.dot_dimension_numbers<[1], [0], [0], [1], [0, 0, 1, 1], [], []>} : vector<8x32xf32>, vector<32x96xf32>, vector<8x96xf32> -> vector<8x96xf32>
    %352 = vector.extract_strided_slice %350 {offsets = [0, 0], sizes = [8, 64], strides = [1, 1]} : vector<8x96xf32> to vector<8x64xf32>
    %353 = vector.extract_strided_slice %351 {offsets = [0, 0], sizes = [8, 64], strides = [1, 1]} : vector<8x96xf32> to vector<8x64xf32>
    %354 = arith.addf %352, %353 : vector<8x64xf32>
    %cst_77 = arith.constant 5.000000e-01 : f32
    %355 = vector.broadcast %cst_77 : f32 to vector<8x64xf32>
    %356 = arith.mulf %355, %354 : vector<8x64xf32>
    %357 = math.tanh %356 : vector<8x64xf32>
    %cst_78 = arith.constant 1.000000e+00 : f32
    %358 = vector.broadcast %cst_78 : f32 to vector<8x64xf32>
    %359 = arith.addf %358, %357 : vector<8x64xf32>
    %cst_79 = arith.constant 5.000000e-01 : f32
    %360 = vector.broadcast %cst_79 : f32 to vector<8x64xf32>
    %361 = arith.mulf %360, %359 : vector<8x64xf32>
    %362 = vector.extract_strided_slice %361 {offsets = [0, 0], sizes = [8, 32], strides = [1, 1]} : vector<8x64xf32> to vector<8x32xf32>
    %363 = vector.extract_strided_slice %361 {offsets = [0, 32], sizes = [8, 32], strides = [1, 1]} : vector<8x64xf32> to vector<8x32xf32>
    %364 = vector.extract_strided_slice %350 {offsets = [0, 64], sizes = [8, 32], strides = [1, 1]} : vector<8x96xf32> to vector<8x32xf32>
    %365 = vector.extract_strided_slice %351 {offsets = [0, 64], sizes = [8, 32], strides = [1, 1]} : vector<8x96xf32> to vector<8x32xf32>
    %366 = vector.broadcast %70 : vector<1x32xf32> to vector<8x32xf32>
    %367 = arith.addf %365, %366 : vector<8x32xf32>
    %368 = arith.mulf %362, %367 : vector<8x32xf32>
    %369 = arith.addf %364, %368 : vector<8x32xf32>
    %370 = math.tanh %369 : vector<8x32xf32>
    %cst_80 = arith.constant 1.000000e+00 : f32
    %371 = vector.broadcast %cst_80 : f32 to vector<8x32xf32>
    %372 = arith.subf %371, %363 : vector<8x32xf32>
    %373 = arith.mulf %372, %370 : vector<8x32xf32>
    %374 = arith.mulf %363, %349 : vector<8x32xf32>
    %375 = arith.addf %373, %374 : vector<8x32xf32>
    %376 = vector.extract_strided_slice %59 {offsets = [96, 0], sizes = [8, 96], strides = [1, 1]} : vector<160x96xf32> to vector<8x96xf32>
    %cst_81 = arith.constant dense<0.000000e+00> : vector<8x96xf32>
    %377 = tpu.matmul %375, %68, %cst_81 {dimension_numbers = #tpu.dot_dimension_numbers<[1], [0], [0], [1], [0, 0, 1, 1], [], []>} : vector<8x32xf32>, vector<32x96xf32>, vector<8x96xf32> -> vector<8x96xf32>
    %378 = vector.extract_strided_slice %376 {offsets = [0, 0], sizes = [8, 64], strides = [1, 1]} : vector<8x96xf32> to vector<8x64xf32>
    %379 = vector.extract_strided_slice %377 {offsets = [0, 0], sizes = [8, 64], strides = [1, 1]} : vector<8x96xf32> to vector<8x64xf32>
    %380 = arith.addf %378, %379 : vector<8x64xf32>
    %cst_82 = arith.constant 5.000000e-01 : f32
    %381 = vector.broadcast %cst_82 : f32 to vector<8x64xf32>
    %382 = arith.mulf %381, %380 : vector<8x64xf32>
    %383 = math.tanh %382 : vector<8x64xf32>
    %cst_83 = arith.constant 1.000000e+00 : f32
    %384 = vector.broadcast %cst_83 : f32 to vector<8x64xf32>
    %385 = arith.addf %384, %383 : vector<8x64xf32>
    %cst_84 = arith.constant 5.000000e-01 : f32
    %386 = vector.broadcast %cst_84 : f32 to vector<8x64xf32>
    %387 = arith.mulf %386, %385 : vector<8x64xf32>
    %388 = vector.extract_strided_slice %387 {offsets = [0, 0], sizes = [8, 32], strides = [1, 1]} : vector<8x64xf32> to vector<8x32xf32>
    %389 = vector.extract_strided_slice %387 {offsets = [0, 32], sizes = [8, 32], strides = [1, 1]} : vector<8x64xf32> to vector<8x32xf32>
    %390 = vector.extract_strided_slice %376 {offsets = [0, 64], sizes = [8, 32], strides = [1, 1]} : vector<8x96xf32> to vector<8x32xf32>
    %391 = vector.extract_strided_slice %377 {offsets = [0, 64], sizes = [8, 32], strides = [1, 1]} : vector<8x96xf32> to vector<8x32xf32>
    %392 = vector.broadcast %70 : vector<1x32xf32> to vector<8x32xf32>
    %393 = arith.addf %391, %392 : vector<8x32xf32>
    %394 = arith.mulf %388, %393 : vector<8x32xf32>
    %395 = arith.addf %390, %394 : vector<8x32xf32>
    %396 = math.tanh %395 : vector<8x32xf32>
    %cst_85 = arith.constant 1.000000e+00 : f32
    %397 = vector.broadcast %cst_85 : f32 to vector<8x32xf32>
    %398 = arith.subf %397, %389 : vector<8x32xf32>
    %399 = arith.mulf %398, %396 : vector<8x32xf32>
    %400 = arith.mulf %389, %375 : vector<8x32xf32>
    %401 = arith.addf %399, %400 : vector<8x32xf32>
    %402 = vector.extract_strided_slice %59 {offsets = [104, 0], sizes = [8, 96], strides = [1, 1]} : vector<160x96xf32> to vector<8x96xf32>
    %cst_86 = arith.constant dense<0.000000e+00> : vector<8x96xf32>
    %403 = tpu.matmul %401, %68, %cst_86 {dimension_numbers = #tpu.dot_dimension_numbers<[1], [0], [0], [1], [0, 0, 1, 1], [], []>} : vector<8x32xf32>, vector<32x96xf32>, vector<8x96xf32> -> vector<8x96xf32>
    %404 = vector.extract_strided_slice %402 {offsets = [0, 0], sizes = [8, 64], strides = [1, 1]} : vector<8x96xf32> to vector<8x64xf32>
    %405 = vector.extract_strided_slice %403 {offsets = [0, 0], sizes = [8, 64], strides = [1, 1]} : vector<8x96xf32> to vector<8x64xf32>
    %406 = arith.addf %404, %405 : vector<8x64xf32>
    %cst_87 = arith.constant 5.000000e-01 : f32
    %407 = vector.broadcast %cst_87 : f32 to vector<8x64xf32>
    %408 = arith.mulf %407, %406 : vector<8x64xf32>
    %409 = math.tanh %408 : vector<8x64xf32>
    %cst_88 = arith.constant 1.000000e+00 : f32
    %410 = vector.broadcast %cst_88 : f32 to vector<8x64xf32>
    %411 = arith.addf %410, %409 : vector<8x64xf32>
    %cst_89 = arith.constant 5.000000e-01 : f32
    %412 = vector.broadcast %cst_89 : f32 to vector<8x64xf32>
    %413 = arith.mulf %412, %411 : vector<8x64xf32>
    %414 = vector.extract_strided_slice %413 {offsets = [0, 0], sizes = [8, 32], strides = [1, 1]} : vector<8x64xf32> to vector<8x32xf32>
    %415 = vector.extract_strided_slice %413 {offsets = [0, 32], sizes = [8, 32], strides = [1, 1]} : vector<8x64xf32> to vector<8x32xf32>
    %416 = vector.extract_strided_slice %402 {offsets = [0, 64], sizes = [8, 32], strides = [1, 1]} : vector<8x96xf32> to vector<8x32xf32>
    %417 = vector.extract_strided_slice %403 {offsets = [0, 64], sizes = [8, 32], strides = [1, 1]} : vector<8x96xf32> to vector<8x32xf32>
    %418 = vector.broadcast %70 : vector<1x32xf32> to vector<8x32xf32>
    %419 = arith.addf %417, %418 : vector<8x32xf32>
    %420 = arith.mulf %414, %419 : vector<8x32xf32>
    %421 = arith.addf %416, %420 : vector<8x32xf32>
    %422 = math.tanh %421 : vector<8x32xf32>
    %cst_90 = arith.constant 1.000000e+00 : f32
    %423 = vector.broadcast %cst_90 : f32 to vector<8x32xf32>
    %424 = arith.subf %423, %415 : vector<8x32xf32>
    %425 = arith.mulf %424, %422 : vector<8x32xf32>
    %426 = arith.mulf %415, %401 : vector<8x32xf32>
    %427 = arith.addf %425, %426 : vector<8x32xf32>
    %428 = vector.extract_strided_slice %59 {offsets = [112, 0], sizes = [8, 96], strides = [1, 1]} : vector<160x96xf32> to vector<8x96xf32>
    %cst_91 = arith.constant dense<0.000000e+00> : vector<8x96xf32>
    %429 = tpu.matmul %427, %68, %cst_91 {dimension_numbers = #tpu.dot_dimension_numbers<[1], [0], [0], [1], [0, 0, 1, 1], [], []>} : vector<8x32xf32>, vector<32x96xf32>, vector<8x96xf32> -> vector<8x96xf32>
    %430 = vector.extract_strided_slice %428 {offsets = [0, 0], sizes = [8, 64], strides = [1, 1]} : vector<8x96xf32> to vector<8x64xf32>
    %431 = vector.extract_strided_slice %429 {offsets = [0, 0], sizes = [8, 64], strides = [1, 1]} : vector<8x96xf32> to vector<8x64xf32>
    %432 = arith.addf %430, %431 : vector<8x64xf32>
    %cst_92 = arith.constant 5.000000e-01 : f32
    %433 = vector.broadcast %cst_92 : f32 to vector<8x64xf32>
    %434 = arith.mulf %433, %432 : vector<8x64xf32>
    %435 = math.tanh %434 : vector<8x64xf32>
    %cst_93 = arith.constant 1.000000e+00 : f32
    %436 = vector.broadcast %cst_93 : f32 to vector<8x64xf32>
    %437 = arith.addf %436, %435 : vector<8x64xf32>
    %cst_94 = arith.constant 5.000000e-01 : f32
    %438 = vector.broadcast %cst_94 : f32 to vector<8x64xf32>
    %439 = arith.mulf %438, %437 : vector<8x64xf32>
    %440 = vector.extract_strided_slice %439 {offsets = [0, 0], sizes = [8, 32], strides = [1, 1]} : vector<8x64xf32> to vector<8x32xf32>
    %441 = vector.extract_strided_slice %439 {offsets = [0, 32], sizes = [8, 32], strides = [1, 1]} : vector<8x64xf32> to vector<8x32xf32>
    %442 = vector.extract_strided_slice %428 {offsets = [0, 64], sizes = [8, 32], strides = [1, 1]} : vector<8x96xf32> to vector<8x32xf32>
    %443 = vector.extract_strided_slice %429 {offsets = [0, 64], sizes = [8, 32], strides = [1, 1]} : vector<8x96xf32> to vector<8x32xf32>
    %444 = vector.broadcast %70 : vector<1x32xf32> to vector<8x32xf32>
    %445 = arith.addf %443, %444 : vector<8x32xf32>
    %446 = arith.mulf %440, %445 : vector<8x32xf32>
    %447 = arith.addf %442, %446 : vector<8x32xf32>
    %448 = math.tanh %447 : vector<8x32xf32>
    %cst_95 = arith.constant 1.000000e+00 : f32
    %449 = vector.broadcast %cst_95 : f32 to vector<8x32xf32>
    %450 = arith.subf %449, %441 : vector<8x32xf32>
    %451 = arith.mulf %450, %448 : vector<8x32xf32>
    %452 = arith.mulf %441, %427 : vector<8x32xf32>
    %453 = arith.addf %451, %452 : vector<8x32xf32>
    %454 = vector.extract_strided_slice %59 {offsets = [120, 0], sizes = [8, 96], strides = [1, 1]} : vector<160x96xf32> to vector<8x96xf32>
    %cst_96 = arith.constant dense<0.000000e+00> : vector<8x96xf32>
    %455 = tpu.matmul %453, %68, %cst_96 {dimension_numbers = #tpu.dot_dimension_numbers<[1], [0], [0], [1], [0, 0, 1, 1], [], []>} : vector<8x32xf32>, vector<32x96xf32>, vector<8x96xf32> -> vector<8x96xf32>
    %456 = vector.extract_strided_slice %454 {offsets = [0, 0], sizes = [8, 64], strides = [1, 1]} : vector<8x96xf32> to vector<8x64xf32>
    %457 = vector.extract_strided_slice %455 {offsets = [0, 0], sizes = [8, 64], strides = [1, 1]} : vector<8x96xf32> to vector<8x64xf32>
    %458 = arith.addf %456, %457 : vector<8x64xf32>
    %cst_97 = arith.constant 5.000000e-01 : f32
    %459 = vector.broadcast %cst_97 : f32 to vector<8x64xf32>
    %460 = arith.mulf %459, %458 : vector<8x64xf32>
    %461 = math.tanh %460 : vector<8x64xf32>
    %cst_98 = arith.constant 1.000000e+00 : f32
    %462 = vector.broadcast %cst_98 : f32 to vector<8x64xf32>
    %463 = arith.addf %462, %461 : vector<8x64xf32>
    %cst_99 = arith.constant 5.000000e-01 : f32
    %464 = vector.broadcast %cst_99 : f32 to vector<8x64xf32>
    %465 = arith.mulf %464, %463 : vector<8x64xf32>
    %466 = vector.extract_strided_slice %465 {offsets = [0, 0], sizes = [8, 32], strides = [1, 1]} : vector<8x64xf32> to vector<8x32xf32>
    %467 = vector.extract_strided_slice %465 {offsets = [0, 32], sizes = [8, 32], strides = [1, 1]} : vector<8x64xf32> to vector<8x32xf32>
    %468 = vector.extract_strided_slice %454 {offsets = [0, 64], sizes = [8, 32], strides = [1, 1]} : vector<8x96xf32> to vector<8x32xf32>
    %469 = vector.extract_strided_slice %455 {offsets = [0, 64], sizes = [8, 32], strides = [1, 1]} : vector<8x96xf32> to vector<8x32xf32>
    %470 = vector.broadcast %70 : vector<1x32xf32> to vector<8x32xf32>
    %471 = arith.addf %469, %470 : vector<8x32xf32>
    %472 = arith.mulf %466, %471 : vector<8x32xf32>
    %473 = arith.addf %468, %472 : vector<8x32xf32>
    %474 = math.tanh %473 : vector<8x32xf32>
    %cst_100 = arith.constant 1.000000e+00 : f32
    %475 = vector.broadcast %cst_100 : f32 to vector<8x32xf32>
    %476 = arith.subf %475, %467 : vector<8x32xf32>
    %477 = arith.mulf %476, %474 : vector<8x32xf32>
    %478 = arith.mulf %467, %453 : vector<8x32xf32>
    %479 = arith.addf %477, %478 : vector<8x32xf32>
    %480 = vector.extract_strided_slice %59 {offsets = [128, 0], sizes = [8, 96], strides = [1, 1]} : vector<160x96xf32> to vector<8x96xf32>
    %cst_101 = arith.constant dense<0.000000e+00> : vector<8x96xf32>
    %481 = tpu.matmul %479, %68, %cst_101 {dimension_numbers = #tpu.dot_dimension_numbers<[1], [0], [0], [1], [0, 0, 1, 1], [], []>} : vector<8x32xf32>, vector<32x96xf32>, vector<8x96xf32> -> vector<8x96xf32>
    %482 = vector.extract_strided_slice %480 {offsets = [0, 0], sizes = [8, 64], strides = [1, 1]} : vector<8x96xf32> to vector<8x64xf32>
    %483 = vector.extract_strided_slice %481 {offsets = [0, 0], sizes = [8, 64], strides = [1, 1]} : vector<8x96xf32> to vector<8x64xf32>
    %484 = arith.addf %482, %483 : vector<8x64xf32>
    %cst_102 = arith.constant 5.000000e-01 : f32
    %485 = vector.broadcast %cst_102 : f32 to vector<8x64xf32>
    %486 = arith.mulf %485, %484 : vector<8x64xf32>
    %487 = math.tanh %486 : vector<8x64xf32>
    %cst_103 = arith.constant 1.000000e+00 : f32
    %488 = vector.broadcast %cst_103 : f32 to vector<8x64xf32>
    %489 = arith.addf %488, %487 : vector<8x64xf32>
    %cst_104 = arith.constant 5.000000e-01 : f32
    %490 = vector.broadcast %cst_104 : f32 to vector<8x64xf32>
    %491 = arith.mulf %490, %489 : vector<8x64xf32>
    %492 = vector.extract_strided_slice %491 {offsets = [0, 0], sizes = [8, 32], strides = [1, 1]} : vector<8x64xf32> to vector<8x32xf32>
    %493 = vector.extract_strided_slice %491 {offsets = [0, 32], sizes = [8, 32], strides = [1, 1]} : vector<8x64xf32> to vector<8x32xf32>
    %494 = vector.extract_strided_slice %480 {offsets = [0, 64], sizes = [8, 32], strides = [1, 1]} : vector<8x96xf32> to vector<8x32xf32>
    %495 = vector.extract_strided_slice %481 {offsets = [0, 64], sizes = [8, 32], strides = [1, 1]} : vector<8x96xf32> to vector<8x32xf32>
    %496 = vector.broadcast %70 : vector<1x32xf32> to vector<8x32xf32>
    %497 = arith.addf %495, %496 : vector<8x32xf32>
    %498 = arith.mulf %492, %497 : vector<8x32xf32>
    %499 = arith.addf %494, %498 : vector<8x32xf32>
    %500 = math.tanh %499 : vector<8x32xf32>
    %cst_105 = arith.constant 1.000000e+00 : f32
    %501 = vector.broadcast %cst_105 : f32 to vector<8x32xf32>
    %502 = arith.subf %501, %493 : vector<8x32xf32>
    %503 = arith.mulf %502, %500 : vector<8x32xf32>
    %504 = arith.mulf %493, %479 : vector<8x32xf32>
    %505 = arith.addf %503, %504 : vector<8x32xf32>
    %506 = vector.extract_strided_slice %59 {offsets = [136, 0], sizes = [8, 96], strides = [1, 1]} : vector<160x96xf32> to vector<8x96xf32>
    %cst_106 = arith.constant dense<0.000000e+00> : vector<8x96xf32>
    %507 = tpu.matmul %505, %68, %cst_106 {dimension_numbers = #tpu.dot_dimension_numbers<[1], [0], [0], [1], [0, 0, 1, 1], [], []>} : vector<8x32xf32>, vector<32x96xf32>, vector<8x96xf32> -> vector<8x96xf32>
    %508 = vector.extract_strided_slice %506 {offsets = [0, 0], sizes = [8, 64], strides = [1, 1]} : vector<8x96xf32> to vector<8x64xf32>
    %509 = vector.extract_strided_slice %507 {offsets = [0, 0], sizes = [8, 64], strides = [1, 1]} : vector<8x96xf32> to vector<8x64xf32>
    %510 = arith.addf %508, %509 : vector<8x64xf32>
    %cst_107 = arith.constant 5.000000e-01 : f32
    %511 = vector.broadcast %cst_107 : f32 to vector<8x64xf32>
    %512 = arith.mulf %511, %510 : vector<8x64xf32>
    %513 = math.tanh %512 : vector<8x64xf32>
    %cst_108 = arith.constant 1.000000e+00 : f32
    %514 = vector.broadcast %cst_108 : f32 to vector<8x64xf32>
    %515 = arith.addf %514, %513 : vector<8x64xf32>
    %cst_109 = arith.constant 5.000000e-01 : f32
    %516 = vector.broadcast %cst_109 : f32 to vector<8x64xf32>
    %517 = arith.mulf %516, %515 : vector<8x64xf32>
    %518 = vector.extract_strided_slice %517 {offsets = [0, 0], sizes = [8, 32], strides = [1, 1]} : vector<8x64xf32> to vector<8x32xf32>
    %519 = vector.extract_strided_slice %517 {offsets = [0, 32], sizes = [8, 32], strides = [1, 1]} : vector<8x64xf32> to vector<8x32xf32>
    %520 = vector.extract_strided_slice %506 {offsets = [0, 64], sizes = [8, 32], strides = [1, 1]} : vector<8x96xf32> to vector<8x32xf32>
    %521 = vector.extract_strided_slice %507 {offsets = [0, 64], sizes = [8, 32], strides = [1, 1]} : vector<8x96xf32> to vector<8x32xf32>
    %522 = vector.broadcast %70 : vector<1x32xf32> to vector<8x32xf32>
    %523 = arith.addf %521, %522 : vector<8x32xf32>
    %524 = arith.mulf %518, %523 : vector<8x32xf32>
    %525 = arith.addf %520, %524 : vector<8x32xf32>
    %526 = math.tanh %525 : vector<8x32xf32>
    %cst_110 = arith.constant 1.000000e+00 : f32
    %527 = vector.broadcast %cst_110 : f32 to vector<8x32xf32>
    %528 = arith.subf %527, %519 : vector<8x32xf32>
    %529 = arith.mulf %528, %526 : vector<8x32xf32>
    %530 = arith.mulf %519, %505 : vector<8x32xf32>
    %531 = arith.addf %529, %530 : vector<8x32xf32>
    %532 = vector.extract_strided_slice %59 {offsets = [144, 0], sizes = [8, 96], strides = [1, 1]} : vector<160x96xf32> to vector<8x96xf32>
    %cst_111 = arith.constant dense<0.000000e+00> : vector<8x96xf32>
    %533 = tpu.matmul %531, %68, %cst_111 {dimension_numbers = #tpu.dot_dimension_numbers<[1], [0], [0], [1], [0, 0, 1, 1], [], []>} : vector<8x32xf32>, vector<32x96xf32>, vector<8x96xf32> -> vector<8x96xf32>
    %534 = vector.extract_strided_slice %532 {offsets = [0, 0], sizes = [8, 64], strides = [1, 1]} : vector<8x96xf32> to vector<8x64xf32>
    %535 = vector.extract_strided_slice %533 {offsets = [0, 0], sizes = [8, 64], strides = [1, 1]} : vector<8x96xf32> to vector<8x64xf32>
    %536 = arith.addf %534, %535 : vector<8x64xf32>
    %cst_112 = arith.constant 5.000000e-01 : f32
    %537 = vector.broadcast %cst_112 : f32 to vector<8x64xf32>
    %538 = arith.mulf %537, %536 : vector<8x64xf32>
    %539 = math.tanh %538 : vector<8x64xf32>
    %cst_113 = arith.constant 1.000000e+00 : f32
    %540 = vector.broadcast %cst_113 : f32 to vector<8x64xf32>
    %541 = arith.addf %540, %539 : vector<8x64xf32>
    %cst_114 = arith.constant 5.000000e-01 : f32
    %542 = vector.broadcast %cst_114 : f32 to vector<8x64xf32>
    %543 = arith.mulf %542, %541 : vector<8x64xf32>
    %544 = vector.extract_strided_slice %543 {offsets = [0, 0], sizes = [8, 32], strides = [1, 1]} : vector<8x64xf32> to vector<8x32xf32>
    %545 = vector.extract_strided_slice %543 {offsets = [0, 32], sizes = [8, 32], strides = [1, 1]} : vector<8x64xf32> to vector<8x32xf32>
    %546 = vector.extract_strided_slice %532 {offsets = [0, 64], sizes = [8, 32], strides = [1, 1]} : vector<8x96xf32> to vector<8x32xf32>
    %547 = vector.extract_strided_slice %533 {offsets = [0, 64], sizes = [8, 32], strides = [1, 1]} : vector<8x96xf32> to vector<8x32xf32>
    %548 = vector.broadcast %70 : vector<1x32xf32> to vector<8x32xf32>
    %549 = arith.addf %547, %548 : vector<8x32xf32>
    %550 = arith.mulf %544, %549 : vector<8x32xf32>
    %551 = arith.addf %546, %550 : vector<8x32xf32>
    %552 = math.tanh %551 : vector<8x32xf32>
    %cst_115 = arith.constant 1.000000e+00 : f32
    %553 = vector.broadcast %cst_115 : f32 to vector<8x32xf32>
    %554 = arith.subf %553, %545 : vector<8x32xf32>
    %555 = arith.mulf %554, %552 : vector<8x32xf32>
    %556 = arith.mulf %545, %531 : vector<8x32xf32>
    %557 = arith.addf %555, %556 : vector<8x32xf32>
    %558 = vector.extract_strided_slice %59 {offsets = [152, 0], sizes = [8, 96], strides = [1, 1]} : vector<160x96xf32> to vector<8x96xf32>
    %cst_116 = arith.constant dense<0.000000e+00> : vector<8x96xf32>
    %559 = tpu.matmul %557, %68, %cst_116 {dimension_numbers = #tpu.dot_dimension_numbers<[1], [0], [0], [1], [0, 0, 1, 1], [], []>} : vector<8x32xf32>, vector<32x96xf32>, vector<8x96xf32> -> vector<8x96xf32>
    %560 = vector.extract_strided_slice %558 {offsets = [0, 0], sizes = [8, 64], strides = [1, 1]} : vector<8x96xf32> to vector<8x64xf32>
    %561 = vector.extract_strided_slice %559 {offsets = [0, 0], sizes = [8, 64], strides = [1, 1]} : vector<8x96xf32> to vector<8x64xf32>
    %562 = arith.addf %560, %561 : vector<8x64xf32>
    %cst_117 = arith.constant 5.000000e-01 : f32
    %563 = vector.broadcast %cst_117 : f32 to vector<8x64xf32>
    %564 = arith.mulf %563, %562 : vector<8x64xf32>
    %565 = math.tanh %564 : vector<8x64xf32>
    %cst_118 = arith.constant 1.000000e+00 : f32
    %566 = vector.broadcast %cst_118 : f32 to vector<8x64xf32>
    %567 = arith.addf %566, %565 : vector<8x64xf32>
    %cst_119 = arith.constant 5.000000e-01 : f32
    %568 = vector.broadcast %cst_119 : f32 to vector<8x64xf32>
    %569 = arith.mulf %568, %567 : vector<8x64xf32>
    %570 = vector.extract_strided_slice %569 {offsets = [0, 0], sizes = [8, 32], strides = [1, 1]} : vector<8x64xf32> to vector<8x32xf32>
    %571 = vector.extract_strided_slice %569 {offsets = [0, 32], sizes = [8, 32], strides = [1, 1]} : vector<8x64xf32> to vector<8x32xf32>
    %572 = vector.extract_strided_slice %558 {offsets = [0, 64], sizes = [8, 32], strides = [1, 1]} : vector<8x96xf32> to vector<8x32xf32>
    %573 = vector.extract_strided_slice %559 {offsets = [0, 64], sizes = [8, 32], strides = [1, 1]} : vector<8x96xf32> to vector<8x32xf32>
    %574 = vector.broadcast %70 : vector<1x32xf32> to vector<8x32xf32>
    %575 = arith.addf %573, %574 : vector<8x32xf32>
    %576 = arith.mulf %570, %575 : vector<8x32xf32>
    %577 = arith.addf %572, %576 : vector<8x32xf32>
    %578 = math.tanh %577 : vector<8x32xf32>
    %cst_120 = arith.constant 1.000000e+00 : f32
    %579 = vector.broadcast %cst_120 : f32 to vector<8x32xf32>
    %580 = arith.subf %579, %571 : vector<8x32xf32>
    %581 = arith.mulf %580, %578 : vector<8x32xf32>
    %582 = arith.mulf %571, %557 : vector<8x32xf32>
    %583 = arith.addf %581, %582 : vector<8x32xf32>
    %584 = vector.extract_strided_slice %67 {offsets = [0, 0], sizes = [8, 64], strides = [1, 1]} : vector<8x96xf32> to vector<8x64xf32>
    %cst_121 = arith.constant 5.000000e-01 : f32
    %585 = vector.broadcast %cst_121 : f32 to vector<8x64xf32>
    %586 = arith.mulf %585, %584 : vector<8x64xf32>
    %587 = math.tanh %586 : vector<8x64xf32>
    %cst_122 = arith.constant 1.000000e+00 : f32
    %588 = vector.broadcast %cst_122 : f32 to vector<8x64xf32>
    %589 = arith.addf %588, %587 : vector<8x64xf32>
    %cst_123 = arith.constant 5.000000e-01 : f32
    %590 = vector.broadcast %cst_123 : f32 to vector<8x64xf32>
    %591 = arith.mulf %590, %589 : vector<8x64xf32>
    %592 = vector.extract_strided_slice %67 {offsets = [0, 64], sizes = [8, 32], strides = [1, 1]} : vector<8x96xf32> to vector<8x32xf32>
    %593 = vector.extract_strided_slice %591 {offsets = [0, 0], sizes = [8, 32], strides = [1, 1]} : vector<8x64xf32> to vector<8x32xf32>
    %c1_124 = arith.constant 1 : index
    %c0_125 = arith.constant 0 : index
    %c0_126 = arith.constant 0 : index
    %594 = vector.load %arg6[%c1_124, %c0_125, %c0_126] : memref<2x1x32xf32, #tpu.memory_space<vmem>>, vector<1x1x32xf32>
    %595 = vector.shape_cast %594 : vector<1x1x32xf32> to vector<1x32xf32>
    %596 = vector.broadcast %595 : vector<1x32xf32> to vector<8x32xf32>
    %597 = arith.mulf %593, %596 : vector<8x32xf32>
    %598 = arith.addf %592, %597 : vector<8x32xf32>
    %599 = math.tanh %598 : vector<8x32xf32>
    %600 = vector.extract_strided_slice %591 {offsets = [0, 32], sizes = [8, 32], strides = [1, 1]} : vector<8x64xf32> to vector<8x32xf32>
    %cst_127 = arith.constant 1.000000e+00 : f32
    %601 = vector.broadcast %cst_127 : f32 to vector<8x32xf32>
    %602 = arith.subf %601, %600 : vector<8x32xf32>
    %603 = arith.mulf %602, %599 : vector<8x32xf32>
    %c0_128 = arith.constant 0 : index
    %c0_129 = arith.constant 0 : index
    %c0_130 = arith.constant 0 : index
    %604 = vector.load %arg7[%c0_128, %c0_129, %c0_130] : memref<2x1x32xf32, #tpu.memory_space<vmem>>, vector<1x1x32xf32>
    %605 = vector.shape_cast %604 : vector<1x1x32xf32> to vector<1x32xf32>
    %606 = vector.broadcast %605 : vector<1x32xf32> to vector<8x32xf32>
    %607 = arith.mulf %583, %606 : vector<8x32xf32>
    %c1_131 = arith.constant 1 : index
    %c0_132 = arith.constant 0 : index
    %c0_133 = arith.constant 0 : index
    %608 = vector.load %arg7[%c1_131, %c0_132, %c0_133] : memref<2x1x32xf32, #tpu.memory_space<vmem>>, vector<1x1x32xf32>
    %609 = vector.shape_cast %608 : vector<1x1x32xf32> to vector<1x32xf32>
    %610 = vector.broadcast %609 : vector<1x32xf32> to vector<8x32xf32>
    %611 = arith.mulf %603, %610 : vector<8x32xf32>
    %612 = arith.addf %607, %611 : vector<8x32xf32>
    %cst_134 = arith.constant dense<0.000000e+00> : vector<8xf32>
    %613 = vector.multi_reduction <add>, %612, %cst_134 [1] : vector<8x32xf32> to vector<8xf32>
    %614 = vector.shape_cast %613 : vector<8xf32> to vector<8x1xf32>
    %c0_135 = arith.constant 0 : index
    %c0_136 = arith.constant 0 : index
    %615 = vector.load %arg8[%c0_135, %c0_136] : memref<1x1xf32, #tpu.memory_space<vmem>>, vector<1x1xf32>
    %616 = vector.broadcast %615 : vector<1x1xf32> to vector<8x1xf32>
    %617 = arith.addf %614, %616 : vector<8x1xf32>
    %cst_137 = arith.constant 5.000000e-01 : f32
    %618 = vector.broadcast %cst_137 : f32 to vector<8x1xf32>
    %619 = arith.mulf %618, %617 : vector<8x1xf32>
    %620 = math.tanh %619 : vector<8x1xf32>
    %cst_138 = arith.constant 1.000000e+00 : f32
    %621 = vector.broadcast %cst_138 : f32 to vector<8x1xf32>
    %622 = arith.addf %621, %620 : vector<8x1xf32>
    %cst_139 = arith.constant 5.000000e-01 : f32
    %623 = vector.broadcast %cst_139 : f32 to vector<8x1xf32>
    %624 = arith.mulf %623, %622 : vector<8x1xf32>
    %c0_140 = arith.constant 0 : index
    %c0_141 = arith.constant 0 : index
    %625 = vector.load %arg9[%c0_140, %c0_141] : memref<8x1xf32, #tpu.memory_space<vmem>>, vector<8x1xf32>
    tpu.vector_store %arg9[%c0_140, %c0_141], %624 {strides = array<i32>} : memref<8x1xf32, #tpu.memory_space<vmem>>, vector<8x1xf32>,
    return
  }
  func.func @transform_0(%arg0: i32) -> (i32, i32) {
    %c0_i32 = arith.constant 0 : i32
    %c0_i32_0 = arith.constant 0 : i32
    %c0_i32_1 = arith.constant 0 : i32
    return %c0_i32, %c0_i32_0 : i32, i32
  }
  func.func @transform_1(%arg0: i32) -> (i32, i32) {
    %c0_i32 = arith.constant 0 : i32
    %c0_i32_0 = arith.constant 0 : i32
    %c0_i32_1 = arith.constant 0 : i32
    return %c0_i32, %c0_i32_0 : i32, i32
  }
  func.func @transform_2(%arg0: i32) -> (i32, i32, i32) {
    %c0_i32 = arith.constant 0 : i32
    %c0_i32_0 = arith.constant 0 : i32
    %c0_i32_1 = arith.constant 0 : i32
    %c0_i32_2 = arith.constant 0 : i32
    return %c0_i32, %c0_i32_0, %c0_i32_1 : i32, i32, i32
  }
  func.func @transform_3(%arg0: i32) -> (i32, i32, i32) {
    %c0_i32 = arith.constant 0 : i32
    %c0_i32_0 = arith.constant 0 : i32
    %c0_i32_1 = arith.constant 0 : i32
    %c0_i32_2 = arith.constant 0 : i32
    return %c0_i32, %c0_i32_0, %c0_i32_1 : i32, i32, i32
  }
  func.func @transform_4(%arg0: i32) -> (i32, i32) {
    %c0_i32 = arith.constant 0 : i32
    %c0_i32_0 = arith.constant 0 : i32
    %c0_i32_1 = arith.constant 0 : i32
    return %c0_i32, %c0_i32_0 : i32, i32
  }
  func.func @transform_5(%arg0: i32) -> (i32, i32, i32) {
    %c0_i32 = arith.constant 0 : i32
    %c0_i32_0 = arith.constant 0 : i32
    %c0_i32_1 = arith.constant 0 : i32
    %c0_i32_2 = arith.constant 0 : i32
    return %c0_i32, %c0_i32_0, %c0_i32_1 : i32, i32, i32
  }
  func.func @transform_6(%arg0: i32) -> (i32, i32, i32) {
    %c0_i32 = arith.constant 0 : i32
    %c0_i32_0 = arith.constant 0 : i32
    %c0_i32_1 = arith.constant 0 : i32
    %c0_i32_2 = arith.constant 0 : i32
    return %c0_i32, %c0_i32_0, %c0_i32_1 : i32, i32, i32
  }
  func.func @transform_7(%arg0: i32) -> (i32, i32) {
    %c0_i32 = arith.constant 0 : i32
    %c0_i32_0 = arith.constant 0 : i32
    %c0_i32_1 = arith.constant 0 : i32
    return %c0_i32, %c0_i32_0 : i32, i32
  }
  func.func @transform_8(%arg0: i32) -> (i32, i32) {
    %c0_i32 = arith.constant 0 : i32
    %c0_i32_0 = arith.constant 0 : i32
    %c0_i32_1 = arith.constant 0 : i32
    return %c0_i32, %c0_i32_0 : i32, i32
  }
}

</mosaic_0001>

<llo_original>
// kernel: tpu_custom_call.1
$region0: #{tpu_custom_call.1}
  #allocation0 [shape = 'u32[]', space=smem, size = 0x4, offset = 0x4, fixed_abs, tag = 'smem constant byte address 0x4 - core index']
  #allocation1 [shape = 'u32[144,128]{1,0:T(1,128)}', space=vmem, size = 0x12000, scoped, tag = 'internal scratch']
  #allocation2 [shape = 'f32[1,1]{1,0:T(1,128)S(1)}', space=vmem, size = 0x200, scoped, tag = 'scoped memory for tpu_custom_call.1']
  %s0 = inlined_call_operand.vmem [shape: s32[160,8], index: 0, kind: input, shape index: {}]
  %s1 = inlined_call_operand.vmem [shape: f32[64,32], index: 1, kind: input, shape index: {}]
  %s2 = inlined_call_operand.vmem [shape: f32[2,32,96], index: 2, kind: input, shape index: {}]
  %s3 = inlined_call_operand.vmem [shape: f32[2,1,96], index: 3, kind: input, shape index: {}]
  %s4 = inlined_call_operand.vmem [shape: f32[32,96], index: 4, kind: input, shape index: {}]
  %s5 = inlined_call_operand.vmem [shape: f32[2,1,32], index: 5, kind: input, shape index: {}]
  %s6 = inlined_call_operand.vmem [shape: f32[2,1,32], index: 6, kind: input, shape index: {}]
  %s7 = inlined_call_operand.<no memory space> [shape: f32[1,1], index: 7, kind: input, shape index: {}]
  %s8 = inlined_call_operand.vmem [shape: f32[8,1], index: 8, kind: output, shape index: {}]
  %s9 = sld [smem:[#allocation0]]
  $region42: #{tpu_custom_call.1} parent=0
    _
  %s11 = ssub.s32 1, %s9
  %s12 = scalar_select 0, %s11, %s9
  %v13 = vstv %s7
  %14 = vst [vmem:[#allocation2] sm:$0x1] %v13
  // Predicated region
  $region2: #{tpu_custom_call.1} parent=0 // pred_check
    _
  $region3: #{tpu_custom_call.1} parent=0 // pred_check_branch
    %16 = sbr.rel (0) target = $region5
  $region4: #{tpu_custom_call.1} parent=0 // pred_region
    _
  $region5: #{tpu_custom_call.1} parent=0 // pred_fallthru
    _
  // Predicated region
  $region6: #{tpu_custom_call.1} parent=0 // pred_check
    _
  $region7: #{tpu_custom_call.1} parent=0 // pred_check_branch
    %18 = sbr.rel (0) target = $region9
  $region8: #{tpu_custom_call.1} parent=0 // pred_region
    _
  $region9: #{tpu_custom_call.1} parent=0 // pred_fallthru
    _
  // Predicated region
  $region10: #{tpu_custom_call.1} parent=0 // pred_check
    _
  $region11: #{tpu_custom_call.1} parent=0 // pred_check_branch
    %20 = sbr.rel (0) target = $region13
  $region12: #{tpu_custom_call.1} parent=0 // pred_region
    _
  $region13: #{tpu_custom_call.1} parent=0 // pred_fallthru
    _
  // Predicated region
  $region14: #{tpu_custom_call.1} parent=0 // pred_check
    _
  $region15: #{tpu_custom_call.1} parent=0 // pred_check_branch
    %22 = sbr.rel (0) target = $region17
  $region16: #{tpu_custom_call.1} parent=0 // pred_region
    _
  $region17: #{tpu_custom_call.1} parent=0 // pred_fallthru
    _
  // Predicated region
  $region18: #{tpu_custom_call.1} parent=0 // pred_check
    _
  $region19: #{tpu_custom_call.1} parent=0 // pred_check_branch
    %24 = sbr.rel (0) target = $region21
  $region20: #{tpu_custom_call.1} parent=0 // pred_region
    _
  $region21: #{tpu_custom_call.1} parent=0 // pred_fallthru
    _
  // Predicated region
  $region22: #{tpu_custom_call.1} parent=0 // pred_check
    _
  $region23: #{tpu_custom_call.1} parent=0 // pred_check_branch
    %26 = sbr.rel (0) target = $region25
  $region24: #{tpu_custom_call.1} parent=0 // pred_region
    _
  $region25: #{tpu_custom_call.1} parent=0 // pred_fallthru
    _
  // Predicated region
  $region26: #{tpu_custom_call.1} parent=0 // pred_check
    _
  $region27: #{tpu_custom_call.1} parent=0 // pred_check_branch
    %28 = sbr.rel (0) target = $region29
  $region28: #{tpu_custom_call.1} parent=0 // pred_region
    _
  $region29: #{tpu_custom_call.1} parent=0 // pred_fallthru
    _
  // Predicated region
  $region30: #{tpu_custom_call.1} parent=0 // pred_check
    _
  $region31: #{tpu_custom_call.1} parent=0 // pred_check_branch
    %30 = sbr.rel (0) target = $region33
  $region32: #{tpu_custom_call.1} parent=0 // pred_region
    _
  $region33: #{tpu_custom_call.1} parent=0 // pred_fallthru
    _
  %v31 = vld [vmem:[%s0] sm:$0xff]
  %v32 = vld [vmem:[%s0 + $0x8] sm:$0xff]
  %v33 = vld [vmem:[%s0 + $0x10] sm:$0xff]
  %v34 = vld [vmem:[%s0 + $0x18] sm:$0xff]
  %v35 = vld [vmem:[%s0 + $0x20] sm:$0xff]
  %v36 = vld [vmem:[%s0 + $0x28] sm:$0xff]
  %v37 = vld [vmem:[%s0 + $0x30] sm:$0xff]
  %v38 = vld [vmem:[%s0 + $0x38] sm:$0xff]
  %v39 = vld [vmem:[%s0 + $0x40] sm:$0xff]
  %v40 = vld [vmem:[%s0 + $0x48] sm:$0xff]
  %v41 = vld [vmem:[%s0 + $0x50] sm:$0xff]
  %v42 = vld [vmem:[%s0 + $0x58] sm:$0xff]
  %v43 = vld [vmem:[%s0 + $0x60] sm:$0xff]
  %v44 = vld [vmem:[%s0 + $0x68] sm:$0xff]
  %v45 = vld [vmem:[%s0 + $0x70] sm:$0xff]
  %v46 = vld [vmem:[%s0 + $0x78] sm:$0xff]
  %v47 = vld [vmem:[%s0 + $0x80] sm:$0xff]
  %v48 = vld [vmem:[%s0 + $0x88] sm:$0xff]
  %v49 = vld [vmem:[%s0 + $0x90] sm:$0xff]
  %v50 = vld [vmem:[%s0 + $0x98] sm:$0xff]
  %v51 = vlaneseq
  %v52 = vand.u32 %v51, 127
  %53 = vset.pattern.permute.xlu0 0
  %54 = vperm.xlu0 %53, %v31
  %v55 = vpop.permute.xlu0 %54
  %56 = vset.pattern.permute.xlu0 0
  %57 = vperm.xlu0 %56, %v32
  %v58 = vpop.permute.xlu0 %57
  %59 = vset.pattern.permute.xlu0 0
  %60 = vperm.xlu0 %59, %v33
  %v61 = vpop.permute.xlu0 %60
  %62 = vset.pattern.permute.xlu0 0
  %63 = vperm.xlu0 %62, %v34
  %v64 = vpop.permute.xlu0 %63
  %65 = vset.pattern.permute.xlu0 0
  %66 = vperm.xlu0 %65, %v35
  %v67 = vpop.permute.xlu0 %66
  %68 = vset.pattern.permute.xlu0 0
  %69 = vperm.xlu0 %68, %v36
  %v70 = vpop.permute.xlu0 %69
  %71 = vset.pattern.permute.xlu0 0
  %72 = vperm.xlu0 %71, %v37
  %v73 = vpop.permute.xlu0 %72
  %74 = vset.pattern.permute.xlu0 0
  %75 = vperm.xlu0 %74, %v38
  %v76 = vpop.permute.xlu0 %75
  %77 = vset.pattern.permute.xlu0 0
  %78 = vperm.xlu0 %77, %v39
  %v79 = vpop.permute.xlu0 %78
  %80 = vset.pattern.permute.xlu0 0
  %81 = vperm.xlu0 %80, %v40
  %v82 = vpop.permute.xlu0 %81
  %83 = vset.pattern.permute.xlu0 0
  %84 = vperm.xlu0 %83, %v41
  %v85 = vpop.permute.xlu0 %84
  %86 = vset.pattern.permute.xlu0 0
  %87 = vperm.xlu0 %86, %v42
  %v88 = vpop.permute.xlu0 %87
  %89 = vset.pattern.permute.xlu0 0
  %90 = vperm.xlu0 %89, %v43
  %v91 = vpop.permute.xlu0 %90
  %92 = vset.pattern.permute.xlu0 0
  %93 = vperm.xlu0 %92, %v44
  %v94 = vpop.permute.xlu0 %93
  %95 = vset.pattern.permute.xlu0 0
  %96 = vperm.xlu0 %95, %v45
  %v97 = vpop.permute.xlu0 %96
  %98 = vset.pattern.permute.xlu0 0
  %99 = vperm.xlu0 %98, %v46
  %v100 = vpop.permute.xlu0 %99
  %101 = vset.pattern.permute.xlu0 0
  %102 = vperm.xlu0 %101, %v47
  %v103 = vpop.permute.xlu0 %102
  %104 = vset.pattern.permute.xlu0 0
  %105 = vperm.xlu0 %104, %v48
  %v106 = vpop.permute.xlu0 %105
  %107 = vset.pattern.permute.xlu0 0
  %108 = vperm.xlu0 %107, %v49
  %v109 = vpop.permute.xlu0 %108
  %110 = vset.pattern.permute.xlu0 0
  %111 = vperm.xlu0 %110, %v50
  %v112 = vpop.permute.xlu0 %111
  %vm113 = vcmp.eq.s32.totalorder %v55, %v52
  %vm114 = vcmp.eq.s32.totalorder %v58, %v52
  %vm115 = vcmp.eq.s32.totalorder %v61, %v52
  %vm116 = vcmp.eq.s32.totalorder %v64, %v52
  %vm117 = vcmp.eq.s32.totalorder %v67, %v52
  %vm118 = vcmp.eq.s32.totalorder %v70, %v52
  %vm119 = vcmp.eq.s32.totalorder %v73, %v52
  %vm120 = vcmp.eq.s32.totalorder %v76, %v52
  %vm121 = vcmp.eq.s32.totalorder %v79, %v52
  %vm122 = vcmp.eq.s32.totalorder %v82, %v52
  %vm123 = vcmp.eq.s32.totalorder %v85, %v52
  %vm124 = vcmp.eq.s32.totalorder %v88, %v52
  %vm125 = vcmp.eq.s32.totalorder %v91, %v52
  %vm126 = vcmp.eq.s32.totalorder %v94, %v52
  %vm127 = vcmp.eq.s32.totalorder %v97, %v52
  %vm128 = vcmp.eq.s32.totalorder %v100, %v52
  %vm129 = vcmp.eq.s32.totalorder %v103, %v52
  %vm130 = vcmp.eq.s32.totalorder %v106, %v52
  %vm131 = vcmp.eq.s32.totalorder %v109, %v52
  %vm132 = vcmp.eq.s32.totalorder %v112, %v52
  %v133 = vsel %vm113, 1, 0
  %v134 = vsel %vm114, 1, 0
  %v135 = vsel %vm115, 1, 0
  %v136 = vsel %vm116, 1, 0
  %v137 = vsel %vm117, 1, 0
  %v138 = vsel %vm118, 1, 0
  %v139 = vsel %vm119, 1, 0
  %v140 = vsel %vm120, 1, 0
  %v141 = vsel %vm121, 1, 0
  %v142 = vsel %vm122, 1, 0
  %v143 = vsel %vm123, 1, 0
  %v144 = vsel %vm124, 1, 0
  %v145 = vsel %vm125, 1, 0
  %v146 = vsel %vm126, 1, 0
  %v147 = vsel %vm127, 1, 0
  %v148 = vsel %vm128, 1, 0
  %v149 = vsel %vm129, 1, 0
  %v150 = vsel %vm130, 1, 0
  %v151 = vsel %vm131, 1, 0
  %v152 = vsel %vm132, 1, 0
  %v153 = vcvt.s32.f32 %v133
  %v154 = vcvt.s32.f32 %v134
  %v155 = vcvt.s32.f32 %v135
  %v156 = vcvt.s32.f32 %v136
  %v157 = vcvt.s32.f32 %v137
  %v158 = vcvt.s32.f32 %v138
  %v159 = vcvt.s32.f32 %v139
  %v160 = vcvt.s32.f32 %v140
  %v161 = vcvt.s32.f32 %v141
  %v162 = vcvt.s32.f32 %v142
  %v163 = vcvt.s32.f32 %v143
  %v164 = vcvt.s32.f32 %v144
  %v165 = vcvt.s32.f32 %v145
  %v166 = vcvt.s32.f32 %v146
  %v167 = vcvt.s32.f32 %v147
  %v168 = vcvt.s32.f32 %v148
  %v169 = vcvt.s32.f32 %v149
  %v170 = vcvt.s32.f32 %v150
  %v171 = vcvt.s32.f32 %v151
  %v172 = vcvt.s32.f32 %v152
  %173 = vset.pattern.permute.xlu0 1
  %174 = vperm.xlu0 %173, %v31
  %v175 = vpop.permute.xlu0 %174
  %176 = vset.pattern.permute.xlu0 1
  %177 = vperm.xlu0 %176, %v32
  %v178 = vpop.permute.xlu0 %177
  %179 = vset.pattern.permute.xlu0 1
  %180 = vperm.xlu0 %179, %v33
  %v181 = vpop.permute.xlu0 %180
  %182 = vset.pattern.permute.xlu0 1
  %183 = vperm.xlu0 %182, %v34
  %v184 = vpop.permute.xlu0 %183
  %185 = vset.pattern.permute.xlu0 1
  %186 = vperm.xlu0 %185, %v35
  %v187 = vpop.permute.xlu0 %186
  %188 = vset.pattern.permute.xlu0 1
  %189 = vperm.xlu0 %188, %v36
  %v190 = vpop.permute.xlu0 %189
  %191 = vset.pattern.permute.xlu0 1
  %192 = vperm.xlu0 %191, %v37
  %v193 = vpop.permute.xlu0 %192
  %194 = vset.pattern.permute.xlu0 1
  %195 = vperm.xlu0 %194, %v38
  %v196 = vpop.permute.xlu0 %195
  %197 = vset.pattern.permute.xlu0 1
  %198 = vperm.xlu0 %197, %v39
  %v199 = vpop.permute.xlu0 %198
  %200 = vset.pattern.permute.xlu0 1
  %201 = vperm.xlu0 %200, %v40
  %v202 = vpop.permute.xlu0 %201
  %203 = vset.pattern.permute.xlu0 1
  %204 = vperm.xlu0 %203, %v41
  %v205 = vpop.permute.xlu0 %204
  %206 = vset.pattern.permute.xlu0 1
  %207 = vperm.xlu0 %206, %v42
  %v208 = vpop.permute.xlu0 %207
  %209 = vset.pattern.permute.xlu0 1
  %210 = vperm.xlu0 %209, %v43
  %v211 = vpop.permute.xlu0 %210
  %212 = vset.pattern.permute.xlu0 1
  %213 = vperm.xlu0 %212, %v44
  %v214 = vpop.permute.xlu0 %213
  %215 = vset.pattern.permute.xlu0 1
  %216 = vperm.xlu0 %215, %v45
  %v217 = vpop.permute.xlu0 %216
  %218 = vset.pattern.permute.xlu0 1
  %219 = vperm.xlu0 %218, %v46
  %v220 = vpop.permute.xlu0 %219
  %221 = vset.pattern.permute.xlu0 1
  %222 = vperm.xlu0 %221, %v47
  %v223 = vpop.permute.xlu0 %222
  %224 = vset.pattern.permute.xlu0 1
  %225 = vperm.xlu0 %224, %v48
  %v226 = vpop.permute.xlu0 %225
  %227 = vset.pattern.permute.xlu0 1
  %228 = vperm.xlu0 %227, %v49
  %v229 = vpop.permute.xlu0 %228
  %230 = vset.pattern.permute.xlu0 1
  %231 = vperm.xlu0 %230, %v50
  %v232 = vpop.permute.xlu0 %231
  %vm233 = vcmp.eq.s32.totalorder %v175, %v52
  %vm234 = vcmp.eq.s32.totalorder %v178, %v52
  %vm235 = vcmp.eq.s32.totalorder %v181, %v52
  %vm236 = vcmp.eq.s32.totalorder %v184, %v52
  %vm237 = vcmp.eq.s32.totalorder %v187, %v52
  %vm238 = vcmp.eq.s32.totalorder %v190, %v52
  %vm239 = vcmp.eq.s32.totalorder %v193, %v52
  %vm240 = vcmp.eq.s32.totalorder %v196, %v52
  %vm241 = vcmp.eq.s32.totalorder %v199, %v52
  %vm242 = vcmp.eq.s32.totalorder %v202, %v52
  %vm243 = vcmp.eq.s32.totalorder %v205, %v52
  %vm244 = vcmp.eq.s32.totalorder %v208, %v52
  %vm245 = vcmp.eq.s32.totalorder %v211, %v52
  %vm246 = vcmp.eq.s32.totalorder %v214, %v52
  %vm247 = vcmp.eq.s32.totalorder %v217, %v52
  %vm248 = vcmp.eq.s32.totalorder %v220, %v52
  %vm249 = vcmp.eq.s32.totalorder %v223, %v52
  %vm250 = vcmp.eq.s32.totalorder %v226, %v52
  %vm251 = vcmp.eq.s32.totalorder %v229, %v52
  %vm252 = vcmp.eq.s32.totalorder %v232, %v52
  %v253 = vsel %vm233, 1, 0
  %v254 = vsel %vm234, 1, 0
  %v255 = vsel %vm235, 1, 0
  %v256 = vsel %vm236, 1, 0
  %v257 = vsel %vm237, 1, 0
  %v258 = vsel %vm238, 1, 0
  %v259 = vsel %vm239, 1, 0
  %v260 = vsel %vm240, 1, 0
  %v261 = vsel %vm241, 1, 0
  %v262 = vsel %vm242, 1, 0
  %v263 = vsel %vm243, 1, 0
  %v264 = vsel %vm244, 1, 0
  %v265 = vsel %vm245, 1, 0
  %v266 = vsel %vm246, 1, 0
  %v267 = vsel %vm247, 1, 0
  %v268 = vsel %vm248, 1, 0
  %v269 = vsel %vm249, 1, 0
  %v270 = vsel %vm250, 1, 0
  %v271 = vsel %vm251, 1, 0
  %v272 = vsel %vm252, 1, 0
  %v273 = vcvt.s32.f32 %v253
  %v274 = vcvt.s32.f32 %v254
  %v275 = vcvt.s32.f32 %v255
  %v276 = vcvt.s32.f32 %v256
  %v277 = vcvt.s32.f32 %v257
  %v278 = vcvt.s32.f32 %v258
  %v279 = vcvt.s32.f32 %v259
  %v280 = vcvt.s32.f32 %v260
  %v281 = vcvt.s32.f32 %v261
  %v282 = vcvt.s32.f32 %v262
  %v283 = vcvt.s32.f32 %v263
  %v284 = vcvt.s32.f32 %v264
  %v285 = vcvt.s32.f32 %v265
  %v286 = vcvt.s32.f32 %v266
  %v287 = vcvt.s32.f32 %v267
  %v288 = vcvt.s32.f32 %v268
  %v289 = vcvt.s32.f32 %v269
  %v290 = vcvt.s32.f32 %v270
  %v291 = vcvt.s32.f32 %v271
  %v292 = vcvt.s32.f32 %v272
  %v293 = vadd.f32 %v153, %v273
  %v294 = vadd.f32 %v154, %v274
  %v295 = vadd.f32 %v155, %v275
  %v296 = vadd.f32 %v156, %v276
  %v297 = vadd.f32 %v157, %v277
  %v298 = vadd.f32 %v158, %v278
  %v299 = vadd.f32 %v159, %v279
  %v300 = vadd.f32 %v160, %v280
  %v301 = vadd.f32 %v161, %v281
  %v302 = vadd.f32 %v162, %v282
  %v303 = vadd.f32 %v163, %v283
  %v304 = vadd.f32 %v164, %v284
  %v305 = vadd.f32 %v165, %v285
  %v306 = vadd.f32 %v166, %v286
  %v307 = vadd.f32 %v167, %v287
  %v308 = vadd.f32 %v168, %v288
  %v309 = vadd.f32 %v169, %v289
  %v310 = vadd.f32 %v170, %v290
  %v311 = vadd.f32 %v171, %v291
  %v312 = vadd.f32 %v172, %v292
  %313 = vset.pattern.permute.xlu0 2
  %314 = vperm.xlu0 %313, %v31
  %v315 = vpop.permute.xlu0 %314
  %316 = vset.pattern.permute.xlu0 2
  %317 = vperm.xlu0 %316, %v32
  %v318 = vpop.permute.xlu0 %317
  %319 = vset.pattern.permute.xlu0 2
  %320 = vperm.xlu0 %319, %v33
  %v321 = vpop.permute.xlu0 %320
  %322 = vset.pattern.permute.xlu0 2
  %323 = vperm.xlu0 %322, %v34
  %v324 = vpop.permute.xlu0 %323
  %325 = vset.pattern.permute.xlu0 2
  %326 = vperm.xlu0 %325, %v35
  %v327 = vpop.permute.xlu0 %326
  %328 = vset.pattern.permute.xlu0 2
  %329 = vperm.xlu0 %328, %v36
  %v330 = vpop.permute.xlu0 %329
  %331 = vset.pattern.permute.xlu0 2
  %332 = vperm.xlu0 %331, %v37
  %v333 = vpop.permute.xlu0 %332
  %334 = vset.pattern.permute.xlu0 2
  %335 = vperm.xlu0 %334, %v38
  %v336 = vpop.permute.xlu0 %335
  %337 = vset.pattern.permute.xlu0 2
  %338 = vperm.xlu0 %337, %v39
  %v339 = vpop.permute.xlu0 %338
  %340 = vset.pattern.permute.xlu0 2
  %341 = vperm.xlu0 %340, %v40
  %v342 = vpop.permute.xlu0 %341
  %343 = vset.pattern.permute.xlu0 2
  %344 = vperm.xlu0 %343, %v41
  %v345 = vpop.permute.xlu0 %344
  %346 = vset.pattern.permute.xlu0 2
  %347 = vperm.xlu0 %346, %v42
  %v348 = vpop.permute.xlu0 %347
  %349 = vset.pattern.permute.xlu0 2
  %350 = vperm.xlu0 %349, %v43
  %v351 = vpop.permute.xlu0 %350
  %352 = vset.pattern.permute.xlu0 2
  %353 = vperm.xlu0 %352, %v44
  %v354 = vpop.permute.xlu0 %353
  %355 = vset.pattern.permute.xlu0 2
  %356 = vperm.xlu0 %355, %v45
  %v357 = vpop.permute.xlu0 %356
  %358 = vset.pattern.permute.xlu0 2
  %359 = vperm.xlu0 %358, %v46
  %v360 = vpop.permute.xlu0 %359
  %361 = vset.pattern.permute.xlu0 2
  %362 = vperm.xlu0 %361, %v47
  %v363 = vpop.permute.xlu0 %362
  %364 = vset.pattern.permute.xlu0 2
  %365 = vperm.xlu0 %364, %v48
  %v366 = vpop.permute.xlu0 %365
  %367 = vset.pattern.permute.xlu0 2
  %368 = vperm.xlu0 %367, %v49
  %v369 = vpop.permute.xlu0 %368
  %370 = vset.pattern.permute.xlu0 2
  %371 = vperm.xlu0 %370, %v50
  %v372 = vpop.permute.xlu0 %371
  %vm373 = vcmp.eq.s32.totalorder %v315, %v52
  %vm374 = vcmp.eq.s32.totalorder %v318, %v52
  %vm375 = vcmp.eq.s32.totalorder %v321, %v52
  %vm376 = vcmp.eq.s32.totalorder %v324, %v52
  %vm377 = vcmp.eq.s32.totalorder %v327, %v52
  %vm378 = vcmp.eq.s32.totalorder %v330, %v52
  %vm379 = vcmp.eq.s32.totalorder %v333, %v52
  %vm380 = vcmp.eq.s32.totalorder %v336, %v52
  %vm381 = vcmp.eq.s32.totalorder %v339, %v52
  %vm382 = vcmp.eq.s32.totalorder %v342, %v52
  %vm383 = vcmp.eq.s32.totalorder %v345, %v52
  %vm384 = vcmp.eq.s32.totalorder %v348, %v52
  %vm385 = vcmp.eq.s32.totalorder %v351, %v52
  %vm386 = vcmp.eq.s32.totalorder %v354, %v52
  %vm387 = vcmp.eq.s32.totalorder %v357, %v52
  %vm388 = vcmp.eq.s32.totalorder %v360, %v52
  %vm389 = vcmp.eq.s32.totalorder %v363, %v52
  %vm390 = vcmp.eq.s32.totalorder %v366, %v52
  %vm391 = vcmp.eq.s32.totalorder %v369, %v52
  %vm392 = vcmp.eq.s32.totalorder %v372, %v52
  %v393 = vsel %vm373, 1, 0
  %v394 = vsel %vm374, 1, 0
  %v395 = vsel %vm375, 1, 0
  %v396 = vsel %vm376, 1, 0
  %v397 = vsel %vm377, 1, 0
  %v398 = vsel %vm378, 1, 0
  %v399 = vsel %vm379, 1, 0
  %v400 = vsel %vm380, 1, 0
  %v401 = vsel %vm381, 1, 0
  %v402 = vsel %vm382, 1, 0
  %v403 = vsel %vm383, 1, 0
  %v404 = vsel %vm384, 1, 0
  %v405 = vsel %vm385, 1, 0
  %v406 = vsel %vm386, 1, 0
  %v407 = vsel %vm387, 1, 0
  %v408 = vsel %vm388, 1, 0
  %v409 = vsel %vm389, 1, 0
  %v410 = vsel %vm390, 1, 0
  %v411 = vsel %vm391, 1, 0
  %v412 = vsel %vm392, 1, 0
  %v413 = vcvt.s32.f32 %v393
  %v414 = vcvt.s32.f32 %v394
  %v415 = vcvt.s32.f32 %v395
  %v416 = vcvt.s32.f32 %v396
  %v417 = vcvt.s32.f32 %v397
  %v418 = vcvt.s32.f32 %v398
  %v419 = vcvt.s32.f32 %v399
  %v420 = vcvt.s32.f32 %v400
  %v421 = vcvt.s32.f32 %v401
  %v422 = vcvt.s32.f32 %v402
  %v423 = vcvt.s32.f32 %v403
  %v424 = vcvt.s32.f32 %v404
  %v425 = vcvt.s32.f32 %v405
  %v426 = vcvt.s32.f32 %v406
  %v427 = vcvt.s32.f32 %v407
  %v428 = vcvt.s32.f32 %v408
  %v429 = vcvt.s32.f32 %v409
  %v430 = vcvt.s32.f32 %v410
  %v431 = vcvt.s32.f32 %v411
  %v432 = vcvt.s32.f32 %v412
  %v433 = vadd.f32 %v293, %v413
  %v434 = vadd.f32 %v294, %v414
  %v435 = vadd.f32 %v295, %v415
  %v436 = vadd.f32 %v296, %v416
  %v437 = vadd.f32 %v297, %v417
  %v438 = vadd.f32 %v298, %v418
  %v439 = vadd.f32 %v299, %v419
  %v440 = vadd.f32 %v300, %v420
  %v441 = vadd.f32 %v301, %v421
  %v442 = vadd.f32 %v302, %v422
  %v443 = vadd.f32 %v303, %v423
  %v444 = vadd.f32 %v304, %v424
  %v445 = vadd.f32 %v305, %v425
  %v446 = vadd.f32 %v306, %v426
  %v447 = vadd.f32 %v307, %v427
  %v448 = vadd.f32 %v308, %v428
  %v449 = vadd.f32 %v309, %v429
  %v450 = vadd.f32 %v310, %v430
  %v451 = vadd.f32 %v311, %v431
  %v452 = vadd.f32 %v312, %v432
  %453 = vset.pattern.permute.xlu0 3
  %454 = vperm.xlu0 %453, %v31
  %v455 = vpop.permute.xlu0 %454
  %456 = vset.pattern.permute.xlu0 3
  %457 = vperm.xlu0 %456, %v32
  %v458 = vpop.permute.xlu0 %457
  %459 = vset.pattern.permute.xlu0 3
  %460 = vperm.xlu0 %459, %v33
  %v461 = vpop.permute.xlu0 %460
  %462 = vset.pattern.permute.xlu0 3
  %463 = vperm.xlu0 %462, %v34
  %v464 = vpop.permute.xlu0 %463
  %465 = vset.pattern.permute.xlu0 3
  %466 = vperm.xlu0 %465, %v35
  %v467 = vpop.permute.xlu0 %466
  %468 = vset.pattern.permute.xlu0 3
  %469 = vperm.xlu0 %468, %v36
  %v470 = vpop.permute.xlu0 %469
  %471 = vset.pattern.permute.xlu0 3
  %472 = vperm.xlu0 %471, %v37
  %v473 = vpop.permute.xlu0 %472
  %474 = vset.pattern.permute.xlu0 3
  %475 = vperm.xlu0 %474, %v38
  %v476 = vpop.permute.xlu0 %475
  %477 = vset.pattern.permute.xlu0 3
  %478 = vperm.xlu0 %477, %v39
  %v479 = vpop.permute.xlu0 %478
  %480 = vset.pattern.permute.xlu0 3
  %481 = vperm.xlu0 %480, %v40
  %v482 = vpop.permute.xlu0 %481
  %483 = vset.pattern.permute.xlu0 3
  %484 = vperm.xlu0 %483, %v41
  %v485 = vpop.permute.xlu0 %484
  %486 = vset.pattern.permute.xlu0 3
  %487 = vperm.xlu0 %486, %v42
  %v488 = vpop.permute.xlu0 %487
  %489 = vset.pattern.permute.xlu0 3
  %490 = vperm.xlu0 %489, %v43
  %v491 = vpop.permute.xlu0 %490
  %492 = vset.pattern.permute.xlu0 3
  %493 = vperm.xlu0 %492, %v44
  %v494 = vpop.permute.xlu0 %493
  %495 = vset.pattern.permute.xlu0 3
  %496 = vperm.xlu0 %495, %v45
  %v497 = vpop.permute.xlu0 %496
  %498 = vset.pattern.permute.xlu0 3
  %499 = vperm.xlu0 %498, %v46
  %v500 = vpop.permute.xlu0 %499
  %501 = vset.pattern.permute.xlu0 3
  %502 = vperm.xlu0 %501, %v47
  %v503 = vpop.permute.xlu0 %502
  %504 = vset.pattern.permute.xlu0 3
  %505 = vperm.xlu0 %504, %v48
  %v506 = vpop.permute.xlu0 %505
  %507 = vset.pattern.permute.xlu0 3
  %508 = vperm.xlu0 %507, %v49
  %v509 = vpop.permute.xlu0 %508
  %510 = vset.pattern.permute.xlu0 3
  %511 = vperm.xlu0 %510, %v50
  %v512 = vpop.permute.xlu0 %511
  %vm513 = vcmp.eq.s32.totalorder %v455, %v52
  %vm514 = vcmp.eq.s32.totalorder %v458, %v52
  %vm515 = vcmp.eq.s32.totalorder %v461, %v52
  %vm516 = vcmp.eq.s32.totalorder %v464, %v52
  %vm517 = vcmp.eq.s32.totalorder %v467, %v52
  %vm518 = vcmp.eq.s32.totalorder %v470, %v52
  %vm519 = vcmp.eq.s32.totalorder %v473, %v52
  %vm520 = vcmp.eq.s32.totalorder %v476, %v52
  %vm521 = vcmp.eq.s32.totalorder %v479, %v52
  %vm522 = vcmp.eq.s32.totalorder %v482, %v52
  %vm523 = vcmp.eq.s32.totalorder %v485, %v52
  %vm524 = vcmp.eq.s32.totalorder %v488, %v52
  %vm525 = vcmp.eq.s32.totalorder %v491, %v52
  %vm526 = vcmp.eq.s32.totalorder %v494, %v52
  %vm527 = vcmp.eq.s32.totalorder %v497, %v52
  %vm528 = vcmp.eq.s32.totalorder %v500, %v52
  %vm529 = vcmp.eq.s32.totalorder %v503, %v52
  %vm530 = vcmp.eq.s32.totalorder %v506, %v52
  %vm531 = vcmp.eq.s32.totalorder %v509, %v52
  %vm532 = vcmp.eq.s32.totalorder %v512, %v52
  %v533 = vsel %vm513, 1, 0
  %v534 = vsel %vm514, 1, 0
  %v535 = vsel %vm515, 1, 0
  %v536 = vsel %vm516, 1, 0
  %v537 = vsel %vm517, 1, 0
  %v538 = vsel %vm518, 1, 0
  %v539 = vsel %vm519, 1, 0
  %v540 = vsel %vm520, 1, 0
  %v541 = vsel %vm521, 1, 0
  %v542 = vsel %vm522, 1, 0
  %v543 = vsel %vm523, 1, 0
  %v544 = vsel %vm524, 1, 0
  %v545 = vsel %vm525, 1, 0
  %v546 = vsel %vm526, 1, 0
  %v547 = vsel %vm527, 1, 0
  %v548 = vsel %vm528, 1, 0
  %v549 = vsel %vm529, 1, 0
  %v550 = vsel %vm530, 1, 0
  %v551 = vsel %vm531, 1, 0
  %v552 = vsel %vm532, 1, 0
  %v553 = vcvt.s32.f32 %v533
  %v554 = vcvt.s32.f32 %v534
  %v555 = vcvt.s32.f32 %v535
  %v556 = vcvt.s32.f32 %v536
  %v557 = vcvt.s32.f32 %v537
  %v558 = vcvt.s32.f32 %v538
  %v559 = vcvt.s32.f32 %v539
  %v560 = vcvt.s32.f32 %v540
  %v561 = vcvt.s32.f32 %v541
  %v562 = vcvt.s32.f32 %v542
  %v563 = vcvt.s32.f32 %v543
  %v564 = vcvt.s32.f32 %v544
  %v565 = vcvt.s32.f32 %v545
  %v566 = vcvt.s32.f32 %v546
  %v567 = vcvt.s32.f32 %v547
  %v568 = vcvt.s32.f32 %v548
  %v569 = vcvt.s32.f32 %v549
  %v570 = vcvt.s32.f32 %v550
  %v571 = vcvt.s32.f32 %v551
  %v572 = vcvt.s32.f32 %v552
  %v573 = vadd.f32 %v433, %v553
  %v574 = vadd.f32 %v434, %v554
  %v575 = vadd.f32 %v435, %v555
  %v576 = vadd.f32 %v436, %v556
  %v577 = vadd.f32 %v437, %v557
  %v578 = vadd.f32 %v438, %v558
  %v579 = vadd.f32 %v439, %v559
  %v580 = vadd.f32 %v440, %v560
  %v581 = vadd.f32 %v441, %v561
  %v582 = vadd.f32 %v442, %v562
  %v583 = vadd.f32 %v443, %v563
  %v584 = vadd.f32 %v444, %v564
  %v585 = vadd.f32 %v445, %v565
  %v586 = vadd.f32 %v446, %v566
  %v587 = vadd.f32 %v447, %v567
  %v588 = vadd.f32 %v448, %v568
  %v589 = vadd.f32 %v449, %v569
  %v590 = vadd.f32 %v450, %v570
  %v591 = vadd.f32 %v451, %v571
  %v592 = vadd.f32 %v452, %v572
  %593 = vset.pattern.permute.xlu0 4
  %594 = vperm.xlu0 %593, %v31
  %v595 = vpop.permute.xlu0 %594
  %596 = vset.pattern.permute.xlu0 4
  %597 = vperm.xlu0 %596, %v32
  %v598 = vpop.permute.xlu0 %597
  %599 = vset.pattern.permute.xlu0 4
  %600 = vperm.xlu0 %599, %v33
  %v601 = vpop.permute.xlu0 %600
  %602 = vset.pattern.permute.xlu0 4
  %603 = vperm.xlu0 %602, %v34
  %v604 = vpop.permute.xlu0 %603
  %605 = vset.pattern.permute.xlu0 4
  %606 = vperm.xlu0 %605, %v35
  %v607 = vpop.permute.xlu0 %606
  %608 = vset.pattern.permute.xlu0 4
  %609 = vperm.xlu0 %608, %v36
  %v610 = vpop.permute.xlu0 %609
  %611 = vset.pattern.permute.xlu0 4
  %612 = vperm.xlu0 %611, %v37
  %v613 = vpop.permute.xlu0 %612
  %614 = vset.pattern.permute.xlu0 4
  %615 = vperm.xlu0 %614, %v38
  %v616 = vpop.permute.xlu0 %615
  %617 = vset.pattern.permute.xlu0 4
  %618 = vperm.xlu0 %617, %v39
  %v619 = vpop.permute.xlu0 %618
  %620 = vset.pattern.permute.xlu0 4
  %621 = vperm.xlu0 %620, %v40
  %v622 = vpop.permute.xlu0 %621
  %623 = vset.pattern.permute.xlu0 4
  %624 = vperm.xlu0 %623, %v41
  %v625 = vpop.permute.xlu0 %624
  %626 = vset.pattern.permute.xlu0 4
  %627 = vperm.xlu0 %626, %v42
  %v628 = vpop.permute.xlu0 %627
  %629 = vset.pattern.permute.xlu0 4
  %630 = vperm.xlu0 %629, %v43
  %v631 = vpop.permute.xlu0 %630
  %632 = vset.pattern.permute.xlu0 4
  %633 = vperm.xlu0 %632, %v44
  %v634 = vpop.permute.xlu0 %633
  %635 = vset.pattern.permute.xlu0 4
  %636 = vperm.xlu0 %635, %v45
  %v637 = vpop.permute.xlu0 %636
  %638 = vset.pattern.permute.xlu0 4
  %639 = vperm.xlu0 %638, %v46
  %v640 = vpop.permute.xlu0 %639
  %641 = vset.pattern.permute.xlu0 4
  %642 = vperm.xlu0 %641, %v47
  %v643 = vpop.permute.xlu0 %642
  %644 = vset.pattern.permute.xlu0 4
  %645 = vperm.xlu0 %644, %v48
  %v646 = vpop.permute.xlu0 %645
  %647 = vset.pattern.permute.xlu0 4
  %648 = vperm.xlu0 %647, %v49
  %v649 = vpop.permute.xlu0 %648
  %650 = vset.pattern.permute.xlu0 4
  %651 = vperm.xlu0 %650, %v50
  %v652 = vpop.permute.xlu0 %651
  %vm653 = vcmp.eq.s32.totalorder %v595, %v52
  %vm654 = vcmp.eq.s32.totalorder %v598, %v52
  %vm655 = vcmp.eq.s32.totalorder %v601, %v52
  %vm656 = vcmp.eq.s32.totalorder %v604, %v52
  %vm657 = vcmp.eq.s32.totalorder %v607, %v52
  %vm658 = vcmp.eq.s32.totalorder %v610, %v52
  %vm659 = vcmp.eq.s32.totalorder %v613, %v52
  %vm660 = vcmp.eq.s32.totalorder %v616, %v52
  %vm661 = vcmp.eq.s32.totalorder %v619, %v52
  %vm662 = vcmp.eq.s32.totalorder %v622, %v52
  %vm663 = vcmp.eq.s32.totalorder %v625, %v52
  %vm664 = vcmp.eq.s32.totalorder %v628, %v52
  %vm665 = vcmp.eq.s32.totalorder %v631, %v52
  %vm666 = vcmp.eq.s32.totalorder %v634, %v52
  %vm667 = vcmp.eq.s32.totalorder %v637, %v52
  %vm668 = vcmp.eq.s32.totalorder %v640, %v52
  %vm669 = vcmp.eq.s32.totalorder %v643, %v52
  %vm670 = vcmp.eq.s32.totalorder %v646, %v52
  %vm671 = vcmp.eq.s32.totalorder %v649, %v52
  %vm672 = vcmp.eq.s32.totalorder %v652, %v52
  %v673 = vsel %vm653, 1, 0
  %v674 = vsel %vm654, 1, 0
  %v675 = vsel %vm655, 1, 0
  %v676 = vsel %vm656, 1, 0
  %v677 = vsel %vm657, 1, 0
  %v678 = vsel %vm658, 1, 0
  %v679 = vsel %vm659, 1, 0
  %v680 = vsel %vm660, 1, 0
  %v681 = vsel %vm661, 1, 0
  %v682 = vsel %vm662, 1, 0
  %v683 = vsel %vm663, 1, 0
  %v684 = vsel %vm664, 1, 0
  %v685 = vsel %vm665, 1, 0
  %v686 = vsel %vm666, 1, 0
  %v687 = vsel %vm667, 1, 0
  %v688 = vsel %vm668, 1, 0
  %v689 = vsel %vm669, 1, 0
  %v690 = vsel %vm670, 1, 0
  %v691 = vsel %vm671, 1, 0
  %v692 = vsel %vm672, 1, 0
  %v693 = vcvt.s32.f32 %v673
  %v694 = vcvt.s32.f32 %v674
  %v695 = vcvt.s32.f32 %v675
  %v696 = vcvt.s32.f32 %v676
  %v697 = vcvt.s32.f32 %v677
  %v698 = vcvt.s32.f32 %v678
  %v699 = vcvt.s32.f32 %v679
  %v700 = vcvt.s32.f32 %v680
  %v701 = vcvt.s32.f32 %v681
  %v702 = vcvt.s32.f32 %v682
  %v703 = vcvt.s32.f32 %v683
  %v704 = vcvt.s32.f32 %v684
  %v705 = vcvt.s32.f32 %v685
  %v706 = vcvt.s32.f32 %v686
  %v707 = vcvt.s32.f32 %v687
  %v708 = vcvt.s32.f32 %v688
  %v709 = vcvt.s32.f32 %v689
  %v710 = vcvt.s32.f32 %v690
  %v711 = vcvt.s32.f32 %v691
  %v712 = vcvt.s32.f32 %v692
  %v713 = vadd.f32 %v573, %v693
  %v714 = vadd.f32 %v574, %v694
  %v715 = vadd.f32 %v575, %v695
  %v716 = vadd.f32 %v576, %v696
  %v717 = vadd.f32 %v577, %v697
  %v718 = vadd.f32 %v578, %v698
  %v719 = vadd.f32 %v579, %v699
  %v720 = vadd.f32 %v580, %v700
  %v721 = vadd.f32 %v581, %v701
  %v722 = vadd.f32 %v582, %v702
  %v723 = vadd.f32 %v583, %v703
  %v724 = vadd.f32 %v584, %v704
  %v725 = vadd.f32 %v585, %v705
  %v726 = vadd.f32 %v586, %v706
  %v727 = vadd.f32 %v587, %v707
  %v728 = vadd.f32 %v588, %v708
  %v729 = vadd.f32 %v589, %v709
  %v730 = vadd.f32 %v590, %v710
  %v731 = vadd.f32 %v591, %v711
  %v732 = vadd.f32 %v592, %v712
  %733 = vset.pattern.permute.xlu0 5
  %734 = vperm.xlu0 %733, %v31
  %v735 = vpop.permute.xlu0 %734
  %736 = vset.pattern.permute.xlu0 5
  %737 = vperm.xlu0 %736, %v32
  %v738 = vpop.permute.xlu0 %737
  %739 = vset.pattern.permute.xlu0 5
  %740 = vperm.xlu0 %739, %v33
  %v741 = vpop.permute.xlu0 %740
  %742 = vset.pattern.permute.xlu0 5
  %743 = vperm.xlu0 %742, %v34
  %v744 = vpop.permute.xlu0 %743
  %745 = vset.pattern.permute.xlu0 5
  %746 = vperm.xlu0 %745, %v35
  %v747 = vpop.permute.xlu0 %746
  %748 = vset.pattern.permute.xlu0 5
  %749 = vperm.xlu0 %748, %v36
  %v750 = vpop.permute.xlu0 %749
  %751 = vset.pattern.permute.xlu0 5
  %752 = vperm.xlu0 %751, %v37
  %v753 = vpop.permute.xlu0 %752
  %754 = vset.pattern.permute.xlu0 5
  %755 = vperm.xlu0 %754, %v38
  %v756 = vpop.permute.xlu0 %755
  %757 = vset.pattern.permute.xlu0 5
  %758 = vperm.xlu0 %757, %v39
  %v759 = vpop.permute.xlu0 %758
  %760 = vset.pattern.permute.xlu0 5
  %761 = vperm.xlu0 %760, %v40
  %v762 = vpop.permute.xlu0 %761
  %763 = vset.pattern.permute.xlu0 5
  %764 = vperm.xlu0 %763, %v41
  %v765 = vpop.permute.xlu0 %764
  %766 = vset.pattern.permute.xlu0 5
  %767 = vperm.xlu0 %766, %v42
  %v768 = vpop.permute.xlu0 %767
  %769 = vset.pattern.permute.xlu0 5
  %770 = vperm.xlu0 %769, %v43
  %v771 = vpop.permute.xlu0 %770
  %772 = vset.pattern.permute.xlu0 5
  %773 = vperm.xlu0 %772, %v44
  %v774 = vpop.permute.xlu0 %773
  %775 = vset.pattern.permute.xlu0 5
  %776 = vperm.xlu0 %775, %v45
  %v777 = vpop.permute.xlu0 %776
  %778 = vset.pattern.permute.xlu0 5
  %779 = vperm.xlu0 %778, %v46
  %v780 = vpop.permute.xlu0 %779
  %781 = vset.pattern.permute.xlu0 5
  %782 = vperm.xlu0 %781, %v47
  %v783 = vpop.permute.xlu0 %782
  %784 = vset.pattern.permute.xlu0 5
  %785 = vperm.xlu0 %784, %v48
  %v786 = vpop.permute.xlu0 %785
  %787 = vset.pattern.permute.xlu0 5
  %788 = vperm.xlu0 %787, %v49
  %v789 = vpop.permute.xlu0 %788
  %790 = vset.pattern.permute.xlu0 5
  %791 = vperm.xlu0 %790, %v50
  %v792 = vpop.permute.xlu0 %791
  %vm793 = vcmp.eq.s32.totalorder %v735, %v52
  %vm794 = vcmp.eq.s32.totalorder %v738, %v52
  %vm795 = vcmp.eq.s32.totalorder %v741, %v52
  %vm796 = vcmp.eq.s32.totalorder %v744, %v52
  %vm797 = vcmp.eq.s32.totalorder %v747, %v52
  %vm798 = vcmp.eq.s32.totalorder %v750, %v52
  %vm799 = vcmp.eq.s32.totalorder %v753, %v52
  %vm800 = vcmp.eq.s32.totalorder %v756, %v52
  %vm801 = vcmp.eq.s32.totalorder %v759, %v52
  %vm802 = vcmp.eq.s32.totalorder %v762, %v52
  %vm803 = vcmp.eq.s32.totalorder %v765, %v52
  %vm804 = vcmp.eq.s32.totalorder %v768, %v52
  %vm805 = vcmp.eq.s32.totalorder %v771, %v52
  %vm806 = vcmp.eq.s32.totalorder %v774, %v52
  %vm807 = vcmp.eq.s32.totalorder %v777, %v52
  %vm808 = vcmp.eq.s32.totalorder %v780, %v52
  %vm809 = vcmp.eq.s32.totalorder %v783, %v52
  %vm810 = vcmp.eq.s32.totalorder %v786, %v52
  %vm811 = vcmp.eq.s32.totalorder %v789, %v52
  %vm812 = vcmp.eq.s32.totalorder %v792, %v52
  %v813 = vsel %vm793, 1, 0
  %v814 = vsel %vm794, 1, 0
  %v815 = vsel %vm795, 1, 0
  %v816 = vsel %vm796, 1, 0
  %v817 = vsel %vm797, 1, 0
  %v818 = vsel %vm798, 1, 0
  %v819 = vsel %vm799, 1, 0
  %v820 = vsel %vm800, 1, 0
  %v821 = vsel %vm801, 1, 0
  %v822 = vsel %vm802, 1, 0
  %v823 = vsel %vm803, 1, 0
  %v824 = vsel %vm804, 1, 0
  %v825 = vsel %vm805, 1, 0
  %v826 = vsel %vm806, 1, 0
  %v827 = vsel %vm807, 1, 0
  %v828 = vsel %vm808, 1, 0
  %v829 = vsel %vm809, 1, 0
  %v830 = vsel %vm810, 1, 0
  %v831 = vsel %vm811, 1, 0
  %v832 = vsel %vm812, 1, 0
  %v833 = vcvt.s32.f32 %v813
  %v834 = vcvt.s32.f32 %v814
  %v835 = vcvt.s32.f32 %v815
  %v836 = vcvt.s32.f32 %v816
  %v837 = vcvt.s32.f32 %v817
  %v838 = vcvt.s32.f32 %v818
  %v839 = vcvt.s32.f32 %v819
  %v840 = vcvt.s32.f32 %v820
  %v841 = vcvt.s32.f32 %v821
  %v842 = vcvt.s32.f32 %v822
  %v843 = vcvt.s32.f32 %v823
  %v844 = vcvt.s32.f32 %v824
  %v845 = vcvt.s32.f32 %v825
  %v846 = vcvt.s32.f32 %v826
  %v847 = vcvt.s32.f32 %v827
  %v848 = vcvt.s32.f32 %v828
  %v849 = vcvt.s32.f32 %v829
  %v850 = vcvt.s32.f32 %v830
  %v851 = vcvt.s32.f32 %v831
  %v852 = vcvt.s32.f32 %v832
  %v853 = vadd.f32 %v713, %v833
  %v854 = vadd.f32 %v714, %v834
  %v855 = vadd.f32 %v715, %v835
  %v856 = vadd.f32 %v716, %v836
  %v857 = vadd.f32 %v717, %v837
  %v858 = vadd.f32 %v718, %v838
  %v859 = vadd.f32 %v719, %v839
  %v860 = vadd.f32 %v720, %v840
  %v861 = vadd.f32 %v721, %v841
  %v862 = vadd.f32 %v722, %v842
  %v863 = vadd.f32 %v723, %v843
  %v864 = vadd.f32 %v724, %v844
  %v865 = vadd.f32 %v725, %v845
  %v866 = vadd.f32 %v726, %v846
  %v867 = vadd.f32 %v727, %v847
  %v868 = vadd.f32 %v728, %v848
  %v869 = vadd.f32 %v729, %v849
  %v870 = vadd.f32 %v730, %v850
  %v871 = vadd.f32 %v731, %v851
  %v872 = vadd.f32 %v732, %v852
  %873 = vset.pattern.permute.xlu0 6
  %874 = vperm.xlu0 %873, %v31
  %v875 = vpop.permute.xlu0 %874
  %876 = vset.pattern.permute.xlu0 6
  %877 = vperm.xlu0 %876, %v32
  %v878 = vpop.permute.xlu0 %877
  %879 = vset.pattern.permute.xlu0 6
  %880 = vperm.xlu0 %879, %v33
  %v881 = vpop.permute.xlu0 %880
  %882 = vset.pattern.permute.xlu0 6
  %883 = vperm.xlu0 %882, %v34
  %v884 = vpop.permute.xlu0 %883
  %885 = vset.pattern.permute.xlu0 6
  %886 = vperm.xlu0 %885, %v35
  %v887 = vpop.permute.xlu0 %886
  %888 = vset.pattern.permute.xlu0 6
  %889 = vperm.xlu0 %888, %v36
  %v890 = vpop.permute.xlu0 %889
  %891 = vset.pattern.permute.xlu0 6
  %892 = vperm.xlu0 %891, %v37
  %v893 = vpop.permute.xlu0 %892
  %894 = vset.pattern.permute.xlu0 6
  %895 = vperm.xlu0 %894, %v38
  %v896 = vpop.permute.xlu0 %895
  %897 = vset.pattern.permute.xlu0 6
  %898 = vperm.xlu0 %897, %v39
  %v899 = vpop.permute.xlu0 %898
  %900 = vset.pattern.permute.xlu0 6
  %901 = vperm.xlu0 %900, %v40
  %v902 = vpop.permute.xlu0 %901
  %903 = vset.pattern.permute.xlu0 6
  %904 = vperm.xlu0 %903, %v41
  %v905 = vpop.permute.xlu0 %904
  %906 = vset.pattern.permute.xlu0 6
  %907 = vperm.xlu0 %906, %v42
  %v908 = vpop.permute.xlu0 %907
  %909 = vset.pattern.permute.xlu0 6
  %910 = vperm.xlu0 %909, %v43
  %v911 = vpop.permute.xlu0 %910
  %912 = vset.pattern.permute.xlu0 6
  %913 = vperm.xlu0 %912, %v44
  %v914 = vpop.permute.xlu0 %913
  %915 = vset.pattern.permute.xlu0 6
  %916 = vperm.xlu0 %915, %v45
  %v917 = vpop.permute.xlu0 %916
  %918 = vset.pattern.permute.xlu0 6
  %919 = vperm.xlu0 %918, %v46
  %v920 = vpop.permute.xlu0 %919
  %921 = vset.pattern.permute.xlu0 6
  %922 = vperm.xlu0 %921, %v47
  %v923 = vpop.permute.xlu0 %922
  %924 = vset.pattern.permute.xlu0 6
  %925 = vperm.xlu0 %924, %v48
  %v926 = vpop.permute.xlu0 %925
  %927 = vset.pattern.permute.xlu0 6
  %928 = vperm.xlu0 %927, %v49
  %v929 = vpop.permute.xlu0 %928
  %930 = vset.pattern.permute.xlu0 6
  %931 = vperm.xlu0 %930, %v50
  %v932 = vpop.permute.xlu0 %931
  %vm933 = vcmp.eq.s32.totalorder %v875, %v52
  %vm934 = vcmp.eq.s32.totalorder %v878, %v52
  %vm935 = vcmp.eq.s32.totalorder %v881, %v52
  %vm936 = vcmp.eq.s32.totalorder %v884, %v52
  %vm937 = vcmp.eq.s32.totalorder %v887, %v52
  %vm938 = vcmp.eq.s32.totalorder %v890, %v52
  %vm939 = vcmp.eq.s32.totalorder %v893, %v52
  %vm940 = vcmp.eq.s32.totalorder %v896, %v52
  %vm941 = vcmp.eq.s32.totalorder %v899, %v52
  %vm942 = vcmp.eq.s32.totalorder %v902, %v52
  %vm943 = vcmp.eq.s32.totalorder %v905, %v52
  %vm944 = vcmp.eq.s32.totalorder %v908, %v52
  %vm945 = vcmp.eq.s32.totalorder %v911, %v52
  %vm946 = vcmp.eq.s32.totalorder %v914, %v52
  %vm947 = vcmp.eq.s32.totalorder %v917, %v52
  %vm948 = vcmp.eq.s32.totalorder %v920, %v52
  %vm949 = vcmp.eq.s32.totalorder %v923, %v52
  %vm950 = vcmp.eq.s32.totalorder %v926, %v52
  %vm951 = vcmp.eq.s32.totalorder %v929, %v52
  %vm952 = vcmp.eq.s32.totalorder %v932, %v52
  %v953 = vsel %vm933, 1, 0
  %v954 = vsel %vm934, 1, 0
  %v955 = vsel %vm935, 1, 0
  %v956 = vsel %vm936, 1, 0
  %v957 = vsel %vm937, 1, 0
  %v958 = vsel %vm938, 1, 0
  %v959 = vsel %vm939, 1, 0
  %v960 = vsel %vm940, 1, 0
  %v961 = vsel %vm941, 1, 0
  %v962 = vsel %vm942, 1, 0
  %v963 = vsel %vm943, 1, 0
  %v964 = vsel %vm944, 1, 0
  %v965 = vsel %vm945, 1, 0
  %v966 = vsel %vm946, 1, 0
  %v967 = vsel %vm947, 1, 0
  %v968 = vsel %vm948, 1, 0
  %v969 = vsel %vm949, 1, 0
  %v970 = vsel %vm950, 1, 0
  %v971 = vsel %vm951, 1, 0
  %v972 = vsel %vm952, 1, 0
  %v973 = vcvt.s32.f32 %v953
  %v974 = vcvt.s32.f32 %v954
  %v975 = vcvt.s32.f32 %v955
  %v976 = vcvt.s32.f32 %v956
  %v977 = vcvt.s32.f32 %v957
  %v978 = vcvt.s32.f32 %v958
  %v979 = vcvt.s32.f32 %v959
  %v980 = vcvt.s32.f32 %v960
  %v981 = vcvt.s32.f32 %v961
  %v982 = vcvt.s32.f32 %v962
  %v983 = vcvt.s32.f32 %v963
  %v984 = vcvt.s32.f32 %v964
  %v985 = vcvt.s32.f32 %v965
  %v986 = vcvt.s32.f32 %v966
  %v987 = vcvt.s32.f32 %v967
  %v988 = vcvt.s32.f32 %v968
  %v989 = vcvt.s32.f32 %v969
  %v990 = vcvt.s32.f32 %v970
  %v991 = vcvt.s32.f32 %v971
  %v992 = vcvt.s32.f32 %v972
  %v993 = vadd.f32 %v853, %v973
  %v994 = vadd.f32 %v854, %v974
  %v995 = vadd.f32 %v855, %v975
  %v996 = vadd.f32 %v856, %v976
  %v997 = vadd.f32 %v857, %v977
  %v998 = vadd.f32 %v858, %v978
  %v999 = vadd.f32 %v859, %v979
  %v1000 = vadd.f32 %v860, %v980
  %v1001 = vadd.f32 %v861, %v981
  %v1002 = vadd.f32 %v862, %v982
  %v1003 = vadd.f32 %v863, %v983
  %v1004 = vadd.f32 %v864, %v984
  %v1005 = vadd.f32 %v865, %v985
  %v1006 = vadd.f32 %v866, %v986
  %v1007 = vadd.f32 %v867, %v987
  %v1008 = vadd.f32 %v868, %v988
  %v1009 = vadd.f32 %v869, %v989
  %v1010 = vadd.f32 %v870, %v990
  %v1011 = vadd.f32 %v871, %v991
  %v1012 = vadd.f32 %v872, %v992
  %1013 = vset.pattern.permute.xlu0 7
  %1014 = vperm.xlu0 %1013, %v31
  %v1015 = vpop.permute.xlu0 %1014
  %1016 = vset.pattern.permute.xlu0 7
  %1017 = vperm.xlu0 %1016, %v32
  %v1018 = vpop.permute.xlu0 %1017
  %1019 = vset.pattern.permute.xlu0 7
  %1020 = vperm.xlu0 %1019, %v33
  %v1021 = vpop.permute.xlu0 %1020
  %1022 = vset.pattern.permute.xlu0 7
  %1023 = vperm.xlu0 %1022, %v34
  %v1024 = vpop.permute.xlu0 %1023
  %1025 = vset.pattern.permute.xlu0 7
  %1026 = vperm.xlu0 %1025, %v35
  %v1027 = vpop.permute.xlu0 %1026
  %1028 = vset.pattern.permute.xlu0 7
  %1029 = vperm.xlu0 %1028, %v36
  %v1030 = vpop.permute.xlu0 %1029
  %1031 = vset.pattern.permute.xlu0 7
  %1032 = vperm.xlu0 %1031, %v37
  %v1033 = vpop.permute.xlu0 %1032
  %1034 = vset.pattern.permute.xlu0 7
  %1035 = vperm.xlu0 %1034, %v38
  %v1036 = vpop.permute.xlu0 %1035
  %1037 = vset.pattern.permute.xlu0 7
  %1038 = vperm.xlu0 %1037, %v39
  %v1039 = vpop.permute.xlu0 %1038
  %1040 = vset.pattern.permute.xlu0 7
  %1041 = vperm.xlu0 %1040, %v40
  %v1042 = vpop.permute.xlu0 %1041
  %1043 = vset.pattern.permute.xlu0 7
  %1044 = vperm.xlu0 %1043, %v41
  %v1045 = vpop.permute.xlu0 %1044
  %1046 = vset.pattern.permute.xlu0 7
  %1047 = vperm.xlu0 %1046, %v42
  %v1048 = vpop.permute.xlu0 %1047
  %1049 = vset.pattern.permute.xlu0 7
  %1050 = vperm.xlu0 %1049, %v43
  %v1051 = vpop.permute.xlu0 %1050
  %1052 = vset.pattern.permute.xlu0 7
  %1053 = vperm.xlu0 %1052, %v44
  %v1054 = vpop.permute.xlu0 %1053
  %1055 = vset.pattern.permute.xlu0 7
  %1056 = vperm.xlu0 %1055, %v45
  %v1057 = vpop.permute.xlu0 %1056
  %1058 = vset.pattern.permute.xlu0 7
  %1059 = vperm.xlu0 %1058, %v46
  %v1060 = vpop.permute.xlu0 %1059
  %1061 = vset.pattern.permute.xlu0 7
  %1062 = vperm.xlu0 %1061, %v47
  %v1063 = vpop.permute.xlu0 %1062
  %1064 = vset.pattern.permute.xlu0 7
  %1065 = vperm.xlu0 %1064, %v48
  %v1066 = vpop.permute.xlu0 %1065
  %1067 = vset.pattern.permute.xlu0 7
  %1068 = vperm.xlu0 %1067, %v49
  %v1069 = vpop.permute.xlu0 %1068
  %1070 = vset.pattern.permute.xlu0 7
  %1071 = vperm.xlu0 %1070, %v50
  %v1072 = vpop.permute.xlu0 %1071
  %vm1073 = vcmp.eq.s32.totalorder %v1015, %v52
  %vm1074 = vcmp.eq.s32.totalorder %v1018, %v52
  %vm1075 = vcmp.eq.s32.totalorder %v1021, %v52
  %vm1076 = vcmp.eq.s32.totalorder %v1024, %v52
  %vm1077 = vcmp.eq.s32.totalorder %v1027, %v52
  %vm1078 = vcmp.eq.s32.totalorder %v1030, %v52
  %vm1079 = vcmp.eq.s32.totalorder %v1033, %v52
  %vm1080 = vcmp.eq.s32.totalorder %v1036, %v52
  %vm1081 = vcmp.eq.s32.totalorder %v1039, %v52
  %vm1082 = vcmp.eq.s32.totalorder %v1042, %v52
  %vm1083 = vcmp.eq.s32.totalorder %v1045, %v52
  %vm1084 = vcmp.eq.s32.totalorder %v1048, %v52
  %vm1085 = vcmp.eq.s32.totalorder %v1051, %v52
  %vm1086 = vcmp.eq.s32.totalorder %v1054, %v52
  %vm1087 = vcmp.eq.s32.totalorder %v1057, %v52
  %vm1088 = vcmp.eq.s32.totalorder %v1060, %v52
  %vm1089 = vcmp.eq.s32.totalorder %v1063, %v52
  %vm1090 = vcmp.eq.s32.totalorder %v1066, %v52
  %vm1091 = vcmp.eq.s32.totalorder %v1069, %v52
  %vm1092 = vcmp.eq.s32.totalorder %v1072, %v52
  %v1093 = vsel %vm1073, 1, 0
  %v1094 = vsel %vm1074, 1, 0
  %v1095 = vsel %vm1075, 1, 0
  %v1096 = vsel %vm1076, 1, 0
  %v1097 = vsel %vm1077, 1, 0
  %v1098 = vsel %vm1078, 1, 0
  %v1099 = vsel %vm1079, 1, 0
  %v1100 = vsel %vm1080, 1, 0
  %v1101 = vsel %vm1081, 1, 0
  %v1102 = vsel %vm1082, 1, 0
  %v1103 = vsel %vm1083, 1, 0
  %v1104 = vsel %vm1084, 1, 0
  %v1105 = vsel %vm1085, 1, 0
  %v1106 = vsel %vm1086, 1, 0
  %v1107 = vsel %vm1087, 1, 0
  %v1108 = vsel %vm1088, 1, 0
  %v1109 = vsel %vm1089, 1, 0
  %v1110 = vsel %vm1090, 1, 0
  %v1111 = vsel %vm1091, 1, 0
  %v1112 = vsel %vm1092, 1, 0
  %v1113 = vcvt.s32.f32 %v1093
  %v1114 = vcvt.s32.f32 %v1094
  %v1115 = vcvt.s32.f32 %v1095
  %v1116 = vcvt.s32.f32 %v1096
  %v1117 = vcvt.s32.f32 %v1097
  %v1118 = vcvt.s32.f32 %v1098
  %v1119 = vcvt.s32.f32 %v1099
  %v1120 = vcvt.s32.f32 %v1100
  %v1121 = vcvt.s32.f32 %v1101
  %v1122 = vcvt.s32.f32 %v1102
  %v1123 = vcvt.s32.f32 %v1103
  %v1124 = vcvt.s32.f32 %v1104
  %v1125 = vcvt.s32.f32 %v1105
  %v1126 = vcvt.s32.f32 %v1106
  %v1127 = vcvt.s32.f32 %v1107
  %v1128 = vcvt.s32.f32 %v1108
  %v1129 = vcvt.s32.f32 %v1109
  %v1130 = vcvt.s32.f32 %v1110
  %v1131 = vcvt.s32.f32 %v1111
  %v1132 = vcvt.s32.f32 %v1112
  %v1133 = vadd.f32 %v993, %v1113
  %v1134 = vadd.f32 %v994, %v1114
  %v1135 = vadd.f32 %v995, %v1115
  %v1136 = vadd.f32 %v996, %v1116
  %v1137 = vadd.f32 %v997, %v1117
  %v1138 = vadd.f32 %v998, %v1118
  %v1139 = vadd.f32 %v999, %v1119
  %v1140 = vadd.f32 %v1000, %v1120
  %v1141 = vadd.f32 %v1001, %v1121
  %v1142 = vadd.f32 %v1002, %v1122
  %v1143 = vadd.f32 %v1003, %v1123
  %v1144 = vadd.f32 %v1004, %v1124
  %v1145 = vadd.f32 %v1005, %v1125
  %v1146 = vadd.f32 %v1006, %v1126
  %v1147 = vadd.f32 %v1007, %v1127
  %v1148 = vadd.f32 %v1008, %v1128
  %v1149 = vadd.f32 %v1009, %v1129
  %v1150 = vadd.f32 %v1010, %v1130
  %v1151 = vadd.f32 %v1011, %v1131
  %v1152 = vadd.f32 %v1012, %v1132
  %v1153 = vld [vmem:[%s1] sm:$0xff]
  %v1154 = vld [vmem:[%s1 + $0x8] sm:$0xff]
  %v1155 = vld [vmem:[%s1 + $0x10] sm:$0xff]
  %v1156 = vld [vmem:[%s1 + $0x18] sm:$0xff]
  %v1157 = vld [vmem:[%s1 + $0x20] sm:$0xff]
  %v1158 = vld [vmem:[%s1 + $0x28] sm:$0xff]
  %v1159 = vld [vmem:[%s1 + $0x30] sm:$0xff]
  %v1160 = vld [vmem:[%s1 + $0x38] sm:$0xff]
  %vm1161 = vcmask 523264
  %v1163 = vsel %vm1161, %v1133, 0
  %v1166 = vsel %vm1161, %v1134, 0
  %v1169 = vsel %vm1161, %v1135, 0
  %v1172 = vsel %vm1161, %v1136, 0
  %v1175 = vsel %vm1161, %v1137, 0
  %v1178 = vsel %vm1161, %v1138, 0
  %v1181 = vsel %vm1161, %v1139, 0
  %v1184 = vsel %vm1161, %v1140, 0
  %v1187 = vsel %vm1161, %v1141, 0
  %v1190 = vsel %vm1161, %v1142, 0
  %v1193 = vsel %vm1161, %v1143, 0
  %v1196 = vsel %vm1161, %v1144, 0
  %v1199 = vsel %vm1161, %v1145, 0
  %v1202 = vsel %vm1161, %v1146, 0
  %v1205 = vsel %vm1161, %v1147, 0
  %v1208 = vsel %vm1161, %v1148, 0
  %v1211 = vsel %vm1161, %v1149, 0
  %v1214 = vsel %vm1161, %v1150, 0
  %v1217 = vsel %vm1161, %v1151, 0
  %v1220 = vsel %vm1161, %v1152, 0
  %1222 = vmatprep.subr.mxu0 0.0
  %1223 = vmatpush1.msra.mxu0 %v1153
  %1224 = vmatprep.subr.mxu0 0.0
  %1225 = vmatpush1.msra.mxu0 %v1154
  %1226 = vmatprep.subr.mxu0 0.0
  %1227 = vmatpush1.msra.mxu0 %v1155
  %1228 = vmatprep.subr.mxu0 0.0
  %1229 = vmatpush1.msra.mxu0 %v1156
  %1230 = vmatprep.subr.mxu0 0.0
  %1231 = vmatpush1.msra.mxu0 %v1157
  %1232 = vmatprep.subr.mxu0 0.0
  %1233 = vmatpush1.msra.mxu0 %v1158
  %1234 = vmatprep.subr.mxu0 0.0
  %1235 = vmatpush1.msra.mxu0 %v1159
  %1236 = vmatprep.subr.mxu0 0.0
  %1237 = vmatpush1.msra.mxu0 %v1160
  %1238 = vmatprep.subr.mxu0 0.0
  %1239 = vmatpush1.msra.mxu0 0.0
  %1240 = vmatprep.subr.mxu0 0.0
  %1241 = vmatpush1.msra.mxu0 0.0
  %1242 = vmatprep.subr.mxu0 0.0
  %1243 = vmatpush1.msra.mxu0 0.0
  %1244 = vmatprep.subr.mxu0 0.0
  %1245 = vmatpush1.msra.mxu0 0.0
  %1246 = vmatprep.subr.mxu0 0.0
  %1247 = vmatpush1.msra.mxu0 0.0
  %1248 = vmatprep.subr.mxu0 0.0
  %1249 = vmatpush1.msra.mxu0 0.0
  %1250 = vmatprep.subr.mxu0 0.0
  %1251 = vmatpush1.msra.mxu0 0.0
  %1252 = vmatprep.subr.mxu0 0.0
  %1253 = vmatpush1.msra.mxu0 0.0
  %1254 = vmatprep.subr.mxu0 0.0
  %1255 = vmatpush1.msra.mxu0 0.0
  %1256 = vmatprep.subr.mxu0 0.0
  %1257 = vmatpush1.msra.mxu0 0.0
  %1258 = vmatprep.subr.mxu0 0.0
  %1259 = vmatpush1.msra.mxu0 0.0
  %1260 = vmatprep.subr.mxu0 0.0
  %1261 = vmatpush1.msra.mxu0 0.0
  %1262 = vmatprep.subr.mxu0 0.0
  %1263 = vmatpush1.msra.mxu0 0.0
  %1264 = vmatprep.subr.mxu0 0.0
  %1265 = vmatpush1.msra.mxu0 0.0
  %1266 = vmatprep.subr.mxu0 0.0
  %1267 = vmatpush1.msra.mxu0 0.0
  %1268 = vmatprep.subr.mxu0 0.0
  %1269 = vmatpush1.msra.mxu0 0.0
  %1270 = vmatprep.subr.mxu0 0.0
  %1271 = vmatpush1.msra.mxu0 0.0
  %1272 = vmatprep.subr.mxu0 0.0
  %1273 = vmatpush1.msra.mxu0 0.0
  %1274 = vmatprep.subr.mxu0 0.0
  %1275 = vmatpush1.msra.mxu0 0.0
  %1276 = vmatprep.subr.mxu0 0.0
  %1277 = vmatpush1.msra.mxu0 0.0
  %1278 = vmatprep.subr.mxu0 0.0
  %1279 = vmatpush1.msra.mxu0 0.0
  %1280 = vmatprep.subr.mxu0 0.0
  %1281 = vmatpush1.msra.mxu0 0.0
  %1282 = vmatprep.subr.mxu0 0.0
  %1283 = vmatpush1.msra.mxu0 0.0
  %1284 = vmatprep.subr.mxu0 0.0
  %1285 = vmatpush1.msra.mxu0 0.0
  %1286 = vmatprep.mubr.f32.mxu0 0.0
  %1287 = vmatmul.mubr.f32.gmra.mrb[0].mxu0 %v1163
  %v1288 = vpop.f32.mrb[0].mxu0
  %v1289 = vadd.f32 0.0, %v1288
  %v1290 = vpop.f32.mrb[0].mxu0
  %1291 = vmatprep.mubr.f32.mxu0 0.0
  %1292 = vmatmul.mubr.f32.gmra.mrb[0].mxu0 %v1166
  %v1293 = vpop.f32.mrb[0].mxu0
  %v1294 = vadd.f32 0.0, %v1293
  %v1295 = vpop.f32.mrb[0].mxu0
  %1296 = vmatprep.mubr.f32.mxu0 0.0
  %1297 = vmatmul.mubr.f32.gmra.mrb[0].mxu0 %v1169
  %v1298 = vpop.f32.mrb[0].mxu0
  %v1299 = vadd.f32 0.0, %v1298
  %v1300 = vpop.f32.mrb[0].mxu0
  %1301 = vmatprep.mubr.f32.mxu0 0.0
  %1302 = vmatmul.mubr.f32.gmra.mrb[0].mxu0 %v1172
  %v1303 = vpop.f32.mrb[0].mxu0
  %v1304 = vadd.f32 0.0, %v1303
  %v1305 = vpop.f32.mrb[0].mxu0
  %1306 = vmatprep.mubr.f32.mxu0 0.0
  %1307 = vmatmul.mubr.f32.gmra.mrb[0].mxu0 %v1175
  %v1308 = vpop.f32.mrb[0].mxu0
  %v1309 = vadd.f32 0.0, %v1308
  %v1310 = vpop.f32.mrb[0].mxu0
  %1311 = vmatprep.mubr.f32.mxu0 0.0
  %1312 = vmatmul.mubr.f32.gmra.mrb[0].mxu0 %v1178
  %v1313 = vpop.f32.mrb[0].mxu0
  %v1314 = vadd.f32 0.0, %v1313
  %v1315 = vpop.f32.mrb[0].mxu0
  %1316 = vmatprep.mubr.f32.mxu0 0.0
  %1317 = vmatmul.mubr.f32.gmra.mrb[0].mxu0 %v1181
  %v1318 = vpop.f32.mrb[0].mxu0
  %v1319 = vadd.f32 0.0, %v1318
  %v1320 = vpop.f32.mrb[0].mxu0
  %1321 = vmatprep.mubr.f32.mxu0 0.0
  %1322 = vmatmul.mubr.f32.gmra.mrb[0].mxu0 %v1184
  %v1323 = vpop.f32.mrb[0].mxu0
  %v1324 = vadd.f32 0.0, %v1323
  %v1325 = vpop.f32.mrb[0].mxu0
  %1326 = vmatprep.mubr.f32.mxu0 0.0
  %1327 = vmatmul.mubr.f32.gmra.mrb[0].mxu0 %v1187
  %v1328 = vpop.f32.mrb[0].mxu0
  %v1329 = vadd.f32 0.0, %v1328
  %v1330 = vpop.f32.mrb[0].mxu0
  %1331 = vmatprep.mubr.f32.mxu0 0.0
  %1332 = vmatmul.mubr.f32.gmra.mrb[0].mxu0 %v1190
  %v1333 = vpop.f32.mrb[0].mxu0
  %v1334 = vadd.f32 0.0, %v1333
  %v1335 = vpop.f32.mrb[0].mxu0
  %1336 = vmatprep.mubr.f32.mxu0 0.0
  %1337 = vmatmul.mubr.f32.gmra.mrb[0].mxu0 %v1193
  %v1338 = vpop.f32.mrb[0].mxu0
  %v1339 = vadd.f32 0.0, %v1338
  %v1340 = vpop.f32.mrb[0].mxu0
  %1341 = vmatprep.mubr.f32.mxu0 0.0
  %1342 = vmatmul.mubr.f32.gmra.mrb[0].mxu0 %v1196
  %v1343 = vpop.f32.mrb[0].mxu0
  %v1344 = vadd.f32 0.0, %v1343
  %v1345 = vpop.f32.mrb[0].mxu0
  %1346 = vmatprep.mubr.f32.mxu0 0.0
  %1347 = vmatmul.mubr.f32.gmra.mrb[0].mxu0 %v1199
  %v1348 = vpop.f32.mrb[0].mxu0
  %v1349 = vadd.f32 0.0, %v1348
  %v1350 = vpop.f32.mrb[0].mxu0
  %1351 = vmatprep.mubr.f32.mxu0 0.0
  %1352 = vmatmul.mubr.f32.gmra.mrb[0].mxu0 %v1202
  %v1353 = vpop.f32.mrb[0].mxu0
  %v1354 = vadd.f32 0.0, %v1353
  %v1355 = vpop.f32.mrb[0].mxu0
  %1356 = vmatprep.mubr.f32.mxu0 0.0
  %1357 = vmatmul.mubr.f32.gmra.mrb[0].mxu0 %v1205
  %v1358 = vpop.f32.mrb[0].mxu0
  %v1359 = vadd.f32 0.0, %v1358
  %v1360 = vpop.f32.mrb[0].mxu0
  %1361 = vmatprep.mubr.f32.mxu0 0.0
  %1362 = vmatmul.mubr.f32.gmra.mrb[0].mxu0 %v1208
  %v1363 = vpop.f32.mrb[0].mxu0
  %v1364 = vadd.f32 0.0, %v1363
  %v1365 = vpop.f32.mrb[0].mxu0
  %1366 = vmatprep.mubr.f32.mxu0 0.0
  %1367 = vmatmul.mubr.f32.gmra.mrb[0].mxu0 %v1211
  %v1368 = vpop.f32.mrb[0].mxu0
  %v1369 = vadd.f32 0.0, %v1368
  %v1370 = vpop.f32.mrb[0].mxu0
  %1371 = vmatprep.mubr.f32.mxu0 0.0
  %1372 = vmatmul.mubr.f32.gmra.mrb[0].mxu0 %v1214
  %v1373 = vpop.f32.mrb[0].mxu0
  %v1374 = vadd.f32 0.0, %v1373
  %v1375 = vpop.f32.mrb[0].mxu0
  %1376 = vmatprep.mubr.f32.mxu0 0.0
  %1377 = vmatmul.mubr.f32.gmra.mrb[0].mxu0 %v1217
  %v1378 = vpop.f32.mrb[0].mxu0
  %v1379 = vadd.f32 0.0, %v1378
  %v1380 = vpop.f32.mrb[0].mxu0
  %1381 = vmatprep.mubr.f32.mxu0 0.0
  %1382 = vmatmul.mubr.f32.gmra.mrb[0].mxu0 %v1220
  %v1383 = vpop.f32.mrb[0].mxu0
  %v1384 = vadd.f32 0.0, %v1383
  %v1385 = vpop.f32.mrb[0].mxu0
  %1386 = vdwg.mxu0
  %v1387 = vmul.f32 %v1289, 0.125
  %v1388 = vmul.f32 %v1294, 0.125
  %v1389 = vmul.f32 %v1299, 0.125
  %v1390 = vmul.f32 %v1304, 0.125
  %v1391 = vmul.f32 %v1309, 0.125
  %v1392 = vmul.f32 %v1314, 0.125
  %v1393 = vmul.f32 %v1319, 0.125
  %v1394 = vmul.f32 %v1324, 0.125
  %v1395 = vmul.f32 %v1329, 0.125
  %v1396 = vmul.f32 %v1334, 0.125
  %v1397 = vmul.f32 %v1339, 0.125
  %v1398 = vmul.f32 %v1344, 0.125
  %v1399 = vmul.f32 %v1349, 0.125
  %v1400 = vmul.f32 %v1354, 0.125
  %v1401 = vmul.f32 %v1359, 0.125
  %v1402 = vmul.f32 %v1364, 0.125
  %v1403 = vmul.f32 %v1369, 0.125
  %v1404 = vmul.f32 %v1374, 0.125
  %v1405 = vmul.f32 %v1379, 0.125
  %v1406 = vmul.f32 %v1384, 0.125
  %v1407 = vld [vmem:[%s2] sm:$0xff]
  %v1408 = vld [vmem:[%s2 + $0x8] sm:$0xff]
  %v1409 = vld [vmem:[%s2 + $0x10] sm:$0xff]
  %v1410 = vld [vmem:[%s2 + $0x18] sm:$0xff]
  %v1411 = vld [vmem:[%s3] sm:$0x1]
  %v1413 = vlaneseq
  %v1414 = vshrl.u32 %v1413, 7
  %v1415 = vsub.s32 0, %v1414
  %v1416 = vrot.slane %v1411, %v1415
  %vm1418 = vcmask 261120
  %v1420 = vsel %vm1418, %v1387, 0
  %v1423 = vsel %vm1418, %v1388, 0
  %v1426 = vsel %vm1418, %v1389, 0
  %v1429 = vsel %vm1418, %v1390, 0
  %v1432 = vsel %vm1418, %v1391, 0
  %v1435 = vsel %vm1418, %v1392, 0
  %v1438 = vsel %vm1418, %v1393, 0
  %v1441 = vsel %vm1418, %v1394, 0
  %v1444 = vsel %vm1418, %v1395, 0
  %v1447 = vsel %vm1418, %v1396, 0
  %v1450 = vsel %vm1418, %v1397, 0
  %v1453 = vsel %vm1418, %v1398, 0
  %v1456 = vsel %vm1418, %v1399, 0
  %v1459 = vsel %vm1418, %v1400, 0
  %v1462 = vsel %vm1418, %v1401, 0
  %v1465 = vsel %vm1418, %v1402, 0
  %v1468 = vsel %vm1418, %v1403, 0
  %v1471 = vsel %vm1418, %v1404, 0
  %v1474 = vsel %vm1418, %v1405, 0
  %v1477 = vsel %vm1418, %v1406, 0
  %1479 = vmatprep.subr.mxu0 0.0
  %1480 = vmatpush1.msra.mxu0 %v1407
  %1481 = vmatprep.subr.mxu0 0.0
  %1482 = vmatpush1.msra.mxu0 %v1408
  %1483 = vmatprep.subr.mxu0 0.0
  %1484 = vmatpush1.msra.mxu0 %v1409
  %1485 = vmatprep.subr.mxu0 0.0
  %1486 = vmatpush1.msra.mxu0 %v1410
  %1487 = vmatprep.subr.mxu0 0.0
  %1488 = vmatpush1.msra.mxu0 0.0
  %1489 = vmatprep.subr.mxu0 0.0
  %1490 = vmatpush1.msra.mxu0 0.0
  %1491 = vmatprep.subr.mxu0 0.0
  %1492 = vmatpush1.msra.mxu0 0.0
  %1493 = vmatprep.subr.mxu0 0.0
  %1494 = vmatpush1.msra.mxu0 0.0
  %1495 = vmatprep.subr.mxu0 0.0
  %1496 = vmatpush1.msra.mxu0 0.0
  %1497 = vmatprep.subr.mxu0 0.0
  %1498 = vmatpush1.msra.mxu0 0.0
  %1499 = vmatprep.subr.mxu0 0.0
  %1500 = vmatpush1.msra.mxu0 0.0
  %1501 = vmatprep.subr.mxu0 0.0
  %1502 = vmatpush1.msra.mxu0 0.0
  %1503 = vmatprep.subr.mxu0 0.0
  %1504 = vmatpush1.msra.mxu0 0.0
  %1505 = vmatprep.subr.mxu0 0.0
  %1506 = vmatpush1.msra.mxu0 0.0
  %1507 = vmatprep.subr.mxu0 0.0
  %1508 = vmatpush1.msra.mxu0 0.0
  %1509 = vmatprep.subr.mxu0 0.0
  %1510 = vmatpush1.msra.mxu0 0.0
  %1511 = vmatprep.subr.mxu0 0.0
  %1512 = vmatpush1.msra.mxu0 0.0
  %1513 = vmatprep.subr.mxu0 0.0
  %1514 = vmatpush1.msra.mxu0 0.0
  %1515 = vmatprep.subr.mxu0 0.0
  %1516 = vmatpush1.msra.mxu0 0.0
  %1517 = vmatprep.subr.mxu0 0.0
  %1518 = vmatpush1.msra.mxu0 0.0
  %1519 = vmatprep.subr.mxu0 0.0
  %1520 = vmatpush1.msra.mxu0 0.0
  %1521 = vmatprep.subr.mxu0 0.0
  %1522 = vmatpush1.msra.mxu0 0.0
  %1523 = vmatprep.subr.mxu0 0.0
  %1524 = vmatpush1.msra.mxu0 0.0
  %1525 = vmatprep.subr.mxu0 0.0
  %1526 = vmatpush1.msra.mxu0 0.0
  %1527 = vmatprep.subr.mxu0 0.0
  %1528 = vmatpush1.msra.mxu0 0.0
  %1529 = vmatprep.subr.mxu0 0.0
  %1530 = vmatpush1.msra.mxu0 0.0
  %1531 = vmatprep.subr.mxu0 0.0
  %1532 = vmatpush1.msra.mxu0 0.0
  %1533 = vmatprep.subr.mxu0 0.0
  %1534 = vmatpush1.msra.mxu0 0.0
  %1535 = vmatprep.subr.mxu0 0.0
  %1536 = vmatpush1.msra.mxu0 0.0
  %1537 = vmatprep.subr.mxu0 0.0
  %1538 = vmatpush1.msra.mxu0 0.0
  %1539 = vmatprep.subr.mxu0 0.0
  %1540 = vmatpush1.msra.mxu0 0.0
  %1541 = vmatprep.subr.mxu0 0.0
  %1542 = vmatpush1.msra.mxu0 0.0
  %1543 = vmatprep.mubr.f32.mxu0 0.0
  %1544 = vmatmul.mubr.f32.gmra.mrb[0].mxu0 %v1420
  %v1545 = vpop.f32.mrb[0].mxu0
  %v1546 = vadd.f32 %v1416, %v1545
  %v1547 = vpop.f32.mrb[0].mxu0
  %1548 = vmatprep.mubr.f32.mxu0 0.0
  %1549 = vmatmul.mubr.f32.gmra.mrb[0].mxu0 %v1423
  %v1550 = vpop.f32.mrb[0].mxu0
  %v1551 = vadd.f32 %v1416, %v1550
  %v1552 = vpop.f32.mrb[0].mxu0
  %1553 = vmatprep.mubr.f32.mxu0 0.0
  %1554 = vmatmul.mubr.f32.gmra.mrb[0].mxu0 %v1426
  %v1555 = vpop.f32.mrb[0].mxu0
  %v1556 = vadd.f32 %v1416, %v1555
  %v1557 = vpop.f32.mrb[0].mxu0
  %1558 = vmatprep.mubr.f32.mxu0 0.0
  %1559 = vmatmul.mubr.f32.gmra.mrb[0].mxu0 %v1429
  %v1560 = vpop.f32.mrb[0].mxu0
  %v1561 = vadd.f32 %v1416, %v1560
  %v1562 = vpop.f32.mrb[0].mxu0
  %1563 = vmatprep.mubr.f32.mxu0 0.0
  %1564 = vmatmul.mubr.f32.gmra.mrb[0].mxu0 %v1432
  %v1565 = vpop.f32.mrb[0].mxu0
  %v1566 = vadd.f32 %v1416, %v1565
  %v1567 = vpop.f32.mrb[0].mxu0
  %1568 = vmatprep.mubr.f32.mxu0 0.0
  %1569 = vmatmul.mubr.f32.gmra.mrb[0].mxu0 %v1435
  %v1570 = vpop.f32.mrb[0].mxu0
  %v1571 = vadd.f32 %v1416, %v1570
  %v1572 = vpop.f32.mrb[0].mxu0
  %1573 = vmatprep.mubr.f32.mxu0 0.0
  %1574 = vmatmul.mubr.f32.gmra.mrb[0].mxu0 %v1438
  %v1575 = vpop.f32.mrb[0].mxu0
  %v1576 = vadd.f32 %v1416, %v1575
  %v1577 = vpop.f32.mrb[0].mxu0
  %1578 = vmatprep.mubr.f32.mxu0 0.0
  %1579 = vmatmul.mubr.f32.gmra.mrb[0].mxu0 %v1441
  %v1580 = vpop.f32.mrb[0].mxu0
  %v1581 = vadd.f32 %v1416, %v1580
  %v1582 = vpop.f32.mrb[0].mxu0
  %1583 = vmatprep.mubr.f32.mxu0 0.0
  %1584 = vmatmul.mubr.f32.gmra.mrb[0].mxu0 %v1444
  %v1585 = vpop.f32.mrb[0].mxu0
  %v1586 = vadd.f32 %v1416, %v1585
  %v1587 = vpop.f32.mrb[0].mxu0
  %1588 = vmatprep.mubr.f32.mxu0 0.0
  %1589 = vmatmul.mubr.f32.gmra.mrb[0].mxu0 %v1447
  %v1590 = vpop.f32.mrb[0].mxu0
  %v1591 = vadd.f32 %v1416, %v1590
  %v1592 = vpop.f32.mrb[0].mxu0
  %1593 = vmatprep.mubr.f32.mxu0 0.0
  %1594 = vmatmul.mubr.f32.gmra.mrb[0].mxu0 %v1450
  %v1595 = vpop.f32.mrb[0].mxu0
  %v1596 = vadd.f32 %v1416, %v1595
  %v1597 = vpop.f32.mrb[0].mxu0
  %1598 = vmatprep.mubr.f32.mxu0 0.0
  %1599 = vmatmul.mubr.f32.gmra.mrb[0].mxu0 %v1453
  %v1600 = vpop.f32.mrb[0].mxu0
  %v1601 = vadd.f32 %v1416, %v1600
  %v1602 = vpop.f32.mrb[0].mxu0
  %1603 = vmatprep.mubr.f32.mxu0 0.0
  %1604 = vmatmul.mubr.f32.gmra.mrb[0].mxu0 %v1456
  %v1605 = vpop.f32.mrb[0].mxu0
  %v1606 = vadd.f32 %v1416, %v1605
  %v1607 = vpop.f32.mrb[0].mxu0
  %1608 = vmatprep.mubr.f32.mxu0 0.0
  %1609 = vmatmul.mubr.f32.gmra.mrb[0].mxu0 %v1459
  %v1610 = vpop.f32.mrb[0].mxu0
  %v1611 = vadd.f32 %v1416, %v1610
  %v1612 = vpop.f32.mrb[0].mxu0
  %1613 = vmatprep.mubr.f32.mxu0 0.0
  %1614 = vmatmul.mubr.f32.gmra.mrb[0].mxu0 %v1462
  %v1615 = vpop.f32.mrb[0].mxu0
  %v1616 = vadd.f32 %v1416, %v1615
  %v1617 = vpop.f32.mrb[0].mxu0
  %1618 = vmatprep.mubr.f32.mxu0 0.0
  %1619 = vmatmul.mubr.f32.gmra.mrb[0].mxu0 %v1465
  %v1620 = vpop.f32.mrb[0].mxu0
  %v1621 = vadd.f32 %v1416, %v1620
  %v1622 = vpop.f32.mrb[0].mxu0
  %1623 = vmatprep.mubr.f32.mxu0 0.0
  %1624 = vmatmul.mubr.f32.gmra.mrb[0].mxu0 %v1468
  %v1625 = vpop.f32.mrb[0].mxu0
  %v1626 = vadd.f32 %v1416, %v1625
  %v1627 = vpop.f32.mrb[0].mxu0
  %1628 = vmatprep.mubr.f32.mxu0 0.0
  %1629 = vmatmul.mubr.f32.gmra.mrb[0].mxu0 %v1471
  %v1630 = vpop.f32.mrb[0].mxu0
  %v1631 = vadd.f32 %v1416, %v1630
  %v1632 = vpop.f32.mrb[0].mxu0
  %1633 = vmatprep.mubr.f32.mxu0 0.0
  %1634 = vmatmul.mubr.f32.gmra.mrb[0].mxu0 %v1474
  %v1635 = vpop.f32.mrb[0].mxu0
  %v1636 = vadd.f32 %v1416, %v1635
  %v1637 = vpop.f32.mrb[0].mxu0
  %1638 = vmatprep.mubr.f32.mxu0 0.0
  %1639 = vmatmul.mubr.f32.gmra.mrb[0].mxu0 %v1477
  %v1640 = vpop.f32.mrb[0].mxu0
  %v1641 = vadd.f32 %v1416, %v1640
  %v1642 = vpop.f32.mrb[0].mxu0
  %1643 = vdwg.mxu0
  %s1644 = scalar_lea.vmem %s2, 32
  %v1645 = vld [vmem:[%s1644] sm:$0xff]
  %v1646 = vld [vmem:[%s1644 + $0x8] sm:$0xff]
  %v1647 = vld [vmem:[%s1644 + $0x10] sm:$0xff]
  %v1648 = vld [vmem:[%s1644 + $0x18] sm:$0xff]
  %s1649 = scalar_lea.vmem %s3, 1
  %v1650 = vld [vmem:[%s1649] sm:$0x1]
  %v1652 = vlaneseq
  %v1653 = vshrl.u32 %v1652, 7
  %v1654 = vsub.s32 0, %v1653
  %v1655 = vrot.slane %v1650, %v1654
  %1657 = vmatprep.subr.mxu0 0.0
  %1658 = vmatpush1.msra.mxu0 %v1645
  %1659 = vmatprep.subr.mxu0 0.0
  %1660 = vmatpush1.msra.mxu0 %v1646
  %1661 = vmatprep.subr.mxu0 0.0
  %1662 = vmatpush1.msra.mxu0 %v1647
  %1663 = vmatprep.subr.mxu0 0.0
  %1664 = vmatpush1.msra.mxu0 %v1648
  %1665 = vmatprep.subr.mxu0 0.0
  %1666 = vmatpush1.msra.mxu0 0.0
  %1667 = vmatprep.subr.mxu0 0.0
  %1668 = vmatpush1.msra.mxu0 0.0
  %1669 = vmatprep.subr.mxu0 0.0
  %1670 = vmatpush1.msra.mxu0 0.0
  %1671 = vmatprep.subr.mxu0 0.0
  %1672 = vmatpush1.msra.mxu0 0.0
  %1673 = vmatprep.subr.mxu0 0.0
  %1674 = vmatpush1.msra.mxu0 0.0
  %1675 = vmatprep.subr.mxu0 0.0
  %1676 = vmatpush1.msra.mxu0 0.0
  %1677 = vmatprep.subr.mxu0 0.0
  %1678 = vmatpush1.msra.mxu0 0.0
  %1679 = vmatprep.subr.mxu0 0.0
  %1680 = vmatpush1.msra.mxu0 0.0
  %1681 = vmatprep.subr.mxu0 0.0
  %1682 = vmatpush1.msra.mxu0 0.0
  %1683 = vmatprep.subr.mxu0 0.0
  %1684 = vmatpush1.msra.mxu0 0.0
  %1685 = vmatprep.subr.mxu0 0.0
  %1686 = vmatpush1.msra.mxu0 0.0
  %1687 = vmatprep.subr.mxu0 0.0
  %1688 = vmatpush1.msra.mxu0 0.0
  %1689 = vmatprep.subr.mxu0 0.0
  %1690 = vmatpush1.msra.mxu0 0.0
  %1691 = vmatprep.subr.mxu0 0.0
  %1692 = vmatpush1.msra.mxu0 0.0
  %1693 = vmatprep.subr.mxu0 0.0
  %1694 = vmatpush1.msra.mxu0 0.0
  %1695 = vmatprep.subr.mxu0 0.0
  %1696 = vmatpush1.msra.mxu0 0.0
  %1697 = vmatprep.subr.mxu0 0.0
  %1698 = vmatpush1.msra.mxu0 0.0
  %1699 = vmatprep.subr.mxu0 0.0
  %1700 = vmatpush1.msra.mxu0 0.0
  %1701 = vmatprep.subr.mxu0 0.0
  %1702 = vmatpush1.msra.mxu0 0.0
  %1703 = vmatprep.subr.mxu0 0.0
  %1704 = vmatpush1.msra.mxu0 0.0
  %1705 = vmatprep.subr.mxu0 0.0
  %1706 = vmatpush1.msra.mxu0 0.0
  %1707 = vmatprep.subr.mxu0 0.0
  %1708 = vmatpush1.msra.mxu0 0.0
  %1709 = vmatprep.subr.mxu0 0.0
  %1710 = vmatpush1.msra.mxu0 0.0
  %1711 = vmatprep.subr.mxu0 0.0
  %1712 = vmatpush1.msra.mxu0 0.0
  %1713 = vmatprep.subr.mxu0 0.0
  %1714 = vmatpush1.msra.mxu0 0.0
  %1715 = vmatprep.subr.mxu0 0.0
  %1716 = vmatpush1.msra.mxu0 0.0
  %1717 = vmatprep.subr.mxu0 0.0
  %1718 = vmatpush1.msra.mxu0 0.0
  %1719 = vmatprep.subr.mxu0 0.0
  %1720 = vmatpush1.msra.mxu0 0.0
  %1721 = vmatprep.mubr.f32.mxu0 0.0
  %1722 = vmatmul.mubr.f32.gmra.mrb[0].mxu0 %v1477
  %v1723 = vpop.f32.mrb[0].mxu0
  %v1724 = vadd.f32 %v1655, %v1723
  %v1725 = vpop.f32.mrb[0].mxu0
  %1726 = vdwg.mxu0
  %v1727 = vld [vmem:[%s4] sm:$0xff]
  %v1728 = vld [vmem:[%s4 + $0x8] sm:$0xff]
  %v1729 = vld [vmem:[%s4 + $0x10] sm:$0xff]
  %v1730 = vld [vmem:[%s4 + $0x18] sm:$0xff]
  %v1731 = vld [vmem:[%s5] sm:$0x1]
  %v1732 = vmul.f32 %v1546, 0.5
  %v1733 = vtanh.pop %v1732
  %v1734 = vadd.f32 %v1733, 1.0
  %v1735 = vmul.f32 %v1734, 0.5
  %v1737 = vlaneseq
  %v1738 = vshrl.u32 %v1737, 7
  %v1739 = vsub.s32 0, %v1738
  %v1740 = vrot.slane %v1731, %v1739
  %v1742 = vmul.f32 %v1735, %v1740
  %1744 = vrot.lane.b32.xlu0 %v1742, 64
  %v1745 = vpop.permute.xlu0 %1744
  %v1747 = vadd.f32 %v1546, %v1745
  %v1748 = vtanh.pop %v1747
  %v1749 = vsub.f32 1.0, %v1735
  %1751 = vrot.lane.b32.xlu0 %v1748, 96
  %v1752 = vpop.permute.xlu0 %1751
  %v1754 = vmul.f32 %v1749, %v1752
  %1756 = vrot.lane.b32.xlu0 %v1754, 96
  %v1757 = vpop.permute.xlu0 %1756
  %v1758 = vsel %vm1418, %v1757, 0
  %1760 = vmatprep.subr.mxu0 0.0
  %1761 = vmatpush1.msra.mxu0 %v1727
  %1762 = vmatprep.subr.mxu0 0.0
  %1763 = vmatpush1.msra.mxu0 %v1728
  %1764 = vmatprep.subr.mxu0 0.0
  %1765 = vmatpush1.msra.mxu0 %v1729
  %1766 = vmatprep.subr.mxu0 0.0
  %1767 = vmatpush1.msra.mxu0 %v1730
  %1768 = vmatprep.subr.mxu0 0.0
  %1769 = vmatpush1.msra.mxu0 0.0
  %1770 = vmatprep.subr.mxu0 0.0
  %1771 = vmatpush1.msra.mxu0 0.0
  %1772 = vmatprep.subr.mxu0 0.0
  %1773 = vmatpush1.msra.mxu0 0.0
  %1774 = vmatprep.subr.mxu0 0.0
  %1775 = vmatpush1.msra.mxu0 0.0
  %1776 = vmatprep.subr.mxu0 0.0
  %1777 = vmatpush1.msra.mxu0 0.0
  %1778 = vmatprep.subr.mxu0 0.0
  %1779 = vmatpush1.msra.mxu0 0.0
  %1780 = vmatprep.subr.mxu0 0.0
  %1781 = vmatpush1.msra.mxu0 0.0
  %1782 = vmatprep.subr.mxu0 0.0
  %1783 = vmatpush1.msra.mxu0 0.0
  %1784 = vmatprep.subr.mxu0 0.0
  %1785 = vmatpush1.msra.mxu0 0.0
  %1786 = vmatprep.subr.mxu0 0.0
  %1787 = vmatpush1.msra.mxu0 0.0
  %1788 = vmatprep.subr.mxu0 0.0
  %1789 = vmatpush1.msra.mxu0 0.0
  %1790 = vmatprep.subr.mxu0 0.0
  %1791 = vmatpush1.msra.mxu0 0.0
  %1792 = vmatprep.subr.mxu0 0.0
  %1793 = vmatpush1.msra.mxu0 0.0
  %1794 = vmatprep.subr.mxu0 0.0
  %1795 = vmatpush1.msra.mxu0 0.0
  %1796 = vmatprep.subr.mxu0 0.0
  %1797 = vmatpush1.msra.mxu0 0.0
  %1798 = vmatprep.subr.mxu0 0.0
  %1799 = vmatpush1.msra.mxu0 0.0
  %1800 = vmatprep.subr.mxu0 0.0
  %1801 = vmatpush1.msra.mxu0 0.0
  %1802 = vmatprep.subr.mxu0 0.0
  %1803 = vmatpush1.msra.mxu0 0.0
  %1804 = vmatprep.subr.mxu0 0.0
  %1805 = vmatpush1.msra.mxu0 0.0
  %1806 = vmatprep.subr.mxu0 0.0
  %1807 = vmatpush1.msra.mxu0 0.0
  %1808 = vmatprep.subr.mxu0 0.0
  %1809 = vmatpush1.msra.mxu0 0.0
  %1810 = vmatprep.subr.mxu0 0.0
  %1811 = vmatpush1.msra.mxu0 0.0
  %1812 = vmatprep.subr.mxu0 0.0
  %1813 = vmatpush1.msra.mxu0 0.0
  %1814 = vmatprep.subr.mxu0 0.0
  %1815 = vmatpush1.msra.mxu0 0.0
  %1816 = vmatprep.subr.mxu0 0.0
  %1817 = vmatpush1.msra.mxu0 0.0
  %1818 = vmatprep.subr.mxu0 0.0
  %1819 = vmatpush1.msra.mxu0 0.0
  %1820 = vmatprep.subr.mxu0 0.0
  %1821 = vmatpush1.msra.mxu0 0.0
  %1822 = vmatprep.subr.mxu0 0.0
  %1823 = vmatpush1.msra.mxu0 0.0
  %1824 = vmatprep.mubr.f32.mxu0 0.0
  %1825 = vmatmul.mubr.f32.gmra.mrb[0].mxu0 %v1758
  %v1826 = vpop.f32.mrb[0].mxu0
  %v1827 = vadd.f32 0.0, %v1826
  %v1828 = vpop.f32.mrb[0].mxu0
  %1829 = vdwg.mxu0
  %v1830 = vadd.f32 %v1551, %v1827
  %v1831 = vmul.f32 %v1830, 0.5
  %v1832 = vtanh.pop %v1831
  %v1833 = vadd.f32 %v1832, 1.0
  %v1834 = vmul.f32 %v1833, 0.5
  %1835 = vrot.lane.b32.xlu0 %v1740, 64
  %v1836 = vpop.permute.xlu0 %1835
  %v1838 = vadd.f32 %v1827, %v1836
  %1840 = vrot.lane.b32.xlu0 %v1838, 64
  %v1841 = vpop.permute.xlu0 %1840
  %v1843 = vmul.f32 %v1834, %v1841
  %1845 = vrot.lane.b32.xlu0 %v1843, 64
  %v1846 = vpop.permute.xlu0 %1845
  %v1848 = vadd.f32 %v1551, %v1846
  %v1849 = vtanh.pop %v1848
  %v1850 = vsub.f32 1.0, %v1834
  %1852 = vrot.lane.b32.xlu0 %v1849, 96
  %v1853 = vpop.permute.xlu0 %1852
  %v1855 = vmul.f32 %v1850, %v1853
  %v1856 = vmul.f32 %v1834, %v1754
  %v1857 = vadd.f32 %v1855, %v1856
  %1859 = vrot.lane.b32.xlu0 %v1857, 96
  %v1860 = vpop.permute.xlu0 %1859
  %v1861 = vsel %vm1418, %v1860, 0
  %1863 = vmatprep.subr.mxu0 0.0
  %1864 = vmatpush1.msra.mxu0 %v1727
  %1865 = vmatprep.subr.mxu0 0.0
  %1866 = vmatpush1.msra.mxu0 %v1728
  %1867 = vmatprep.subr.mxu0 0.0
  %1868 = vmatpush1.msra.mxu0 %v1729
  %1869 = vmatprep.subr.mxu0 0.0
  %1870 = vmatpush1.msra.mxu0 %v1730
  %1871 = vmatprep.subr.mxu0 0.0
  %1872 = vmatpush1.msra.mxu0 0.0
  %1873 = vmatprep.subr.mxu0 0.0
  %1874 = vmatpush1.msra.mxu0 0.0
  %1875 = vmatprep.subr.mxu0 0.0
  %1876 = vmatpush1.msra.mxu0 0.0
  %1877 = vmatprep.subr.mxu0 0.0
  %1878 = vmatpush1.msra.mxu0 0.0
  %1879 = vmatprep.subr.mxu0 0.0
  %1880 = vmatpush1.msra.mxu0 0.0
  %1881 = vmatprep.subr.mxu0 0.0
  %1882 = vmatpush1.msra.mxu0 0.0
  %1883 = vmatprep.subr.mxu0 0.0
  %1884 = vmatpush1.msra.mxu0 0.0
  %1885 = vmatprep.subr.mxu0 0.0
  %1886 = vmatpush1.msra.mxu0 0.0
  %1887 = vmatprep.subr.mxu0 0.0
  %1888 = vmatpush1.msra.mxu0 0.0
  %1889 = vmatprep.subr.mxu0 0.0
  %1890 = vmatpush1.msra.mxu0 0.0
  %1891 = vmatprep.subr.mxu0 0.0
  %1892 = vmatpush1.msra.mxu0 0.0
  %1893 = vmatprep.subr.mxu0 0.0
  %1894 = vmatpush1.msra.mxu0 0.0
  %1895 = vmatprep.subr.mxu0 0.0
  %1896 = vmatpush1.msra.mxu0 0.0
  %1897 = vmatprep.subr.mxu0 0.0
  %1898 = vmatpush1.msra.mxu0 0.0
  %1899 = vmatprep.subr.mxu0 0.0
  %1900 = vmatpush1.msra.mxu0 0.0
  %1901 = vmatprep.subr.mxu0 0.0
  %1902 = vmatpush1.msra.mxu0 0.0
  %1903 = vmatprep.subr.mxu0 0.0
  %1904 = vmatpush1.msra.mxu0 0.0
  %1905 = vmatprep.subr.mxu0 0.0
  %1906 = vmatpush1.msra.mxu0 0.0
  %1907 = vmatprep.subr.mxu0 0.0
  %1908 = vmatpush1.msra.mxu0 0.0
  %1909 = vmatprep.subr.mxu0 0.0
  %1910 = vmatpush1.msra.mxu0 0.0
  %1911 = vmatprep.subr.mxu0 0.0
  %1912 = vmatpush1.msra.mxu0 0.0
  %1913 = vmatprep.subr.mxu0 0.0
  %1914 = vmatpush1.msra.mxu0 0.0
  %1915 = vmatprep.subr.mxu0 0.0
  %1916 = vmatpush1.msra.mxu0 0.0
  %1917 = vmatprep.subr.mxu0 0.0
  %1918 = vmatpush1.msra.mxu0 0.0
  %1919 = vmatprep.subr.mxu0 0.0
  %1920 = vmatpush1.msra.mxu0 0.0
  %1921 = vmatprep.subr.mxu0 0.0
  %1922 = vmatpush1.msra.mxu0 0.0
  %1923 = vmatprep.subr.mxu0 0.0
  %1924 = vmatpush1.msra.mxu0 0.0
  %1925 = vmatprep.subr.mxu0 0.0
  %1926 = vmatpush1.msra.mxu0 0.0
  %1927 = vmatprep.mubr.f32.mxu0 0.0
  %1928 = vmatmul.mubr.f32.gmra.mrb[0].mxu0 %v1861
  %v1929 = vpop.f32.mrb[0].mxu0
  %v1930 = vadd.f32 0.0, %v1929
  %v1931 = vpop.f32.mrb[0].mxu0
  %1932 = vdwg.mxu0
  %v1933 = vadd.f32 %v1556, %v1930
  %v1934 = vmul.f32 %v1933, 0.5
  %v1935 = vtanh.pop %v1934
  %v1936 = vadd.f32 %v1935, 1.0
  %v1937 = vmul.f32 %v1936, 0.5
  %v1938 = vadd.f32 %v1930, %v1836
  %1940 = vrot.lane.b32.xlu0 %v1938, 64
  %v1941 = vpop.permute.xlu0 %1940
  %v1943 = vmul.f32 %v1937, %v1941
  %1945 = vrot.lane.b32.xlu0 %v1943, 64
  %v1946 = vpop.permute.xlu0 %1945
  %v1948 = vadd.f32 %v1556, %v1946
  %v1949 = vtanh.pop %v1948
  %v1950 = vsub.f32 1.0, %v1937
  %1952 = vrot.lane.b32.xlu0 %v1949, 96
  %v1953 = vpop.permute.xlu0 %1952
  %v1955 = vmul.f32 %v1950, %v1953
  %v1956 = vmul.f32 %v1937, %v1857
  %v1957 = vadd.f32 %v1955, %v1956
  %1959 = vrot.lane.b32.xlu0 %v1957, 96
  %v1960 = vpop.permute.xlu0 %1959
  %v1961 = vsel %vm1418, %v1960, 0
  %1963 = vmatprep.subr.mxu0 0.0
  %1964 = vmatpush1.msra.mxu0 %v1727
  %1965 = vmatprep.subr.mxu0 0.0
  %1966 = vmatpush1.msra.mxu0 %v1728
  %1967 = vmatprep.subr.mxu0 0.0
  %1968 = vmatpush1.msra.mxu0 %v1729
  %1969 = vmatprep.subr.mxu0 0.0
  %1970 = vmatpush1.msra.mxu0 %v1730
  %1971 = vmatprep.subr.mxu0 0.0
  %1972 = vmatpush1.msra.mxu0 0.0
  %1973 = vmatprep.subr.mxu0 0.0
  %1974 = vmatpush1.msra.mxu0 0.0
  %1975 = vmatprep.subr.mxu0 0.0
  %1976 = vmatpush1.msra.mxu0 0.0
  %1977 = vmatprep.subr.mxu0 0.0
  %1978 = vmatpush1.msra.mxu0 0.0
  %1979 = vmatprep.subr.mxu0 0.0
  %1980 = vmatpush1.msra.mxu0 0.0
  %1981 = vmatprep.subr.mxu0 0.0
  %1982 = vmatpush1.msra.mxu0 0.0
  %1983 = vmatprep.subr.mxu0 0.0
  %1984 = vmatpush1.msra.mxu0 0.0
  %1985 = vmatprep.subr.mxu0 0.0
  %1986 = vmatpush1.msra.mxu0 0.0
  %1987 = vmatprep.subr.mxu0 0.0
  %1988 = vmatpush1.msra.mxu0 0.0
  %1989 = vmatprep.subr.mxu0 0.0
  %1990 = vmatpush1.msra.mxu0 0.0
  %1991 = vmatprep.subr.mxu0 0.0
  %1992 = vmatpush1.msra.mxu0 0.0
  %1993 = vmatprep.subr.mxu0 0.0
  %1994 = vmatpush1.msra.mxu0 0.0
  %1995 = vmatprep.subr.mxu0 0.0
  %1996 = vmatpush1.msra.mxu0 0.0
  %1997 = vmatprep.subr.mxu0 0.0
  %1998 = vmatpush1.msra.mxu0 0.0
  %1999 = vmatprep.subr.mxu0 0.0
  %2000 = vmatpush1.msra.mxu0 0.0
  %2001 = vmatprep.subr.mxu0 0.0
  %2002 = vmatpush1.msra.mxu0 0.0
  %2003 = vmatprep.subr.mxu0 0.0
  %2004 = vmatpush1.msra.mxu0 0.0
  %2005 = vmatprep.subr.mxu0 0.0
  %2006 = vmatpush1.msra.mxu0 0.0
  %2007 = vmatprep.subr.mxu0 0.0
  %2008 = vmatpush1.msra.mxu0 0.0
  %2009 = vmatprep.subr.mxu0 0.0
  %2010 = vmatpush1.msra.mxu0 0.0
  %2011 = vmatprep.subr.mxu0 0.0
  %2012 = vmatpush1.msra.mxu0 0.0
  %2013 = vmatprep.subr.mxu0 0.0
  %2014 = vmatpush1.msra.mxu0 0.0
  %2015 = vmatprep.subr.mxu0 0.0
  %2016 = vmatpush1.msra.mxu0 0.0
  %2017 = vmatprep.subr.mxu0 0.0
  %2018 = vmatpush1.msra.mxu0 0.0
  %2019 = vmatprep.subr.mxu0 0.0
  %2020 = vmatpush1.msra.mxu0 0.0
  %2021 = vmatprep.subr.mxu0 0.0
  %2022 = vmatpush1.msra.mxu0 0.0
  %2023 = vmatprep.subr.mxu0 0.0
  %2024 = vmatpush1.msra.mxu0 0.0
  %2025 = vmatprep.subr.mxu0 0.0
  %2026 = vmatpush1.msra.mxu0 0.0
  %2027 = vmatprep.mubr.f32.mxu0 0.0
  %2028 = vmatmul.mubr.f32.gmra.mrb[0].mxu0 %v1961
  %v2029 = vpop.f32.mrb[0].mxu0
  %v2030 = vadd.f32 0.0, %v2029
  %v2031 = vpop.f32.mrb[0].mxu0
  %2032 = vdwg.mxu0
  %v2033 = vadd.f32 %v1561, %v2030
  %v2034 = vmul.f32 %v2033, 0.5
  %v2035 = vtanh.pop %v2034
  %v2036 = vadd.f32 %v2035, 1.0
  %v2037 = vmul.f32 %v2036, 0.5
  %v2038 = vadd.f32 %v2030, %v1836
  %2040 = vrot.lane.b32.xlu0 %v2038, 64
  %v2041 = vpop.permute.xlu0 %2040
  %v2043 = vmul.f32 %v2037, %v2041
  %2045 = vrot.lane.b32.xlu0 %v2043, 64
  %v2046 = vpop.permute.xlu0 %2045
  %v2048 = vadd.f32 %v1561, %v2046
  %v2049 = vtanh.pop %v2048
  %v2050 = vsub.f32 1.0, %v2037
  %2052 = vrot.lane.b32.xlu0 %v2049, 96
  %v2053 = vpop.permute.xlu0 %2052
  %v2055 = vmul.f32 %v2050, %v2053
  %v2056 = vmul.f32 %v2037, %v1957
  %v2057 = vadd.f32 %v2055, %v2056
  %2059 = vrot.lane.b32.xlu0 %v2057, 96
  %v2060 = vpop.permute.xlu0 %2059
  %v2061 = vsel %vm1418, %v2060, 0
  %2063 = vmatprep.subr.mxu0 0.0
  %2064 = vmatpush1.msra.mxu0 %v1727
  %2065 = vmatprep.subr.mxu0 0.0
  %2066 = vmatpush1.msra.mxu0 %v1728
  %2067 = vmatprep.subr.mxu0 0.0
  %2068 = vmatpush1.msra.mxu0 %v1729
  %2069 = vmatprep.subr.mxu0 0.0
  %2070 = vmatpush1.msra.mxu0 %v1730
  %2071 = vmatprep.subr.mxu0 0.0
  %2072 = vmatpush1.msra.mxu0 0.0
  %2073 = vmatprep.subr.mxu0 0.0
  %2074 = vmatpush1.msra.mxu0 0.0
  %2075 = vmatprep.subr.mxu0 0.0
  %2076 = vmatpush1.msra.mxu0 0.0
  %2077 = vmatprep.subr.mxu0 0.0
  %2078 = vmatpush1.msra.mxu0 0.0
  %2079 = vmatprep.subr.mxu0 0.0
  %2080 = vmatpush1.msra.mxu0 0.0
  %2081 = vmatprep.subr.mxu0 0.0
  %2082 = vmatpush1.msra.mxu0 0.0
  %2083 = vmatprep.subr.mxu0 0.0
  %2084 = vmatpush1.msra.mxu0 0.0
  %2085 = vmatprep.subr.mxu0 0.0
  %2086 = vmatpush1.msra.mxu0 0.0
  %2087 = vmatprep.subr.mxu0 0.0
  %2088 = vmatpush1.msra.mxu0 0.0
  %2089 = vmatprep.subr.mxu0 0.0
  %2090 = vmatpush1.msra.mxu0 0.0
  %2091 = vmatprep.subr.mxu0 0.0
  %2092 = vmatpush1.msra.mxu0 0.0
  %2093 = vmatprep.subr.mxu0 0.0
  %2094 = vmatpush1.msra.mxu0 0.0
  %2095 = vmatprep.subr.mxu0 0.0
  %2096 = vmatpush1.msra.mxu0 0.0
  %2097 = vmatprep.subr.mxu0 0.0
  %2098 = vmatpush1.msra.mxu0 0.0
  %2099 = vmatprep.subr.mxu0 0.0
  %2100 = vmatpush1.msra.mxu0 0.0
  %2101 = vmatprep.subr.mxu0 0.0
  %2102 = vmatpush1.msra.mxu0 0.0
  %2103 = vmatprep.subr.mxu0 0.0
  %2104 = vmatpush1.msra.mxu0 0.0
  %2105 = vmatprep.subr.mxu0 0.0
  %2106 = vmatpush1.msra.mxu0 0.0
  %2107 = vmatprep.subr.mxu0 0.0
  %2108 = vmatpush1.msra.mxu0 0.0
  %2109 = vmatprep.subr.mxu0 0.0
  %2110 = vmatpush1.msra.mxu0 0.0
  %2111 = vmatprep.subr.mxu0 0.0
  %2112 = vmatpush1.msra.mxu0 0.0
  %2113 = vmatprep.subr.mxu0 0.0
  %2114 = vmatpush1.msra.mxu0 0.0
  %2115 = vmatprep.subr.mxu0 0.0
  %2116 = vmatpush1.msra.mxu0 0.0
  %2117 = vmatprep.subr.mxu0 0.0
  %2118 = vmatpush1.msra.mxu0 0.0
  %2119 = vmatprep.subr.mxu0 0.0
  %2120 = vmatpush1.msra.mxu0 0.0
  %2121 = vmatprep.subr.mxu0 0.0
  %2122 = vmatpush1.msra.mxu0 0.0
  %2123 = vmatprep.subr.mxu0 0.0
  %2124 = vmatpush1.msra.mxu0 0.0
  %2125 = vmatprep.subr.mxu0 0.0
  %2126 = vmatpush1.msra.mxu0 0.0
  %2127 = vmatprep.mubr.f32.mxu0 0.0
  %2128 = vmatmul.mubr.f32.gmra.mrb[0].mxu0 %v2061
  %v2129 = vpop.f32.mrb[0].mxu0
  %v2130 = vadd.f32 0.0, %v2129
  %v2131 = vpop.f32.mrb[0].mxu0
  %2132 = vdwg.mxu0
  %v2133 = vadd.f32 %v1566, %v2130
  %v2134 = vmul.f32 %v2133, 0.5
  %v2135 = vtanh.pop %v2134
  %v2136 = vadd.f32 %v2135, 1.0
  %v2137 = vmul.f32 %v2136, 0.5
  %v2138 = vadd.f32 %v2130, %v1836
  %2140 = vrot.lane.b32.xlu0 %v2138, 64
  %v2141 = vpop.permute.xlu0 %2140
  %v2143 = vmul.f32 %v2137, %v2141
  %2145 = vrot.lane.b32.xlu0 %v2143, 64
  %v2146 = vpop.permute.xlu0 %2145
  %v2148 = vadd.f32 %v1566, %v2146
  %v2149 = vtanh.pop %v2148
  %v2150 = vsub.f32 1.0, %v2137
  %2152 = vrot.lane.b32.xlu0 %v2149, 96
  %v2153 = vpop.permute.xlu0 %2152
  %v2155 = vmul.f32 %v2150, %v2153
  %v2156 = vmul.f32 %v2137, %v2057
  %v2157 = vadd.f32 %v2155, %v2156
  %2159 = vrot.lane.b32.xlu0 %v2157, 96
  %v2160 = vpop.permute.xlu0 %2159
  %v2161 = vsel %vm1418, %v2160, 0
  %2163 = vmatprep.subr.mxu0 0.0
  %2164 = vmatpush1.msra.mxu0 %v1727
  %2165 = vmatprep.subr.mxu0 0.0
  %2166 = vmatpush1.msra.mxu0 %v1728
  %2167 = vmatprep.subr.mxu0 0.0
  %2168 = vmatpush1.msra.mxu0 %v1729
  %2169 = vmatprep.subr.mxu0 0.0
  %2170 = vmatpush1.msra.mxu0 %v1730
  %2171 = vmatprep.subr.mxu0 0.0
  %2172 = vmatpush1.msra.mxu0 0.0
  %2173 = vmatprep.subr.mxu0 0.0
  %2174 = vmatpush1.msra.mxu0 0.0
  %2175 = vmatprep.subr.mxu0 0.0
  %2176 = vmatpush1.msra.mxu0 0.0
  %2177 = vmatprep.subr.mxu0 0.0
  %2178 = vmatpush1.msra.mxu0 0.0
  %2179 = vmatprep.subr.mxu0 0.0
  %2180 = vmatpush1.msra.mxu0 0.0
  %2181 = vmatprep.subr.mxu0 0.0
  %2182 = vmatpush1.msra.mxu0 0.0
  %2183 = vmatprep.subr.mxu0 0.0
  %2184 = vmatpush1.msra.mxu0 0.0
  %2185 = vmatprep.subr.mxu0 0.0
  %2186 = vmatpush1.msra.mxu0 0.0
  %2187 = vmatprep.subr.mxu0 0.0
  %2188 = vmatpush1.msra.mxu0 0.0
  %2189 = vmatprep.subr.mxu0 0.0
  %2190 = vmatpush1.msra.mxu0 0.0
  %2191 = vmatprep.subr.mxu0 0.0
  %2192 = vmatpush1.msra.mxu0 0.0
  %2193 = vmatprep.subr.mxu0 0.0
  %2194 = vmatpush1.msra.mxu0 0.0
  %2195 = vmatprep.subr.mxu0 0.0
  %2196 = vmatpush1.msra.mxu0 0.0
  %2197 = vmatprep.subr.mxu0 0.0
  %2198 = vmatpush1.msra.mxu0 0.0
  %2199 = vmatprep.subr.mxu0 0.0
  %2200 = vmatpush1.msra.mxu0 0.0
  %2201 = vmatprep.subr.mxu0 0.0
  %2202 = vmatpush1.msra.mxu0 0.0
  %2203 = vmatprep.subr.mxu0 0.0
  %2204 = vmatpush1.msra.mxu0 0.0
  %2205 = vmatprep.subr.mxu0 0.0
  %2206 = vmatpush1.msra.mxu0 0.0
  %2207 = vmatprep.subr.mxu0 0.0
  %2208 = vmatpush1.msra.mxu0 0.0
  %2209 = vmatprep.subr.mxu0 0.0
  %2210 = vmatpush1.msra.mxu0 0.0
  %2211 = vmatprep.subr.mxu0 0.0
  %2212 = vmatpush1.msra.mxu0 0.0
  %2213 = vmatprep.subr.mxu0 0.0
  %2214 = vmatpush1.msra.mxu0 0.0
  %2215 = vmatprep.subr.mxu0 0.0
  %2216 = vmatpush1.msra.mxu0 0.0
  %2217 = vmatprep.subr.mxu0 0.0
  %2218 = vmatpush1.msra.mxu0 0.0
  %2219 = vmatprep.subr.mxu0 0.0
  %2220 = vmatpush1.msra.mxu0 0.0
  %2221 = vmatprep.subr.mxu0 0.0
  %2222 = vmatpush1.msra.mxu0 0.0
  %2223 = vmatprep.subr.mxu0 0.0
  %2224 = vmatpush1.msra.mxu0 0.0
  %2225 = vmatprep.subr.mxu0 0.0
  %2226 = vmatpush1.msra.mxu0 0.0
  %2227 = vmatprep.mubr.f32.mxu0 0.0
  %2228 = vmatmul.mubr.f32.gmra.mrb[0].mxu0 %v2161
  %v2229 = vpop.f32.mrb[0].mxu0
  %v2230 = vadd.f32 0.0, %v2229
  %v2231 = vpop.f32.mrb[0].mxu0
  %2232 = vdwg.mxu0
  %v2233 = vadd.f32 %v1571, %v2230
  %v2234 = vmul.f32 %v2233, 0.5
  %v2235 = vtanh.pop %v2234
  %v2236 = vadd.f32 %v2235, 1.0
  %v2237 = vmul.f32 %v2236, 0.5
  %v2238 = vadd.f32 %v2230, %v1836
  %2240 = vrot.lane.b32.xlu0 %v2238, 64
  %v2241 = vpop.permute.xlu0 %2240
  %v2243 = vmul.f32 %v2237, %v2241
  %2245 = vrot.lane.b32.xlu0 %v2243, 64
  %v2246 = vpop.permute.xlu0 %2245
  %v2248 = vadd.f32 %v1571, %v2246
  %v2249 = vtanh.pop %v2248
  %v2250 = vsub.f32 1.0, %v2237
  %2252 = vrot.lane.b32.xlu0 %v2249, 96
  %v2253 = vpop.permute.xlu0 %2252
  %v2255 = vmul.f32 %v2250, %v2253
  %v2256 = vmul.f32 %v2237, %v2157
  %v2257 = vadd.f32 %v2255, %v2256
  %2259 = vrot.lane.b32.xlu0 %v2257, 96
  %v2260 = vpop.permute.xlu0 %2259
  %v2261 = vsel %vm1418, %v2260, 0
  %2263 = vmatprep.subr.mxu0 0.0
  %2264 = vmatpush1.msra.mxu0 %v1727
  %2265 = vmatprep.subr.mxu0 0.0
  %2266 = vmatpush1.msra.mxu0 %v1728
  %2267 = vmatprep.subr.mxu0 0.0
  %2268 = vmatpush1.msra.mxu0 %v1729
  %2269 = vmatprep.subr.mxu0 0.0
  %2270 = vmatpush1.msra.mxu0 %v1730
  %2271 = vmatprep.subr.mxu0 0.0
  %2272 = vmatpush1.msra.mxu0 0.0
  %2273 = vmatprep.subr.mxu0 0.0
  %2274 = vmatpush1.msra.mxu0 0.0
  %2275 = vmatprep.subr.mxu0 0.0
  %2276 = vmatpush1.msra.mxu0 0.0
  %2277 = vmatprep.subr.mxu0 0.0
  %2278 = vmatpush1.msra.mxu0 0.0
  %2279 = vmatprep.subr.mxu0 0.0
  %2280 = vmatpush1.msra.mxu0 0.0
  %2281 = vmatprep.subr.mxu0 0.0
  %2282 = vmatpush1.msra.mxu0 0.0
  %2283 = vmatprep.subr.mxu0 0.0
  %2284 = vmatpush1.msra.mxu0 0.0
  %2285 = vmatprep.subr.mxu0 0.0
  %2286 = vmatpush1.msra.mxu0 0.0
  %2287 = vmatprep.subr.mxu0 0.0
  %2288 = vmatpush1.msra.mxu0 0.0
  %2289 = vmatprep.subr.mxu0 0.0
  %2290 = vmatpush1.msra.mxu0 0.0
  %2291 = vmatprep.subr.mxu0 0.0
  %2292 = vmatpush1.msra.mxu0 0.0
  %2293 = vmatprep.subr.mxu0 0.0
  %2294 = vmatpush1.msra.mxu0 0.0
  %2295 = vmatprep.subr.mxu0 0.0
  %2296 = vmatpush1.msra.mxu0 0.0
  %2297 = vmatprep.subr.mxu0 0.0
  %2298 = vmatpush1.msra.mxu0 0.0
  %2299 = vmatprep.subr.mxu0 0.0
  %2300 = vmatpush1.msra.mxu0 0.0
  %2301 = vmatprep.subr.mxu0 0.0
  %2302 = vmatpush1.msra.mxu0 0.0
  %2303 = vmatprep.subr.mxu0 0.0
  %2304 = vmatpush1.msra.mxu0 0.0
  %2305 = vmatprep.subr.mxu0 0.0
  %2306 = vmatpush1.msra.mxu0 0.0
  %2307 = vmatprep.subr.mxu0 0.0
  %2308 = vmatpush1.msra.mxu0 0.0
  %2309 = vmatprep.subr.mxu0 0.0
  %2310 = vmatpush1.msra.mxu0 0.0
  %2311 = vmatprep.subr.mxu0 0.0
  %2312 = vmatpush1.msra.mxu0 0.0
  %2313 = vmatprep.subr.mxu0 0.0
  %2314 = vmatpush1.msra.mxu0 0.0
  %2315 = vmatprep.subr.mxu0 0.0
  %2316 = vmatpush1.msra.mxu0 0.0
  %2317 = vmatprep.subr.mxu0 0.0
  %2318 = vmatpush1.msra.mxu0 0.0
  %2319 = vmatprep.subr.mxu0 0.0
  %2320 = vmatpush1.msra.mxu0 0.0
  %2321 = vmatprep.subr.mxu0 0.0
  %2322 = vmatpush1.msra.mxu0 0.0
  %2323 = vmatprep.subr.mxu0 0.0
  %2324 = vmatpush1.msra.mxu0 0.0
  %2325 = vmatprep.subr.mxu0 0.0
  %2326 = vmatpush1.msra.mxu0 0.0
  %2327 = vmatprep.mubr.f32.mxu0 0.0
  %2328 = vmatmul.mubr.f32.gmra.mrb[0].mxu0 %v2261
  %v2329 = vpop.f32.mrb[0].mxu0
  %v2330 = vadd.f32 0.0, %v2329
  %v2331 = vpop.f32.mrb[0].mxu0
  %2332 = vdwg.mxu0
  %v2333 = vadd.f32 %v1576, %v2330
  %v2334 = vmul.f32 %v2333, 0.5
  %v2335 = vtanh.pop %v2334
  %v2336 = vadd.f32 %v2335, 1.0
  %v2337 = vmul.f32 %v2336, 0.5
  %v2338 = vadd.f32 %v2330, %v1836
  %2340 = vrot.lane.b32.xlu0 %v2338, 64
  %v2341 = vpop.permute.xlu0 %2340
  %v2343 = vmul.f32 %v2337, %v2341
  %2345 = vrot.lane.b32.xlu0 %v2343, 64
  %v2346 = vpop.permute.xlu0 %2345
  %v2348 = vadd.f32 %v1576, %v2346
  %v2349 = vtanh.pop %v2348
  %v2350 = vsub.f32 1.0, %v2337
  %2352 = vrot.lane.b32.xlu0 %v2349, 96
  %v2353 = vpop.permute.xlu0 %2352
  %v2355 = vmul.f32 %v2350, %v2353
  %v2356 = vmul.f32 %v2337, %v2257
  %v2357 = vadd.f32 %v2355, %v2356
  %2359 = vrot.lane.b32.xlu0 %v2357, 96
  %v2360 = vpop.permute.xlu0 %2359
  %v2361 = vsel %vm1418, %v2360, 0
  %2363 = vmatprep.subr.mxu0 0.0
  %2364 = vmatpush1.msra.mxu0 %v1727
  %2365 = vmatprep.subr.mxu0 0.0
  %2366 = vmatpush1.msra.mxu0 %v1728
  %2367 = vmatprep.subr.mxu0 0.0
  %2368 = vmatpush1.msra.mxu0 %v1729
  %2369 = vmatprep.subr.mxu0 0.0
  %2370 = vmatpush1.msra.mxu0 %v1730
  %2371 = vmatprep.subr.mxu0 0.0
  %2372 = vmatpush1.msra.mxu0 0.0
  %2373 = vmatprep.subr.mxu0 0.0
  %2374 = vmatpush1.msra.mxu0 0.0
  %2375 = vmatprep.subr.mxu0 0.0
  %2376 = vmatpush1.msra.mxu0 0.0
  %2377 = vmatprep.subr.mxu0 0.0
  %2378 = vmatpush1.msra.mxu0 0.0
  %2379 = vmatprep.subr.mxu0 0.0
  %2380 = vmatpush1.msra.mxu0 0.0
  %2381 = vmatprep.subr.mxu0 0.0
  %2382 = vmatpush1.msra.mxu0 0.0
  %2383 = vmatprep.subr.mxu0 0.0
  %2384 = vmatpush1.msra.mxu0 0.0
  %2385 = vmatprep.subr.mxu0 0.0
  %2386 = vmatpush1.msra.mxu0 0.0
  %2387 = vmatprep.subr.mxu0 0.0
  %2388 = vmatpush1.msra.mxu0 0.0
  %2389 = vmatprep.subr.mxu0 0.0
  %2390 = vmatpush1.msra.mxu0 0.0
  %2391 = vmatprep.subr.mxu0 0.0
  %2392 = vmatpush1.msra.mxu0 0.0
  %2393 = vmatprep.subr.mxu0 0.0
  %2394 = vmatpush1.msra.mxu0 0.0
  %2395 = vmatprep.subr.mxu0 0.0
  %2396 = vmatpush1.msra.mxu0 0.0
  %2397 = vmatprep.subr.mxu0 0.0
  %2398 = vmatpush1.msra.mxu0 0.0
  %2399 = vmatprep.subr.mxu0 0.0
  %2400 = vmatpush1.msra.mxu0 0.0
  %2401 = vmatprep.subr.mxu0 0.0
  %2402 = vmatpush1.msra.mxu0 0.0
  %2403 = vmatprep.subr.mxu0 0.0
  %2404 = vmatpush1.msra.mxu0 0.0
  %2405 = vmatprep.subr.mxu0 0.0
  %2406 = vmatpush1.msra.mxu0 0.0
  %2407 = vmatprep.subr.mxu0 0.0
  %2408 = vmatpush1.msra.mxu0 0.0
  %2409 = vmatprep.subr.mxu0 0.0
  %2410 = vmatpush1.msra.mxu0 0.0
  %2411 = vmatprep.subr.mxu0 0.0
  %2412 = vmatpush1.msra.mxu0 0.0
  %2413 = vmatprep.subr.mxu0 0.0
  %2414 = vmatpush1.msra.mxu0 0.0
  %2415 = vmatprep.subr.mxu0 0.0
  %2416 = vmatpush1.msra.mxu0 0.0
  %2417 = vmatprep.subr.mxu0 0.0
  %2418 = vmatpush1.msra.mxu0 0.0
  %2419 = vmatprep.subr.mxu0 0.0
  %2420 = vmatpush1.msra.mxu0 0.0
  %2421 = vmatprep.subr.mxu0 0.0
  %2422 = vmatpush1.msra.mxu0 0.0
  %2423 = vmatprep.subr.mxu0 0.0
  %2424 = vmatpush1.msra.mxu0 0.0
  %2425 = vmatprep.subr.mxu0 0.0
  %2426 = vmatpush1.msra.mxu0 0.0
  %2427 = vmatprep.mubr.f32.mxu0 0.0
  %2428 = vmatmul.mubr.f32.gmra.mrb[0].mxu0 %v2361
  %v2429 = vpop.f32.mrb[0].mxu0
  %v2430 = vadd.f32 0.0, %v2429
  %v2431 = vpop.f32.mrb[0].mxu0
  %2432 = vdwg.mxu0
  %v2433 = vadd.f32 %v1581, %v2430
  %v2434 = vmul.f32 %v2433, 0.5
  %v2435 = vtanh.pop %v2434
  %v2436 = vadd.f32 %v2435, 1.0
  %v2437 = vmul.f32 %v2436, 0.5
  %v2438 = vadd.f32 %v2430, %v1836
  %2440 = vrot.lane.b32.xlu0 %v2438, 64
  %v2441 = vpop.permute.xlu0 %2440
  %v2443 = vmul.f32 %v2437, %v2441
  %2445 = vrot.lane.b32.xlu0 %v2443, 64
  %v2446 = vpop.permute.xlu0 %2445
  %v2448 = vadd.f32 %v1581, %v2446
  %v2449 = vtanh.pop %v2448
  %v2450 = vsub.f32 1.0, %v2437
  %2452 = vrot.lane.b32.xlu0 %v2449, 96
  %v2453 = vpop.permute.xlu0 %2452
  %v2455 = vmul.f32 %v2450, %v2453
  %v2456 = vmul.f32 %v2437, %v2357
  %v2457 = vadd.f32 %v2455, %v2456
  %2459 = vrot.lane.b32.xlu0 %v2457, 96
  %v2460 = vpop.permute.xlu0 %2459
  %v2461 = vsel %vm1418, %v2460, 0
  %2463 = vmatprep.subr.mxu0 0.0
  %2464 = vmatpush1.msra.mxu0 %v1727
  %2465 = vmatprep.subr.mxu0 0.0
  %2466 = vmatpush1.msra.mxu0 %v1728
  %2467 = vmatprep.subr.mxu0 0.0
  %2468 = vmatpush1.msra.mxu0 %v1729
  %2469 = vmatprep.subr.mxu0 0.0
  %2470 = vmatpush1.msra.mxu0 %v1730
  %2471 = vmatprep.subr.mxu0 0.0
  %2472 = vmatpush1.msra.mxu0 0.0
  %2473 = vmatprep.subr.mxu0 0.0
  %2474 = vmatpush1.msra.mxu0 0.0
  %2475 = vmatprep.subr.mxu0 0.0
  %2476 = vmatpush1.msra.mxu0 0.0
  %2477 = vmatprep.subr.mxu0 0.0
  %2478 = vmatpush1.msra.mxu0 0.0
  %2479 = vmatprep.subr.mxu0 0.0
  %2480 = vmatpush1.msra.mxu0 0.0
  %2481 = vmatprep.subr.mxu0 0.0
  %2482 = vmatpush1.msra.mxu0 0.0
  %2483 = vmatprep.subr.mxu0 0.0
  %2484 = vmatpush1.msra.mxu0 0.0
  %2485 = vmatprep.subr.mxu0 0.0
  %2486 = vmatpush1.msra.mxu0 0.0
  %2487 = vmatprep.subr.mxu0 0.0
  %2488 = vmatpush1.msra.mxu0 0.0
  %2489 = vmatprep.subr.mxu0 0.0
  %2490 = vmatpush1.msra.mxu0 0.0
  %2491 = vmatprep.subr.mxu0 0.0
  %2492 = vmatpush1.msra.mxu0 0.0
  %2493 = vmatprep.subr.mxu0 0.0
  %2494 = vmatpush1.msra.mxu0 0.0
  %2495 = vmatprep.subr.mxu0 0.0
  %2496 = vmatpush1.msra.mxu0 0.0
  %2497 = vmatprep.subr.mxu0 0.0
  %2498 = vmatpush1.msra.mxu0 0.0
  %2499 = vmatprep.subr.mxu0 0.0
  %2500 = vmatpush1.msra.mxu0 0.0
  %2501 = vmatprep.subr.mxu0 0.0
  %2502 = vmatpush1.msra.mxu0 0.0
  %2503 = vmatprep.subr.mxu0 0.0
  %2504 = vmatpush1.msra.mxu0 0.0
  %2505 = vmatprep.subr.mxu0 0.0
  %2506 = vmatpush1.msra.mxu0 0.0
  %2507 = vmatprep.subr.mxu0 0.0
  %2508 = vmatpush1.msra.mxu0 0.0
  %2509 = vmatprep.subr.mxu0 0.0
  %2510 = vmatpush1.msra.mxu0 0.0
  %2511 = vmatprep.subr.mxu0 0.0
  %2512 = vmatpush1.msra.mxu0 0.0
  %2513 = vmatprep.subr.mxu0 0.0
  %2514 = vmatpush1.msra.mxu0 0.0
  %2515 = vmatprep.subr.mxu0 0.0
  %2516 = vmatpush1.msra.mxu0 0.0
  %2517 = vmatprep.subr.mxu0 0.0
  %2518 = vmatpush1.msra.mxu0 0.0
  %2519 = vmatprep.subr.mxu0 0.0
  %2520 = vmatpush1.msra.mxu0 0.0
  %2521 = vmatprep.subr.mxu0 0.0
  %2522 = vmatpush1.msra.mxu0 0.0
  %2523 = vmatprep.subr.mxu0 0.0
  %2524 = vmatpush1.msra.mxu0 0.0
  %2525 = vmatprep.subr.mxu0 0.0
  %2526 = vmatpush1.msra.mxu0 0.0
  %2527 = vmatprep.mubr.f32.mxu0 0.0
  %2528 = vmatmul.mubr.f32.gmra.mrb[0].mxu0 %v2461
  %v2529 = vpop.f32.mrb[0].mxu0
  %v2530 = vadd.f32 0.0, %v2529
  %v2531 = vpop.f32.mrb[0].mxu0
  %2532 = vdwg.mxu0
  %v2533 = vadd.f32 %v1586, %v2530
  %v2534 = vmul.f32 %v2533, 0.5
  %v2535 = vtanh.pop %v2534
  %v2536 = vadd.f32 %v2535, 1.0
  %v2537 = vmul.f32 %v2536, 0.5
  %v2538 = vadd.f32 %v2530, %v1836
  %2540 = vrot.lane.b32.xlu0 %v2538, 64
  %v2541 = vpop.permute.xlu0 %2540
  %v2543 = vmul.f32 %v2537, %v2541
  %2545 = vrot.lane.b32.xlu0 %v2543, 64
  %v2546 = vpop.permute.xlu0 %2545
  %v2548 = vadd.f32 %v1586, %v2546
  %v2549 = vtanh.pop %v2548
  %v2550 = vsub.f32 1.0, %v2537
  %2552 = vrot.lane.b32.xlu0 %v2549, 96
  %v2553 = vpop.permute.xlu0 %2552
  %v2555 = vmul.f32 %v2550, %v2553
  %v2556 = vmul.f32 %v2537, %v2457
  %v2557 = vadd.f32 %v2555, %v2556
  %2559 = vrot.lane.b32.xlu0 %v2557, 96
  %v2560 = vpop.permute.xlu0 %2559
  %v2561 = vsel %vm1418, %v2560, 0
  %2563 = vmatprep.subr.mxu0 0.0
  %2564 = vmatpush1.msra.mxu0 %v1727
  %2565 = vmatprep.subr.mxu0 0.0
  %2566 = vmatpush1.msra.mxu0 %v1728
  %2567 = vmatprep.subr.mxu0 0.0
  %2568 = vmatpush1.msra.mxu0 %v1729
  %2569 = vmatprep.subr.mxu0 0.0
  %2570 = vmatpush1.msra.mxu0 %v1730
  %2571 = vmatprep.subr.mxu0 0.0
  %2572 = vmatpush1.msra.mxu0 0.0
  %2573 = vmatprep.subr.mxu0 0.0
  %2574 = vmatpush1.msra.mxu0 0.0
  %2575 = vmatprep.subr.mxu0 0.0
  %2576 = vmatpush1.msra.mxu0 0.0
  %2577 = vmatprep.subr.mxu0 0.0
  %2578 = vmatpush1.msra.mxu0 0.0
  %2579 = vmatprep.subr.mxu0 0.0
  %2580 = vmatpush1.msra.mxu0 0.0
  %2581 = vmatprep.subr.mxu0 0.0
  %2582 = vmatpush1.msra.mxu0 0.0
  %2583 = vmatprep.subr.mxu0 0.0
  %2584 = vmatpush1.msra.mxu0 0.0
  %2585 = vmatprep.subr.mxu0 0.0
  %2586 = vmatpush1.msra.mxu0 0.0
  %2587 = vmatprep.subr.mxu0 0.0
  %2588 = vmatpush1.msra.mxu0 0.0
  %2589 = vmatprep.subr.mxu0 0.0
  %2590 = vmatpush1.msra.mxu0 0.0
  %2591 = vmatprep.subr.mxu0 0.0
  %2592 = vmatpush1.msra.mxu0 0.0
  %2593 = vmatprep.subr.mxu0 0.0
  %2594 = vmatpush1.msra.mxu0 0.0
  %2595 = vmatprep.subr.mxu0 0.0
  %2596 = vmatpush1.msra.mxu0 0.0
  %2597 = vmatprep.subr.mxu0 0.0
  %2598 = vmatpush1.msra.mxu0 0.0
  %2599 = vmatprep.subr.mxu0 0.0
  %2600 = vmatpush1.msra.mxu0 0.0
  %2601 = vmatprep.subr.mxu0 0.0
  %2602 = vmatpush1.msra.mxu0 0.0
  %2603 = vmatprep.subr.mxu0 0.0
  %2604 = vmatpush1.msra.mxu0 0.0
  %2605 = vmatprep.subr.mxu0 0.0
  %2606 = vmatpush1.msra.mxu0 0.0
  %2607 = vmatprep.subr.mxu0 0.0
  %2608 = vmatpush1.msra.mxu0 0.0
  %2609 = vmatprep.subr.mxu0 0.0
  %2610 = vmatpush1.msra.mxu0 0.0
  %2611 = vmatprep.subr.mxu0 0.0
  %2612 = vmatpush1.msra.mxu0 0.0
  %2613 = vmatprep.subr.mxu0 0.0
  %2614 = vmatpush1.msra.mxu0 0.0
  %2615 = vmatprep.subr.mxu0 0.0
  %2616 = vmatpush1.msra.mxu0 0.0
  %2617 = vmatprep.subr.mxu0 0.0
  %2618 = vmatpush1.msra.mxu0 0.0
  %2619 = vmatprep.subr.mxu0 0.0
  %2620 = vmatpush1.msra.mxu0 0.0
  %2621 = vmatprep.subr.mxu0 0.0
  %2622 = vmatpush1.msra.mxu0 0.0
  %2623 = vmatprep.subr.mxu0 0.0
  %2624 = vmatpush1.msra.mxu0 0.0
  %2625 = vmatprep.subr.mxu0 0.0
  %2626 = vmatpush1.msra.mxu0 0.0
  %2627 = vmatprep.mubr.f32.mxu0 0.0
  %2628 = vmatmul.mubr.f32.gmra.mrb[0].mxu0 %v2561
  %v2629 = vpop.f32.mrb[0].mxu0
  %v2630 = vadd.f32 0.0, %v2629
  %v2631 = vpop.f32.mrb[0].mxu0
  %2632 = vdwg.mxu0
  %v2633 = vadd.f32 %v1591, %v2630
  %v2634 = vmul.f32 %v2633, 0.5
  %v2635 = vtanh.pop %v2634
  %v2636 = vadd.f32 %v2635, 1.0
  %v2637 = vmul.f32 %v2636, 0.5
  %v2638 = vadd.f32 %v2630, %v1836
  %2640 = vrot.lane.b32.xlu0 %v2638, 64
  %v2641 = vpop.permute.xlu0 %2640
  %v2643 = vmul.f32 %v2637, %v2641
  %2645 = vrot.lane.b32.xlu0 %v2643, 64
  %v2646 = vpop.permute.xlu0 %2645
  %v2648 = vadd.f32 %v1591, %v2646
  %v2649 = vtanh.pop %v2648
  %v2650 = vsub.f32 1.0, %v2637
  %2652 = vrot.lane.b32.xlu0 %v2649, 96
  %v2653 = vpop.permute.xlu0 %2652
  %v2655 = vmul.f32 %v2650, %v2653
  %v2656 = vmul.f32 %v2637, %v2557
  %v2657 = vadd.f32 %v2655, %v2656
  %2659 = vrot.lane.b32.xlu0 %v2657, 96
  %v2660 = vpop.permute.xlu0 %2659
  %v2661 = vsel %vm1418, %v2660, 0
  %2663 = vmatprep.subr.mxu0 0.0
  %2664 = vmatpush1.msra.mxu0 %v1727
  %2665 = vmatprep.subr.mxu0 0.0
  %2666 = vmatpush1.msra.mxu0 %v1728
  %2667 = vmatprep.subr.mxu0 0.0
  %2668 = vmatpush1.msra.mxu0 %v1729
  %2669 = vmatprep.subr.mxu0 0.0
  %2670 = vmatpush1.msra.mxu0 %v1730
  %2671 = vmatprep.subr.mxu0 0.0
  %2672 = vmatpush1.msra.mxu0 0.0
  %2673 = vmatprep.subr.mxu0 0.0
  %2674 = vmatpush1.msra.mxu0 0.0
  %2675 = vmatprep.subr.mxu0 0.0
  %2676 = vmatpush1.msra.mxu0 0.0
  %2677 = vmatprep.subr.mxu0 0.0
  %2678 = vmatpush1.msra.mxu0 0.0
  %2679 = vmatprep.subr.mxu0 0.0
  %2680 = vmatpush1.msra.mxu0 0.0
  %2681 = vmatprep.subr.mxu0 0.0
  %2682 = vmatpush1.msra.mxu0 0.0
  %2683 = vmatprep.subr.mxu0 0.0
  %2684 = vmatpush1.msra.mxu0 0.0
  %2685 = vmatprep.subr.mxu0 0.0
  %2686 = vmatpush1.msra.mxu0 0.0
  %2687 = vmatprep.subr.mxu0 0.0
  %2688 = vmatpush1.msra.mxu0 0.0
  %2689 = vmatprep.subr.mxu0 0.0
  %2690 = vmatpush1.msra.mxu0 0.0
  %2691 = vmatprep.subr.mxu0 0.0
  %2692 = vmatpush1.msra.mxu0 0.0
  %2693 = vmatprep.subr.mxu0 0.0
  %2694 = vmatpush1.msra.mxu0 0.0
  %2695 = vmatprep.subr.mxu0 0.0
  %2696 = vmatpush1.msra.mxu0 0.0
  %2697 = vmatprep.subr.mxu0 0.0
  %2698 = vmatpush1.msra.mxu0 0.0
  %2699 = vmatprep.subr.mxu0 0.0
  %2700 = vmatpush1.msra.mxu0 0.0
  %2701 = vmatprep.subr.mxu0 0.0
  %2702 = vmatpush1.msra.mxu0 0.0
  %2703 = vmatprep.subr.mxu0 0.0
  %2704 = vmatpush1.msra.mxu0 0.0
  %2705 = vmatprep.subr.mxu0 0.0
  %2706 = vmatpush1.msra.mxu0 0.0
  %2707 = vmatprep.subr.mxu0 0.0
  %2708 = vmatpush1.msra.mxu0 0.0
  %2709 = vmatprep.subr.mxu0 0.0
  %2710 = vmatpush1.msra.mxu0 0.0
  %2711 = vmatprep.subr.mxu0 0.0
  %2712 = vmatpush1.msra.mxu0 0.0
  %2713 = vmatprep.subr.mxu0 0.0
  %2714 = vmatpush1.msra.mxu0 0.0
  %2715 = vmatprep.subr.mxu0 0.0
  %2716 = vmatpush1.msra.mxu0 0.0
  %2717 = vmatprep.subr.mxu0 0.0
  %2718 = vmatpush1.msra.mxu0 0.0
  %2719 = vmatprep.subr.mxu0 0.0
  %2720 = vmatpush1.msra.mxu0 0.0
  %2721 = vmatprep.subr.mxu0 0.0
  %2722 = vmatpush1.msra.mxu0 0.0
  %2723 = vmatprep.subr.mxu0 0.0
  %2724 = vmatpush1.msra.mxu0 0.0
  %2725 = vmatprep.subr.mxu0 0.0
  %2726 = vmatpush1.msra.mxu0 0.0
  %2727 = vmatprep.mubr.f32.mxu0 0.0
  %2728 = vmatmul.mubr.f32.gmra.mrb[0].mxu0 %v2661
  %v2729 = vpop.f32.mrb[0].mxu0
  %v2730 = vadd.f32 0.0, %v2729
  %v2731 = vpop.f32.mrb[0].mxu0
  %2732 = vdwg.mxu0
  %v2733 = vadd.f32 %v1596, %v2730
  %v2734 = vmul.f32 %v2733, 0.5
  %v2735 = vtanh.pop %v2734
  %v2736 = vadd.f32 %v2735, 1.0
  %v2737 = vmul.f32 %v2736, 0.5
  %v2738 = vadd.f32 %v2730, %v1836
  %2740 = vrot.lane.b32.xlu0 %v2738, 64
  %v2741 = vpop.permute.xlu0 %2740
  %v2743 = vmul.f32 %v2737, %v2741
  %2745 = vrot.lane.b32.xlu0 %v2743, 64
  %v2746 = vpop.permute.xlu0 %2745
  %v2748 = vadd.f32 %v1596, %v2746
  %v2749 = vtanh.pop %v2748
  %v2750 = vsub.f32 1.0, %v2737
  %2752 = vrot.lane.b32.xlu0 %v2749, 96
  %v2753 = vpop.permute.xlu0 %2752
  %v2755 = vmul.f32 %v2750, %v2753
  %v2756 = vmul.f32 %v2737, %v2657
  %v2757 = vadd.f32 %v2755, %v2756
  %2759 = vrot.lane.b32.xlu0 %v2757, 96
  %v2760 = vpop.permute.xlu0 %2759
  %v2761 = vsel %vm1418, %v2760, 0
  %2763 = vmatprep.subr.mxu0 0.0
  %2764 = vmatpush1.msra.mxu0 %v1727
  %2765 = vmatprep.subr.mxu0 0.0
  %2766 = vmatpush1.msra.mxu0 %v1728
  %2767 = vmatprep.subr.mxu0 0.0
  %2768 = vmatpush1.msra.mxu0 %v1729
  %2769 = vmatprep.subr.mxu0 0.0
  %2770 = vmatpush1.msra.mxu0 %v1730
  %2771 = vmatprep.subr.mxu0 0.0
  %2772 = vmatpush1.msra.mxu0 0.0
  %2773 = vmatprep.subr.mxu0 0.0
  %2774 = vmatpush1.msra.mxu0 0.0
  %2775 = vmatprep.subr.mxu0 0.0
  %2776 = vmatpush1.msra.mxu0 0.0
  %2777 = vmatprep.subr.mxu0 0.0
  %2778 = vmatpush1.msra.mxu0 0.0
  %2779 = vmatprep.subr.mxu0 0.0
  %2780 = vmatpush1.msra.mxu0 0.0
  %2781 = vmatprep.subr.mxu0 0.0
  %2782 = vmatpush1.msra.mxu0 0.0
  %2783 = vmatprep.subr.mxu0 0.0
  %2784 = vmatpush1.msra.mxu0 0.0
  %2785 = vmatprep.subr.mxu0 0.0
  %2786 = vmatpush1.msra.mxu0 0.0
  %2787 = vmatprep.subr.mxu0 0.0
  %2788 = vmatpush1.msra.mxu0 0.0
  %2789 = vmatprep.subr.mxu0 0.0
  %2790 = vmatpush1.msra.mxu0 0.0
  %2791 = vmatprep.subr.mxu0 0.0
  %2792 = vmatpush1.msra.mxu0 0.0
  %2793 = vmatprep.subr.mxu0 0.0
  %2794 = vmatpush1.msra.mxu0 0.0
  %2795 = vmatprep.subr.mxu0 0.0
  %2796 = vmatpush1.msra.mxu0 0.0
  %2797 = vmatprep.subr.mxu0 0.0
  %2798 = vmatpush1.msra.mxu0 0.0
  %2799 = vmatprep.subr.mxu0 0.0
  %2800 = vmatpush1.msra.mxu0 0.0
  %2801 = vmatprep.subr.mxu0 0.0
  %2802 = vmatpush1.msra.mxu0 0.0
  %2803 = vmatprep.subr.mxu0 0.0
  %2804 = vmatpush1.msra.mxu0 0.0
  %2805 = vmatprep.subr.mxu0 0.0
  %2806 = vmatpush1.msra.mxu0 0.0
  %2807 = vmatprep.subr.mxu0 0.0
  %2808 = vmatpush1.msra.mxu0 0.0
  %2809 = vmatprep.subr.mxu0 0.0
  %2810 = vmatpush1.msra.mxu0 0.0
  %2811 = vmatprep.subr.mxu0 0.0
  %2812 = vmatpush1.msra.mxu0 0.0
  %2813 = vmatprep.subr.mxu0 0.0
  %2814 = vmatpush1.msra.mxu0 0.0
  %2815 = vmatprep.subr.mxu0 0.0
  %2816 = vmatpush1.msra.mxu0 0.0
  %2817 = vmatprep.subr.mxu0 0.0
  %2818 = vmatpush1.msra.mxu0 0.0
  %2819 = vmatprep.subr.mxu0 0.0
  %2820 = vmatpush1.msra.mxu0 0.0
  %2821 = vmatprep.subr.mxu0 0.0
  %2822 = vmatpush1.msra.mxu0 0.0
  %2823 = vmatprep.subr.mxu0 0.0
  %2824 = vmatpush1.msra.mxu0 0.0
  %2825 = vmatprep.subr.mxu0 0.0
  %2826 = vmatpush1.msra.mxu0 0.0
  %2827 = vmatprep.mubr.f32.mxu0 0.0
  %2828 = vmatmul.mubr.f32.gmra.mrb[0].mxu0 %v2761
  %v2829 = vpop.f32.mrb[0].mxu0
  %v2830 = vadd.f32 0.0, %v2829
  %v2831 = vpop.f32.mrb[0].mxu0
  %2832 = vdwg.mxu0
  %v2833 = vadd.f32 %v1601, %v2830
  %v2834 = vmul.f32 %v2833, 0.5
  %v2835 = vtanh.pop %v2834
  %v2836 = vadd.f32 %v2835, 1.0
  %v2837 = vmul.f32 %v2836, 0.5
  %v2838 = vadd.f32 %v2830, %v1836
  %2840 = vrot.lane.b32.xlu0 %v2838, 64
  %v2841 = vpop.permute.xlu0 %2840
  %v2843 = vmul.f32 %v2837, %v2841
  %2845 = vrot.lane.b32.xlu0 %v2843, 64
  %v2846 = vpop.permute.xlu0 %2845
  %v2848 = vadd.f32 %v1601, %v2846
  %v2849 = vtanh.pop %v2848
  %v2850 = vsub.f32 1.0, %v2837
  %2852 = vrot.lane.b32.xlu0 %v2849, 96
  %v2853 = vpop.permute.xlu0 %2852
  %v2855 = vmul.f32 %v2850, %v2853
  %v2856 = vmul.f32 %v2837, %v2757
  %v2857 = vadd.f32 %v2855, %v2856
  %2859 = vrot.lane.b32.xlu0 %v2857, 96
  %v2860 = vpop.permute.xlu0 %2859
  %v2861 = vsel %vm1418, %v2860, 0
  %2863 = vmatprep.subr.mxu0 0.0
  %2864 = vmatpush1.msra.mxu0 %v1727
  %2865 = vmatprep.subr.mxu0 0.0
  %2866 = vmatpush1.msra.mxu0 %v1728
  %2867 = vmatprep.subr.mxu0 0.0
  %2868 = vmatpush1.msra.mxu0 %v1729
  %2869 = vmatprep.subr.mxu0 0.0
  %2870 = vmatpush1.msra.mxu0 %v1730
  %2871 = vmatprep.subr.mxu0 0.0
  %2872 = vmatpush1.msra.mxu0 0.0
  %2873 = vmatprep.subr.mxu0 0.0
  %2874 = vmatpush1.msra.mxu0 0.0
  %2875 = vmatprep.subr.mxu0 0.0
  %2876 = vmatpush1.msra.mxu0 0.0
  %2877 = vmatprep.subr.mxu0 0.0
  %2878 = vmatpush1.msra.mxu0 0.0
  %2879 = vmatprep.subr.mxu0 0.0
  %2880 = vmatpush1.msra.mxu0 0.0
  %2881 = vmatprep.subr.mxu0 0.0
  %2882 = vmatpush1.msra.mxu0 0.0
  %2883 = vmatprep.subr.mxu0 0.0
  %2884 = vmatpush1.msra.mxu0 0.0
  %2885 = vmatprep.subr.mxu0 0.0
  %2886 = vmatpush1.msra.mxu0 0.0
  %2887 = vmatprep.subr.mxu0 0.0
  %2888 = vmatpush1.msra.mxu0 0.0
  %2889 = vmatprep.subr.mxu0 0.0
  %2890 = vmatpush1.msra.mxu0 0.0
  %2891 = vmatprep.subr.mxu0 0.0
  %2892 = vmatpush1.msra.mxu0 0.0
  %2893 = vmatprep.subr.mxu0 0.0
  %2894 = vmatpush1.msra.mxu0 0.0
  %2895 = vmatprep.subr.mxu0 0.0
  %2896 = vmatpush1.msra.mxu0 0.0
  %2897 = vmatprep.subr.mxu0 0.0
  %2898 = vmatpush1.msra.mxu0 0.0
  %2899 = vmatprep.subr.mxu0 0.0
  %2900 = vmatpush1.msra.mxu0 0.0
  %2901 = vmatprep.subr.mxu0 0.0
  %2902 = vmatpush1.msra.mxu0 0.0
  %2903 = vmatprep.subr.mxu0 0.0
  %2904 = vmatpush1.msra.mxu0 0.0
  %2905 = vmatprep.subr.mxu0 0.0
  %2906 = vmatpush1.msra.mxu0 0.0
  %2907 = vmatprep.subr.mxu0 0.0
  %2908 = vmatpush1.msra.mxu0 0.0
  %2909 = vmatprep.subr.mxu0 0.0
  %2910 = vmatpush1.msra.mxu0 0.0
  %2911 = vmatprep.subr.mxu0 0.0
  %2912 = vmatpush1.msra.mxu0 0.0
  %2913 = vmatprep.subr.mxu0 0.0
  %2914 = vmatpush1.msra.mxu0 0.0
  %2915 = vmatprep.subr.mxu0 0.0
  %2916 = vmatpush1.msra.mxu0 0.0
  %2917 = vmatprep.subr.mxu0 0.0
  %2918 = vmatpush1.msra.mxu0 0.0
  %2919 = vmatprep.subr.mxu0 0.0
  %2920 = vmatpush1.msra.mxu0 0.0
  %2921 = vmatprep.subr.mxu0 0.0
  %2922 = vmatpush1.msra.mxu0 0.0
  %2923 = vmatprep.subr.mxu0 0.0
  %2924 = vmatpush1.msra.mxu0 0.0
  %2925 = vmatprep.subr.mxu0 0.0
  %2926 = vmatpush1.msra.mxu0 0.0
  %2927 = vmatprep.mubr.f32.mxu0 0.0
  %2928 = vmatmul.mubr.f32.gmra.mrb[0].mxu0 %v2861
  %v2929 = vpop.f32.mrb[0].mxu0
  %v2930 = vadd.f32 0.0, %v2929
  %v2931 = vpop.f32.mrb[0].mxu0
  %2932 = vdwg.mxu0
  %v2933 = vadd.f32 %v1606, %v2930
  %v2934 = vmul.f32 %v2933, 0.5
  %v2935 = vtanh.pop %v2934
  %v2936 = vadd.f32 %v2935, 1.0
  %v2937 = vmul.f32 %v2936, 0.5
  %v2938 = vadd.f32 %v2930, %v1836
  %2940 = vrot.lane.b32.xlu0 %v2938, 64
  %v2941 = vpop.permute.xlu0 %2940
  %v2943 = vmul.f32 %v2937, %v2941
  %2945 = vrot.lane.b32.xlu0 %v2943, 64
  %v2946 = vpop.permute.xlu0 %2945
  %v2948 = vadd.f32 %v1606, %v2946
  %v2949 = vtanh.pop %v2948
  %v2950 = vsub.f32 1.0, %v2937
  %2952 = vrot.lane.b32.xlu0 %v2949, 96
  %v2953 = vpop.permute.xlu0 %2952
  %v2955 = vmul.f32 %v2950, %v2953
  %v2956 = vmul.f32 %v2937, %v2857
  %v2957 = vadd.f32 %v2955, %v2956
  %2959 = vrot.lane.b32.xlu0 %v2957, 96
  %v2960 = vpop.permute.xlu0 %2959
  %v2961 = vsel %vm1418, %v2960, 0
  %2963 = vmatprep.subr.mxu0 0.0
  %2964 = vmatpush1.msra.mxu0 %v1727
  %2965 = vmatprep.subr.mxu0 0.0
  %2966 = vmatpush1.msra.mxu0 %v1728
  %2967 = vmatprep.subr.mxu0 0.0
  %2968 = vmatpush1.msra.mxu0 %v1729
  %2969 = vmatprep.subr.mxu0 0.0
  %2970 = vmatpush1.msra.mxu0 %v1730
  %2971 = vmatprep.subr.mxu0 0.0
  %2972 = vmatpush1.msra.mxu0 0.0
  %2973 = vmatprep.subr.mxu0 0.0
  %2974 = vmatpush1.msra.mxu0 0.0
  %2975 = vmatprep.subr.mxu0 0.0
  %2976 = vmatpush1.msra.mxu0 0.0
  %2977 = vmatprep.subr.mxu0 0.0
  %2978 = vmatpush1.msra.mxu0 0.0
  %2979 = vmatprep.subr.mxu0 0.0
  %2980 = vmatpush1.msra.mxu0 0.0
  %2981 = vmatprep.subr.mxu0 0.0
  %2982 = vmatpush1.msra.mxu0 0.0
  %2983 = vmatprep.subr.mxu0 0.0
  %2984 = vmatpush1.msra.mxu0 0.0
  %2985 = vmatprep.subr.mxu0 0.0
  %2986 = vmatpush1.msra.mxu0 0.0
  %2987 = vmatprep.subr.mxu0 0.0
  %2988 = vmatpush1.msra.mxu0 0.0
  %2989 = vmatprep.subr.mxu0 0.0
  %2990 = vmatpush1.msra.mxu0 0.0
  %2991 = vmatprep.subr.mxu0 0.0
  %2992 = vmatpush1.msra.mxu0 0.0
  %2993 = vmatprep.subr.mxu0 0.0
  %2994 = vmatpush1.msra.mxu0 0.0
  %2995 = vmatprep.subr.mxu0 0.0
  %2996 = vmatpush1.msra.mxu0 0.0
  %2997 = vmatprep.subr.mxu0 0.0
  %2998 = vmatpush1.msra.mxu0 0.0
  %2999 = vmatprep.subr.mxu0 0.0
  %3000 = vmatpush1.msra.mxu0 0.0
  %3001 = vmatprep.subr.mxu0 0.0
  %3002 = vmatpush1.msra.mxu0 0.0
  %3003 = vmatprep.subr.mxu0 0.0
  %3004 = vmatpush1.msra.mxu0 0.0
  %3005 = vmatprep.subr.mxu0 0.0
  %3006 = vmatpush1.msra.mxu0 0.0
  %3007 = vmatprep.subr.mxu0 0.0
  %3008 = vmatpush1.msra.mxu0 0.0
  %3009 = vmatprep.subr.mxu0 0.0
  %3010 = vmatpush1.msra.mxu0 0.0
  %3011 = vmatprep.subr.mxu0 0.0
  %3012 = vmatpush1.msra.mxu0 0.0
  %3013 = vmatprep.subr.mxu0 0.0
  %3014 = vmatpush1.msra.mxu0 0.0
  %3015 = vmatprep.subr.mxu0 0.0
  %3016 = vmatpush1.msra.mxu0 0.0
  %3017 = vmatprep.subr.mxu0 0.0
  %3018 = vmatpush1.msra.mxu0 0.0
  %3019 = vmatprep.subr.mxu0 0.0
  %3020 = vmatpush1.msra.mxu0 0.0
  %3021 = vmatprep.subr.mxu0 0.0
  %3022 = vmatpush1.msra.mxu0 0.0
  %3023 = vmatprep.subr.mxu0 0.0
  %3024 = vmatpush1.msra.mxu0 0.0
  %3025 = vmatprep.subr.mxu0 0.0
  %3026 = vmatpush1.msra.mxu0 0.0
  %3027 = vmatprep.mubr.f32.mxu0 0.0
  %3028 = vmatmul.mubr.f32.gmra.mrb[0].mxu0 %v2961
  %v3029 = vpop.f32.mrb[0].mxu0
  %v3030 = vadd.f32 0.0, %v3029
  %v3031 = vpop.f32.mrb[0].mxu0
  %3032 = vdwg.mxu0
  %v3033 = vadd.f32 %v1611, %v3030
  %v3034 = vmul.f32 %v3033, 0.5
  %v3035 = vtanh.pop %v3034
  %v3036 = vadd.f32 %v3035, 1.0
  %v3037 = vmul.f32 %v3036, 0.5
  %v3038 = vadd.f32 %v3030, %v1836
  %3040 = vrot.lane.b32.xlu0 %v3038, 64
  %v3041 = vpop.permute.xlu0 %3040
  %v3043 = vmul.f32 %v3037, %v3041
  %3045 = vrot.lane.b32.xlu0 %v3043, 64
  %v3046 = vpop.permute.xlu0 %3045
  %v3048 = vadd.f32 %v1611, %v3046
  %v3049 = vtanh.pop %v3048
  %v3050 = vsub.f32 1.0, %v3037
  %3052 = vrot.lane.b32.xlu0 %v3049, 96
  %v3053 = vpop.permute.xlu0 %3052
  %v3055 = vmul.f32 %v3050, %v3053
  %v3056 = vmul.f32 %v3037, %v2957
  %v3057 = vadd.f32 %v3055, %v3056
  %3059 = vrot.lane.b32.xlu0 %v3057, 96
  %v3060 = vpop.permute.xlu0 %3059
  %v3061 = vsel %vm1418, %v3060, 0
  %3063 = vmatprep.subr.mxu0 0.0
  %3064 = vmatpush1.msra.mxu0 %v1727
  %3065 = vmatprep.subr.mxu0 0.0
  %3066 = vmatpush1.msra.mxu0 %v1728
  %3067 = vmatprep.subr.mxu0 0.0
  %3068 = vmatpush1.msra.mxu0 %v1729
  %3069 = vmatprep.subr.mxu0 0.0
  %3070 = vmatpush1.msra.mxu0 %v1730
  %3071 = vmatprep.subr.mxu0 0.0
  %3072 = vmatpush1.msra.mxu0 0.0
  %3073 = vmatprep.subr.mxu0 0.0
  %3074 = vmatpush1.msra.mxu0 0.0
  %3075 = vmatprep.subr.mxu0 0.0
  %3076 = vmatpush1.msra.mxu0 0.0
  %3077 = vmatprep.subr.mxu0 0.0
  %3078 = vmatpush1.msra.mxu0 0.0
  %3079 = vmatprep.subr.mxu0 0.0
  %3080 = vmatpush1.msra.mxu0 0.0
  %3081 = vmatprep.subr.mxu0 0.0
  %3082 = vmatpush1.msra.mxu0 0.0
  %3083 = vmatprep.subr.mxu0 0.0
  %3084 = vmatpush1.msra.mxu0 0.0
  %3085 = vmatprep.subr.mxu0 0.0
  %3086 = vmatpush1.msra.mxu0 0.0
  %3087 = vmatprep.subr.mxu0 0.0
  %3088 = vmatpush1.msra.mxu0 0.0
  %3089 = vmatprep.subr.mxu0 0.0
  %3090 = vmatpush1.msra.mxu0 0.0
  %3091 = vmatprep.subr.mxu0 0.0
  %3092 = vmatpush1.msra.mxu0 0.0
  %3093 = vmatprep.subr.mxu0 0.0
  %3094 = vmatpush1.msra.mxu0 0.0
  %3095 = vmatprep.subr.mxu0 0.0
  %3096 = vmatpush1.msra.mxu0 0.0
  %3097 = vmatprep.subr.mxu0 0.0
  %3098 = vmatpush1.msra.mxu0 0.0
  %3099 = vmatprep.subr.mxu0 0.0
  %3100 = vmatpush1.msra.mxu0 0.0
  %3101 = vmatprep.subr.mxu0 0.0
  %3102 = vmatpush1.msra.mxu0 0.0
  %3103 = vmatprep.subr.mxu0 0.0
  %3104 = vmatpush1.msra.mxu0 0.0
  %3105 = vmatprep.subr.mxu0 0.0
  %3106 = vmatpush1.msra.mxu0 0.0
  %3107 = vmatprep.subr.mxu0 0.0
  %3108 = vmatpush1.msra.mxu0 0.0
  %3109 = vmatprep.subr.mxu0 0.0
  %3110 = vmatpush1.msra.mxu0 0.0
  %3111 = vmatprep.subr.mxu0 0.0
  %3112 = vmatpush1.msra.mxu0 0.0
  %3113 = vmatprep.subr.mxu0 0.0
  %3114 = vmatpush1.msra.mxu0 0.0
  %3115 = vmatprep.subr.mxu0 0.0
  %3116 = vmatpush1.msra.mxu0 0.0
  %3117 = vmatprep.subr.mxu0 0.0
  %3118 = vmatpush1.msra.mxu0 0.0
  %3119 = vmatprep.subr.mxu0 0.0
  %3120 = vmatpush1.msra.mxu0 0.0
  %3121 = vmatprep.subr.mxu0 0.0
  %3122 = vmatpush1.msra.mxu0 0.0
  %3123 = vmatprep.subr.mxu0 0.0
  %3124 = vmatpush1.msra.mxu0 0.0
  %3125 = vmatprep.subr.mxu0 0.0
  %3126 = vmatpush1.msra.mxu0 0.0
  %3127 = vmatprep.mubr.f32.mxu0 0.0
  %3128 = vmatmul.mubr.f32.gmra.mrb[0].mxu0 %v3061
  %v3129 = vpop.f32.mrb[0].mxu0
  %v3130 = vadd.f32 0.0, %v3129
  %v3131 = vpop.f32.mrb[0].mxu0
  %3132 = vdwg.mxu0
  %v3133 = vadd.f32 %v1616, %v3130
  %v3134 = vmul.f32 %v3133, 0.5
  %v3135 = vtanh.pop %v3134
  %v3136 = vadd.f32 %v3135, 1.0
  %v3137 = vmul.f32 %v3136, 0.5
  %v3138 = vadd.f32 %v3130, %v1836
  %3140 = vrot.lane.b32.xlu0 %v3138, 64
  %v3141 = vpop.permute.xlu0 %3140
  %v3143 = vmul.f32 %v3137, %v3141
  %3145 = vrot.lane.b32.xlu0 %v3143, 64
  %v3146 = vpop.permute.xlu0 %3145
  %v3148 = vadd.f32 %v1616, %v3146
  %v3149 = vtanh.pop %v3148
  %v3150 = vsub.f32 1.0, %v3137
  %3152 = vrot.lane.b32.xlu0 %v3149, 96
  %v3153 = vpop.permute.xlu0 %3152
  %v3155 = vmul.f32 %v3150, %v3153
  %v3156 = vmul.f32 %v3137, %v3057
  %v3157 = vadd.f32 %v3155, %v3156
  %3159 = vrot.lane.b32.xlu0 %v3157, 96
  %v3160 = vpop.permute.xlu0 %3159
  %v3161 = vsel %vm1418, %v3160, 0
  %3163 = vmatprep.subr.mxu0 0.0
  %3164 = vmatpush1.msra.mxu0 %v1727
  %3165 = vmatprep.subr.mxu0 0.0
  %3166 = vmatpush1.msra.mxu0 %v1728
  %3167 = vmatprep.subr.mxu0 0.0
  %3168 = vmatpush1.msra.mxu0 %v1729
  %3169 = vmatprep.subr.mxu0 0.0
  %3170 = vmatpush1.msra.mxu0 %v1730
  %3171 = vmatprep.subr.mxu0 0.0
  %3172 = vmatpush1.msra.mxu0 0.0
  %3173 = vmatprep.subr.mxu0 0.0
  %3174 = vmatpush1.msra.mxu0 0.0
  %3175 = vmatprep.subr.mxu0 0.0
  %3176 = vmatpush1.msra.mxu0 0.0
  %3177 = vmatprep.subr.mxu0 0.0
  %3178 = vmatpush1.msra.mxu0 0.0
  %3179 = vmatprep.subr.mxu0 0.0
  %3180 = vmatpush1.msra.mxu0 0.0
  %3181 = vmatprep.subr.mxu0 0.0
  %3182 = vmatpush1.msra.mxu0 0.0
  %3183 = vmatprep.subr.mxu0 0.0
  %3184 = vmatpush1.msra.mxu0 0.0
  %3185 = vmatprep.subr.mxu0 0.0
  %3186 = vmatpush1.msra.mxu0 0.0
  %3187 = vmatprep.subr.mxu0 0.0
  %3188 = vmatpush1.msra.mxu0 0.0
  %3189 = vmatprep.subr.mxu0 0.0
  %3190 = vmatpush1.msra.mxu0 0.0
  %3191 = vmatprep.subr.mxu0 0.0
  %3192 = vmatpush1.msra.mxu0 0.0
  %3193 = vmatprep.subr.mxu0 0.0
  %3194 = vmatpush1.msra.mxu0 0.0
  %3195 = vmatprep.subr.mxu0 0.0
  %3196 = vmatpush1.msra.mxu0 0.0
  %3197 = vmatprep.subr.mxu0 0.0
  %3198 = vmatpush1.msra.mxu0 0.0
  %3199 = vmatprep.subr.mxu0 0.0
  %3200 = vmatpush1.msra.mxu0 0.0
  %3201 = vmatprep.subr.mxu0 0.0
  %3202 = vmatpush1.msra.mxu0 0.0
  %3203 = vmatprep.subr.mxu0 0.0
  %3204 = vmatpush1.msra.mxu0 0.0
  %3205 = vmatprep.subr.mxu0 0.0
  %3206 = vmatpush1.msra.mxu0 0.0
  %3207 = vmatprep.subr.mxu0 0.0
  %3208 = vmatpush1.msra.mxu0 0.0
  %3209 = vmatprep.subr.mxu0 0.0
  %3210 = vmatpush1.msra.mxu0 0.0
  %3211 = vmatprep.subr.mxu0 0.0
  %3212 = vmatpush1.msra.mxu0 0.0
  %3213 = vmatprep.subr.mxu0 0.0
  %3214 = vmatpush1.msra.mxu0 0.0
  %3215 = vmatprep.subr.mxu0 0.0
  %3216 = vmatpush1.msra.mxu0 0.0
  %3217 = vmatprep.subr.mxu0 0.0
  %3218 = vmatpush1.msra.mxu0 0.0
  %3219 = vmatprep.subr.mxu0 0.0
  %3220 = vmatpush1.msra.mxu0 0.0
  %3221 = vmatprep.subr.mxu0 0.0
  %3222 = vmatpush1.msra.mxu0 0.0
  %3223 = vmatprep.subr.mxu0 0.0
  %3224 = vmatpush1.msra.mxu0 0.0
  %3225 = vmatprep.subr.mxu0 0.0
  %3226 = vmatpush1.msra.mxu0 0.0
  %3227 = vmatprep.mubr.f32.mxu0 0.0
  %3228 = vmatmul.mubr.f32.gmra.mrb[0].mxu0 %v3161
  %v3229 = vpop.f32.mrb[0].mxu0
  %v3230 = vadd.f32 0.0, %v3229
  %v3231 = vpop.f32.mrb[0].mxu0
  %3232 = vdwg.mxu0
  %v3233 = vadd.f32 %v1621, %v3230
  %v3234 = vmul.f32 %v3233, 0.5
  %v3235 = vtanh.pop %v3234
  %v3236 = vadd.f32 %v3235, 1.0
  %v3237 = vmul.f32 %v3236, 0.5
  %v3238 = vadd.f32 %v3230, %v1836
  %3240 = vrot.lane.b32.xlu0 %v3238, 64
  %v3241 = vpop.permute.xlu0 %3240
  %v3243 = vmul.f32 %v3237, %v3241
  %3245 = vrot.lane.b32.xlu0 %v3243, 64
  %v3246 = vpop.permute.xlu0 %3245
  %v3248 = vadd.f32 %v1621, %v3246
  %v3249 = vtanh.pop %v3248
  %v3250 = vsub.f32 1.0, %v3237
  %3252 = vrot.lane.b32.xlu0 %v3249, 96
  %v3253 = vpop.permute.xlu0 %3252
  %v3255 = vmul.f32 %v3250, %v3253
  %v3256 = vmul.f32 %v3237, %v3157
  %v3257 = vadd.f32 %v3255, %v3256
  %3259 = vrot.lane.b32.xlu0 %v3257, 96
  %v3260 = vpop.permute.xlu0 %3259
  %v3261 = vsel %vm1418, %v3260, 0
  %3263 = vmatprep.subr.mxu0 0.0
  %3264 = vmatpush1.msra.mxu0 %v1727
  %3265 = vmatprep.subr.mxu0 0.0
  %3266 = vmatpush1.msra.mxu0 %v1728
  %3267 = vmatprep.subr.mxu0 0.0
  %3268 = vmatpush1.msra.mxu0 %v1729
  %3269 = vmatprep.subr.mxu0 0.0
  %3270 = vmatpush1.msra.mxu0 %v1730
  %3271 = vmatprep.subr.mxu0 0.0
  %3272 = vmatpush1.msra.mxu0 0.0
  %3273 = vmatprep.subr.mxu0 0.0
  %3274 = vmatpush1.msra.mxu0 0.0
  %3275 = vmatprep.subr.mxu0 0.0
  %3276 = vmatpush1.msra.mxu0 0.0
  %3277 = vmatprep.subr.mxu0 0.0
  %3278 = vmatpush1.msra.mxu0 0.0
  %3279 = vmatprep.subr.mxu0 0.0
  %3280 = vmatpush1.msra.mxu0 0.0
  %3281 = vmatprep.subr.mxu0 0.0
  %3282 = vmatpush1.msra.mxu0 0.0
  %3283 = vmatprep.subr.mxu0 0.0
  %3284 = vmatpush1.msra.mxu0 0.0
  %3285 = vmatprep.subr.mxu0 0.0
  %3286 = vmatpush1.msra.mxu0 0.0
  %3287 = vmatprep.subr.mxu0 0.0
  %3288 = vmatpush1.msra.mxu0 0.0
  %3289 = vmatprep.subr.mxu0 0.0
  %3290 = vmatpush1.msra.mxu0 0.0
  %3291 = vmatprep.subr.mxu0 0.0
  %3292 = vmatpush1.msra.mxu0 0.0
  %3293 = vmatprep.subr.mxu0 0.0
  %3294 = vmatpush1.msra.mxu0 0.0
  %3295 = vmatprep.subr.mxu0 0.0
  %3296 = vmatpush1.msra.mxu0 0.0
  %3297 = vmatprep.subr.mxu0 0.0
  %3298 = vmatpush1.msra.mxu0 0.0
  %3299 = vmatprep.subr.mxu0 0.0
  %3300 = vmatpush1.msra.mxu0 0.0
  %3301 = vmatprep.subr.mxu0 0.0
  %3302 = vmatpush1.msra.mxu0 0.0
  %3303 = vmatprep.subr.mxu0 0.0
  %3304 = vmatpush1.msra.mxu0 0.0
  %3305 = vmatprep.subr.mxu0 0.0
  %3306 = vmatpush1.msra.mxu0 0.0
  %3307 = vmatprep.subr.mxu0 0.0
  %3308 = vmatpush1.msra.mxu0 0.0
  %3309 = vmatprep.subr.mxu0 0.0
  %3310 = vmatpush1.msra.mxu0 0.0
  %3311 = vmatprep.subr.mxu0 0.0
  %3312 = vmatpush1.msra.mxu0 0.0
  %3313 = vmatprep.subr.mxu0 0.0
  %3314 = vmatpush1.msra.mxu0 0.0
  %3315 = vmatprep.subr.mxu0 0.0
  %3316 = vmatpush1.msra.mxu0 0.0
  %3317 = vmatprep.subr.mxu0 0.0
  %3318 = vmatpush1.msra.mxu0 0.0
  %3319 = vmatprep.subr.mxu0 0.0
  %3320 = vmatpush1.msra.mxu0 0.0
  %3321 = vmatprep.subr.mxu0 0.0
  %3322 = vmatpush1.msra.mxu0 0.0
  %3323 = vmatprep.subr.mxu0 0.0
  %3324 = vmatpush1.msra.mxu0 0.0
  %3325 = vmatprep.subr.mxu0 0.0
  %3326 = vmatpush1.msra.mxu0 0.0
  %3327 = vmatprep.mubr.f32.mxu0 0.0
  %3328 = vmatmul.mubr.f32.gmra.mrb[0].mxu0 %v3261
  %v3329 = vpop.f32.mrb[0].mxu0
  %v3330 = vadd.f32 0.0, %v3329
  %v3331 = vpop.f32.mrb[0].mxu0
  %3332 = vdwg.mxu0
  %v3333 = vadd.f32 %v1626, %v3330
  %v3334 = vmul.f32 %v3333, 0.5
  %v3335 = vtanh.pop %v3334
  %v3336 = vadd.f32 %v3335, 1.0
  %v3337 = vmul.f32 %v3336, 0.5
  %v3338 = vadd.f32 %v3330, %v1836
  %3340 = vrot.lane.b32.xlu0 %v3338, 64
  %v3341 = vpop.permute.xlu0 %3340
  %v3343 = vmul.f32 %v3337, %v3341
  %3345 = vrot.lane.b32.xlu0 %v3343, 64
  %v3346 = vpop.permute.xlu0 %3345
  %v3348 = vadd.f32 %v1626, %v3346
  %v3349 = vtanh.pop %v3348
  %v3350 = vsub.f32 1.0, %v3337
  %3352 = vrot.lane.b32.xlu0 %v3349, 96
  %v3353 = vpop.permute.xlu0 %3352
  %v3355 = vmul.f32 %v3350, %v3353
  %v3356 = vmul.f32 %v3337, %v3257
  %v3357 = vadd.f32 %v3355, %v3356
  %3359 = vrot.lane.b32.xlu0 %v3357, 96
  %v3360 = vpop.permute.xlu0 %3359
  %v3361 = vsel %vm1418, %v3360, 0
  %3363 = vmatprep.subr.mxu0 0.0
  %3364 = vmatpush1.msra.mxu0 %v1727
  %3365 = vmatprep.subr.mxu0 0.0
  %3366 = vmatpush1.msra.mxu0 %v1728
  %3367 = vmatprep.subr.mxu0 0.0
  %3368 = vmatpush1.msra.mxu0 %v1729
  %3369 = vmatprep.subr.mxu0 0.0
  %3370 = vmatpush1.msra.mxu0 %v1730
  %3371 = vmatprep.subr.mxu0 0.0
  %3372 = vmatpush1.msra.mxu0 0.0
  %3373 = vmatprep.subr.mxu0 0.0
  %3374 = vmatpush1.msra.mxu0 0.0
  %3375 = vmatprep.subr.mxu0 0.0
  %3376 = vmatpush1.msra.mxu0 0.0
  %3377 = vmatprep.subr.mxu0 0.0
  %3378 = vmatpush1.msra.mxu0 0.0
  %3379 = vmatprep.subr.mxu0 0.0
  %3380 = vmatpush1.msra.mxu0 0.0
  %3381 = vmatprep.subr.mxu0 0.0
  %3382 = vmatpush1.msra.mxu0 0.0
  %3383 = vmatprep.subr.mxu0 0.0
  %3384 = vmatpush1.msra.mxu0 0.0
  %3385 = vmatprep.subr.mxu0 0.0
  %3386 = vmatpush1.msra.mxu0 0.0
  %3387 = vmatprep.subr.mxu0 0.0
  %3388 = vmatpush1.msra.mxu0 0.0
  %3389 = vmatprep.subr.mxu0 0.0
  %3390 = vmatpush1.msra.mxu0 0.0
  %3391 = vmatprep.subr.mxu0 0.0
  %3392 = vmatpush1.msra.mxu0 0.0
  %3393 = vmatprep.subr.mxu0 0.0
  %3394 = vmatpush1.msra.mxu0 0.0
  %3395 = vmatprep.subr.mxu0 0.0
  %3396 = vmatpush1.msra.mxu0 0.0
  %3397 = vmatprep.subr.mxu0 0.0
  %3398 = vmatpush1.msra.mxu0 0.0
  %3399 = vmatprep.subr.mxu0 0.0
  %3400 = vmatpush1.msra.mxu0 0.0
  %3401 = vmatprep.subr.mxu0 0.0
  %3402 = vmatpush1.msra.mxu0 0.0
  %3403 = vmatprep.subr.mxu0 0.0
  %3404 = vmatpush1.msra.mxu0 0.0
  %3405 = vmatprep.subr.mxu0 0.0
  %3406 = vmatpush1.msra.mxu0 0.0
  %3407 = vmatprep.subr.mxu0 0.0
  %3408 = vmatpush1.msra.mxu0 0.0
  %3409 = vmatprep.subr.mxu0 0.0
  %3410 = vmatpush1.msra.mxu0 0.0
  %3411 = vmatprep.subr.mxu0 0.0
  %3412 = vmatpush1.msra.mxu0 0.0
  %3413 = vmatprep.subr.mxu0 0.0
  %3414 = vmatpush1.msra.mxu0 0.0
  %3415 = vmatprep.subr.mxu0 0.0
  %3416 = vmatpush1.msra.mxu0 0.0
  %3417 = vmatprep.subr.mxu0 0.0
  %3418 = vmatpush1.msra.mxu0 0.0
  %3419 = vmatprep.subr.mxu0 0.0
  %3420 = vmatpush1.msra.mxu0 0.0
  %3421 = vmatprep.subr.mxu0 0.0
  %3422 = vmatpush1.msra.mxu0 0.0
  %3423 = vmatprep.subr.mxu0 0.0
  %3424 = vmatpush1.msra.mxu0 0.0
  %3425 = vmatprep.subr.mxu0 0.0
  %3426 = vmatpush1.msra.mxu0 0.0
  %3427 = vmatprep.mubr.f32.mxu0 0.0
  %3428 = vmatmul.mubr.f32.gmra.mrb[0].mxu0 %v3361
  %v3429 = vpop.f32.mrb[0].mxu0
  %v3430 = vadd.f32 0.0, %v3429
  %v3431 = vpop.f32.mrb[0].mxu0
  %3432 = vdwg.mxu0
  %v3433 = vadd.f32 %v1631, %v3430
  %v3434 = vmul.f32 %v3433, 0.5
  %v3435 = vtanh.pop %v3434
  %v3436 = vadd.f32 %v3435, 1.0
  %v3437 = vmul.f32 %v3436, 0.5
  %v3438 = vadd.f32 %v3430, %v1836
  %3440 = vrot.lane.b32.xlu0 %v3438, 64
  %v3441 = vpop.permute.xlu0 %3440
  %v3443 = vmul.f32 %v3437, %v3441
  %3445 = vrot.lane.b32.xlu0 %v3443, 64
  %v3446 = vpop.permute.xlu0 %3445
  %v3448 = vadd.f32 %v1631, %v3446
  %v3449 = vtanh.pop %v3448
  %v3450 = vsub.f32 1.0, %v3437
  %3452 = vrot.lane.b32.xlu0 %v3449, 96
  %v3453 = vpop.permute.xlu0 %3452
  %v3455 = vmul.f32 %v3450, %v3453
  %v3456 = vmul.f32 %v3437, %v3357
  %v3457 = vadd.f32 %v3455, %v3456
  %3459 = vrot.lane.b32.xlu0 %v3457, 96
  %v3460 = vpop.permute.xlu0 %3459
  %v3461 = vsel %vm1418, %v3460, 0
  %3463 = vmatprep.subr.mxu0 0.0
  %3464 = vmatpush1.msra.mxu0 %v1727
  %3465 = vmatprep.subr.mxu0 0.0
  %3466 = vmatpush1.msra.mxu0 %v1728
  %3467 = vmatprep.subr.mxu0 0.0
  %3468 = vmatpush1.msra.mxu0 %v1729
  %3469 = vmatprep.subr.mxu0 0.0
  %3470 = vmatpush1.msra.mxu0 %v1730
  %3471 = vmatprep.subr.mxu0 0.0
  %3472 = vmatpush1.msra.mxu0 0.0
  %3473 = vmatprep.subr.mxu0 0.0
  %3474 = vmatpush1.msra.mxu0 0.0
  %3475 = vmatprep.subr.mxu0 0.0
  %3476 = vmatpush1.msra.mxu0 0.0
  %3477 = vmatprep.subr.mxu0 0.0
  %3478 = vmatpush1.msra.mxu0 0.0
  %3479 = vmatprep.subr.mxu0 0.0
  %3480 = vmatpush1.msra.mxu0 0.0
  %3481 = vmatprep.subr.mxu0 0.0
  %3482 = vmatpush1.msra.mxu0 0.0
  %3483 = vmatprep.subr.mxu0 0.0
  %3484 = vmatpush1.msra.mxu0 0.0
  %3485 = vmatprep.subr.mxu0 0.0
  %3486 = vmatpush1.msra.mxu0 0.0
  %3487 = vmatprep.subr.mxu0 0.0
  %3488 = vmatpush1.msra.mxu0 0.0
  %3489 = vmatprep.subr.mxu0 0.0
  %3490 = vmatpush1.msra.mxu0 0.0
  %3491 = vmatprep.subr.mxu0 0.0
  %3492 = vmatpush1.msra.mxu0 0.0
  %3493 = vmatprep.subr.mxu0 0.0
  %3494 = vmatpush1.msra.mxu0 0.0
  %3495 = vmatprep.subr.mxu0 0.0
  %3496 = vmatpush1.msra.mxu0 0.0
  %3497 = vmatprep.subr.mxu0 0.0
  %3498 = vmatpush1.msra.mxu0 0.0
  %3499 = vmatprep.subr.mxu0 0.0
  %3500 = vmatpush1.msra.mxu0 0.0
  %3501 = vmatprep.subr.mxu0 0.0
  %3502 = vmatpush1.msra.mxu0 0.0
  %3503 = vmatprep.subr.mxu0 0.0
  %3504 = vmatpush1.msra.mxu0 0.0
  %3505 = vmatprep.subr.mxu0 0.0
  %3506 = vmatpush1.msra.mxu0 0.0
  %3507 = vmatprep.subr.mxu0 0.0
  %3508 = vmatpush1.msra.mxu0 0.0
  %3509 = vmatprep.subr.mxu0 0.0
  %3510 = vmatpush1.msra.mxu0 0.0
  %3511 = vmatprep.subr.mxu0 0.0
  %3512 = vmatpush1.msra.mxu0 0.0
  %3513 = vmatprep.subr.mxu0 0.0
  %3514 = vmatpush1.msra.mxu0 0.0
  %3515 = vmatprep.subr.mxu0 0.0
  %3516 = vmatpush1.msra.mxu0 0.0
  %3517 = vmatprep.subr.mxu0 0.0
  %3518 = vmatpush1.msra.mxu0 0.0
  %3519 = vmatprep.subr.mxu0 0.0
  %3520 = vmatpush1.msra.mxu0 0.0
  %3521 = vmatprep.subr.mxu0 0.0
  %3522 = vmatpush1.msra.mxu0 0.0
  %3523 = vmatprep.subr.mxu0 0.0
  %3524 = vmatpush1.msra.mxu0 0.0
  %3525 = vmatprep.subr.mxu0 0.0
  %3526 = vmatpush1.msra.mxu0 0.0
  %3527 = vmatprep.mubr.f32.mxu0 0.0
  %3528 = vmatmul.mubr.f32.gmra.mrb[0].mxu0 %v3461
  %v3529 = vpop.f32.mrb[0].mxu0
  %v3530 = vadd.f32 0.0, %v3529
  %v3531 = vpop.f32.mrb[0].mxu0
  %3532 = vdwg.mxu0
  %v3533 = vadd.f32 %v1636, %v3530
  %v3534 = vmul.f32 %v3533, 0.5
  %v3535 = vtanh.pop %v3534
  %v3536 = vadd.f32 %v3535, 1.0
  %v3537 = vmul.f32 %v3536, 0.5
  %v3538 = vadd.f32 %v3530, %v1836
  %3540 = vrot.lane.b32.xlu0 %v3538, 64
  %v3541 = vpop.permute.xlu0 %3540
  %v3543 = vmul.f32 %v3537, %v3541
  %3545 = vrot.lane.b32.xlu0 %v3543, 64
  %v3546 = vpop.permute.xlu0 %3545
  %v3548 = vadd.f32 %v1636, %v3546
  %v3549 = vtanh.pop %v3548
  %v3550 = vsub.f32 1.0, %v3537
  %3552 = vrot.lane.b32.xlu0 %v3549, 96
  %v3553 = vpop.permute.xlu0 %3552
  %v3555 = vmul.f32 %v3550, %v3553
  %v3556 = vmul.f32 %v3537, %v3457
  %v3557 = vadd.f32 %v3555, %v3556
  %3559 = vrot.lane.b32.xlu0 %v3557, 96
  %v3560 = vpop.permute.xlu0 %3559
  %v3561 = vsel %vm1418, %v3560, 0
  %3563 = vmatprep.subr.mxu0 0.0
  %3564 = vmatpush1.msra.mxu0 %v1727
  %3565 = vmatprep.subr.mxu0 0.0
  %3566 = vmatpush1.msra.mxu0 %v1728
  %3567 = vmatprep.subr.mxu0 0.0
  %3568 = vmatpush1.msra.mxu0 %v1729
  %3569 = vmatprep.subr.mxu0 0.0
  %3570 = vmatpush1.msra.mxu0 %v1730
  %3571 = vmatprep.subr.mxu0 0.0
  %3572 = vmatpush1.msra.mxu0 0.0
  %3573 = vmatprep.subr.mxu0 0.0
  %3574 = vmatpush1.msra.mxu0 0.0
  %3575 = vmatprep.subr.mxu0 0.0
  %3576 = vmatpush1.msra.mxu0 0.0
  %3577 = vmatprep.subr.mxu0 0.0
  %3578 = vmatpush1.msra.mxu0 0.0
  %3579 = vmatprep.subr.mxu0 0.0
  %3580 = vmatpush1.msra.mxu0 0.0
  %3581 = vmatprep.subr.mxu0 0.0
  %3582 = vmatpush1.msra.mxu0 0.0
  %3583 = vmatprep.subr.mxu0 0.0
  %3584 = vmatpush1.msra.mxu0 0.0
  %3585 = vmatprep.subr.mxu0 0.0
  %3586 = vmatpush1.msra.mxu0 0.0
  %3587 = vmatprep.subr.mxu0 0.0
  %3588 = vmatpush1.msra.mxu0 0.0
  %3589 = vmatprep.subr.mxu0 0.0
  %3590 = vmatpush1.msra.mxu0 0.0
  %3591 = vmatprep.subr.mxu0 0.0
  %3592 = vmatpush1.msra.mxu0 0.0
  %3593 = vmatprep.subr.mxu0 0.0
  %3594 = vmatpush1.msra.mxu0 0.0
  %3595 = vmatprep.subr.mxu0 0.0
  %3596 = vmatpush1.msra.mxu0 0.0
  %3597 = vmatprep.subr.mxu0 0.0
  %3598 = vmatpush1.msra.mxu0 0.0
  %3599 = vmatprep.subr.mxu0 0.0
  %3600 = vmatpush1.msra.mxu0 0.0
  %3601 = vmatprep.subr.mxu0 0.0
  %3602 = vmatpush1.msra.mxu0 0.0
  %3603 = vmatprep.subr.mxu0 0.0
  %3604 = vmatpush1.msra.mxu0 0.0
  %3605 = vmatprep.subr.mxu0 0.0
  %3606 = vmatpush1.msra.mxu0 0.0
  %3607 = vmatprep.subr.mxu0 0.0
  %3608 = vmatpush1.msra.mxu0 0.0
  %3609 = vmatprep.subr.mxu0 0.0
  %3610 = vmatpush1.msra.mxu0 0.0
  %3611 = vmatprep.subr.mxu0 0.0
  %3612 = vmatpush1.msra.mxu0 0.0
  %3613 = vmatprep.subr.mxu0 0.0
  %3614 = vmatpush1.msra.mxu0 0.0
  %3615 = vmatprep.subr.mxu0 0.0
  %3616 = vmatpush1.msra.mxu0 0.0
  %3617 = vmatprep.subr.mxu0 0.0
  %3618 = vmatpush1.msra.mxu0 0.0
  %3619 = vmatprep.subr.mxu0 0.0
  %3620 = vmatpush1.msra.mxu0 0.0
  %3621 = vmatprep.subr.mxu0 0.0
  %3622 = vmatpush1.msra.mxu0 0.0
  %3623 = vmatprep.subr.mxu0 0.0
  %3624 = vmatpush1.msra.mxu0 0.0
  %3625 = vmatprep.subr.mxu0 0.0
  %3626 = vmatpush1.msra.mxu0 0.0
  %3627 = vmatprep.mubr.f32.mxu0 0.0
  %3628 = vmatmul.mubr.f32.gmra.mrb[0].mxu0 %v3561
  %v3629 = vpop.f32.mrb[0].mxu0
  %v3630 = vadd.f32 0.0, %v3629
  %v3631 = vpop.f32.mrb[0].mxu0
  %3632 = vdwg.mxu0
  %v3633 = vadd.f32 %v1641, %v3630
  %v3634 = vmul.f32 %v3633, 0.5
  %v3635 = vtanh.pop %v3634
  %v3636 = vadd.f32 %v3635, 1.0
  %v3637 = vmul.f32 %v3636, 0.5
  %v3638 = vadd.f32 %v3630, %v1836
  %3640 = vrot.lane.b32.xlu0 %v3638, 64
  %v3641 = vpop.permute.xlu0 %3640
  %v3643 = vmul.f32 %v3637, %v3641
  %3645 = vrot.lane.b32.xlu0 %v3643, 64
  %v3646 = vpop.permute.xlu0 %3645
  %v3648 = vadd.f32 %v1641, %v3646
  %v3649 = vtanh.pop %v3648
  %v3650 = vsub.f32 1.0, %v3637
  %3652 = vrot.lane.b32.xlu0 %v3649, 96
  %v3653 = vpop.permute.xlu0 %3652
  %v3655 = vmul.f32 %v3650, %v3653
  %v3656 = vmul.f32 %v3637, %v3557
  %v3657 = vadd.f32 %v3655, %v3656
  %v3658 = vmul.f32 %v1724, 0.5
  %v3659 = vtanh.pop %v3658
  %v3660 = vadd.f32 %v3659, 1.0
  %v3661 = vmul.f32 %v3660, 0.5
  %s3662 = scalar_lea.vmem %s5, 1
  %v3663 = vld [vmem:[%s3662] sm:$0x1]
  %v3665 = vlaneseq
  %v3666 = vshrl.u32 %v3665, 7
  %v3667 = vsub.s32 0, %v3666
  %v3668 = vrot.slane %v3663, %v3667
  %v3670 = vmul.f32 %v3661, %v3668
  %3672 = vrot.lane.b32.xlu0 %v3670, 64
  %v3673 = vpop.permute.xlu0 %3672
  %v3675 = vadd.f32 %v1724, %v3673
  %v3676 = vtanh.pop %v3675
  %v3677 = vsub.f32 1.0, %v3661
  %3679 = vrot.lane.b32.xlu0 %v3676, 96
  %v3680 = vpop.permute.xlu0 %3679
  %v3682 = vmul.f32 %v3677, %v3680
  %v3683 = vld [vmem:[%s6] sm:$0x1]
  %v3685 = vlaneseq
  %v3686 = vshrl.u32 %v3685, 7
  %v3687 = vsub.s32 0, %v3686
  %v3688 = vrot.slane %v3683, %v3687
  %3689 = vrot.lane.b32.xlu0 %v3688, 32
  %v3690 = vpop.permute.xlu0 %3689
  %v3692 = vmul.f32 %v3657, %v3690
  %s3693 = scalar_lea.vmem %s6, 1
  %v3694 = vld [vmem:[%s3693] sm:$0x1]
  %v3696 = vlaneseq
  %v3697 = vshrl.u32 %v3696, 7
  %v3698 = vsub.s32 0, %v3697
  %v3699 = vrot.slane %v3694, %v3698
  %3700 = vrot.lane.b32.xlu0 %v3699, 32
  %v3701 = vpop.permute.xlu0 %3700
  %v3703 = vmul.f32 %v3682, %v3701
  %v3704 = vadd.f32 %v3692, %v3703
  %3706 = vrot.lane.b32.xlu0 %v3704, 96
  %v3707 = vpop.permute.xlu0 %3706
  %v3709 = vsel %vm1418, %v3707, 0.0
  %3710 = vadd.xlane.f32.xlu0 %v3709
  %v3711 = vpop.xlane.xlu0 %3710
  %v3712 = vld [vmem:[#allocation2] sm:$0x1]
  %v3714 = vlaneseq
  %v3715 = vshrl.u32 %v3714, 7
  %v3716 = vsub.s32 0, %v3715
  %v3717 = vrot.slane %v3712, %v3716
  %v3719 = vadd.f32 %v3711, %v3717
  %v3720 = vmul.f32 %v3719, 0.5
  %v3721 = vtanh.pop %v3720
  %v3722 = vadd.f32 %v3721, 1.0
  %v3723 = vmul.f32 %v3722, 0.5
  %vm3724 = vcmask 7168
  %3725 = vst.msk [vmem:[%s8] sm:$0xff] %vm3724, %v3723
  // Predicated region
  $region34: #{tpu_custom_call.1} parent=0 // pred_check
    _
  $region35: #{tpu_custom_call.1} parent=0 // pred_check_branch
    %3727 = sbr.rel (0) target = $region37
  $region36: #{tpu_custom_call.1} parent=0 // pred_region
    _
  $region37: #{tpu_custom_call.1} parent=0 // pred_fallthru
    _
  // Predicated region
  $region38: #{tpu_custom_call.1} parent=0 // pred_check
    _
  $region39: #{tpu_custom_call.1} parent=0 // pred_check_branch
    %3729 = sbr.rel (0) target = $region41
  $region40: #{tpu_custom_call.1} parent=0 // pred_region
    _
  $region41: #{tpu_custom_call.1} parent=0 // pred_fallthru
    _

</llo_original>
